<compile_context>
chip_gen: v5e
topology: v5e:2x2
jax: 0.10.0
libtpu: 0.0.40
codegen_flags: <defaults>
</compile_context>

<pallas_src>
import math

import jax
import jax.numpy as jnp
import numpy as np
from jax import lax
from jax.experimental import pallas as pl
from jax.experimental.pallas import tpu as pltpu


# ------------------------------------------------------------------ helpers --
def conv_padding(kernel: int, stride: int) -> int:
    return math.floor((kernel - stride) / 2)


def deconv_padding(kernel: int, stride: int):
    return (math.ceil((kernel - stride) / 2), (kernel - stride) % 2)


def _softplus(x):
    # torch.nn.Softplus(beta=1, threshold=20), numerically stable form.
    sp = jnp.maximum(x, 0.0) + jnp.log(1.0 + jnp.exp(-jnp.abs(x)))
    return jnp.where(x > 20.0, x, sp)


def _plan(params, batch):
    """Static geometry of every conv stage in the channel-major flat layout."""
    L, CL = params['linear_layers'], params['conv_layers']
    C0 = params['conv0_channels']
    H0 = int(round(math.sqrt(params[f'linear{L}_size'] // C0)))
    B = batch
    stages = []
    H, C = H0, C0
    for i in range(1, CL):                         # ConvTranspose2d stages
        k, s = params[f'conv{i}_kernel'], params[f'conv{i}_stride']
        Cout = params[f'conv{i}_channels']
        p, op = deconv_padding(k, s)
        lo = k - 1 - p
        hi = lo + op
        Hp = (H - 1) * s + 1 + lo + hi             # dilated + padded size
        Ho = Hp - k + 1                            # deconv output size
        # contiguous flat window covering every valid output position
        M = (B - 1) * Hp * Hp + (Ho - 1) * Hp + Ho
        stages.append(dict(k=k, s=s, lo=lo, Cin=C, Cout=Cout, Hi=H,
                           Hp=Hp, Ho=Ho, Np=B * Hp * Hp, M=M))
        H, C = Ho, Cout
    # final Conv2d runs directly on the previous stage's flat geometry
    k, s = params[f'conv{CL}_kernel'], params[f'conv{CL}_stride']
    Cout = params[f'conv{CL}_channels']
    p = conv_padding(k, s)
    prev = stages[-1]
    # TODO(synk): only a stride-1, odd-kernel, 'same'-padding final conv is
    # supported by the in-place margin trick; other configs would need an
    # explicit padded buffer.
    assert s == 1 and k % 2 == 1 and p == (k - 1) // 2
    assert prev['Hp'] - prev['Ho'] >= p
    final = dict(k=k, p=p, Cin=C, Cout=Cout, Ho=H, Wrow=prev['Hp'],
                 Nflat=prev['Np'])
    return H0, stages, final


# ----------------------------------------------------- prepared constants --
def _scatter0(B, H0, st):
    """(B*H0*H0, Np1): channel-major H0 x H0 grid -> stride-dilated, padded buffer."""
    Hp, lo, s = st['Hp'], st['lo'], st['s']
    S = np.zeros((B * H0 * H0, B * Hp * Hp), np.float32)
    for b in range(B):
        for h in range(H0):
            for w in range(H0):
                S[b * H0 * H0 + h * H0 + w,
                  b * Hp * Hp + (lo + s * h) * Hp + (lo + s * w)] = 1.0
    return S


def _scatter_mid(B, st_prev, st_next):
    """(M_prev, Np_next): valid deconv outputs -> dilated/padded next-stage input."""
    Hp_p, Ho_p = st_prev['Hp'], st_prev['Ho']
    Hp_n, lo, s = st_next['Hp'], st_next['lo'], st_next['s']
    S = np.zeros((st_prev['M'], B * Hp_n * Hp_n), np.float32)
    for b in range(B):
        for y in range(Ho_p):
            for x in range(Ho_p):
                S[b * Hp_p * Hp_p + y * Hp_p + x,
                  b * Hp_n * Hp_n + (lo + s * y) * Hp_n + (lo + s * x)] = 1.0
    return S


def _valid_mask(B, st):
    """(1, M): 1.0 at flat positions that are real (b, y<Ho, x<Ho) outputs."""
    Hp, Ho = st['Hp'], st['Ho']
    m = np.zeros((1, st['M']), np.float32)
    for b in range(B):
        for y in range(Ho):
            for x in range(Ho):
                m[0, b * Hp * Hp + y * Hp + x] = 1.0
    return m


def prepare_pallas_weights(params, weights, batch):
    """One-time weight transforms: bf16 MXU operands, per-tap (Cout, Cin) matrices,
    0/1 dilation/padding scatter matrices, BN params as (C, 1) columns."""
    L, CL = params['linear_layers'], params['conv_layers']
    H0, stages, final = _plan(params, batch)
    bf16 = jnp.bfloat16
    args = []
    for i in range(1, L + 1):
        args.append(weights[f'linear{i}'].astype(bf16))
    args.append(jnp.asarray(_scatter0(batch, H0, stages[0]), bf16))
    for si, st in enumerate(stages):
        i = si + 1
        w = np.asarray(weights[f'deconv{i}'])               # (Cin, Cout, k, k)
        k = st['k']
        wf = np.transpose(w[:, :, ::-1, ::-1], (2, 3, 1, 0))  # flipped (k,k,Cout,Cin)
        args.append(jnp.asarray(
            np.ascontiguousarray(wf).reshape(k * k * st['Cout'], st['Cin']), bf16))
        args.append(jnp.asarray(
            np.asarray(weights[f'bn{i}_gamma']).reshape(st['Cout'], 1), jnp.float32))
        args.append(jnp.asarray(
            np.asarray(weights[f'bn{i}_beta']).reshape(st['Cout'], 1), jnp.float32))
        args.append(jnp.asarray(_valid_mask(batch, st), jnp.float32))
        if si + 1 < len(stages):
            args.append(jnp.asarray(_scatter_mid(batch, st, stages[si + 1]), bf16))
    w = np.asarray(weights[f'deconv{CL}'])                   # (Cout, Cin, k, k)
    k = final['k']
    wc = np.transpose(w, (2, 3, 0, 1)).reshape(k * k * final['Cout'], final['Cin'])
    args.append(jnp.asarray(np.ascontiguousarray(wc), bf16))
    return args


# --------------------------------------------------------------- fused kernel --
def make_face_decoder_forward(params, batch, prepared):
    L, CL = params['linear_layers'], params['conv_layers']
    H0, stages, final = _plan(params, batch)
    B = batch
    ND = len(stages)
    hw0 = H0 * H0
    C0 = stages[0]['Cin']
    k3, p3, C3 = final['k'], final['p'], final['Cout']
    Cin3, Wrow, N3 = final['Cin'], final['Wrow'], final['Nflat']
    Ho3 = final['Ho']
    Mlast = stages[-1]['M']
    MARG = 128                                       # lane-aligned zero margin
    base = MARG - p3 * (Wrow + 1)
    assert base >= 0
    buf_w = -(-(MARG + p3 * (Wrow + 1) + N3) // 128) * 128
    bf16, f32 = jnp.bfloat16, jnp.float32

    def kernel(*refs):
        it = iter(refs)
        x_ref = next(it)
        lin_w = [next(it) for _ in range(L)]
        s0_ref = next(it)
        stage_refs = []
        for si in range(ND):
            w = next(it); g = next(it); bt = next(it); vmr = next(it)
            sn = next(it) if si + 1 < ND else None
            stage_refs.append((w, g, bt, vmr, sn))
        wc3_ref = next(it)
        out_ref = next(it)
        amb_ref = next(it)

        # ---- Linear + Softplus stack (tiny, stays in vregs) ----
        y = x_ref[...]
        for wref in lin_w:
            y = _softplus(jnp.dot(y.astype(bf16), wref[...],
                                  preferred_element_type=f32))
        # y: (B, C0*H0*W0), torch (c, h, w) feature order

        # ---- batch-major (B, C0*H0*W0) -> channel-major (C0, B*H0*W0) ----
        rows = []
        for c in range(C0):
            rows.append(jnp.concatenate(
                [y[b:b + 1, c * hw0:(c + 1) * hw0] for b in range(B)], axis=1))
        act = jnp.concatenate(rows, axis=0)                       # (C0, B*hw0)

        # ---- stride-dilate + pad into stage-1 geometry: one MXU matmul ----
        pad = jnp.dot(act.astype(bf16), s0_ref[...],
                      preferred_element_type=f32).astype(bf16)    # (C0, Np1)

        a_masked = None
        for si, st in enumerate(stages):
            w_ref, g_ref, b_ref, vm_ref, sn_ref = stage_refs[si]
            k, Cin, Cout = st['k'], st['Cin'], st['Cout']
            Wp, M = st['Hp'], st['M']
            w_all = w_ref[...]                                    # (k*k*Cout, Cin) bf16

            # ConvTranspose2d == k*k accumulated channel-major dots over static
            # lane windows of the padded, stride-dilated flat buffer.
            acc = jnp.zeros((Cout, M), f32)
            for dh in range(k):
                for dw in range(k):
                    t = dh * k + dw
                    off = dh * Wp + dw
                    acc = acc + jnp.dot(w_all[t * Cout:(t + 1) * Cout, :],
                                        pad[:, off:off + M],
                                        preferred_element_type=f32)

            # BatchNorm (train-mode batch stats over valid positions only) folded
            # into one per-channel scale/shift FMA, fused with Softplus.
            vm = vm_ref[...]                                      # (1, M) validity mask
            inv_n = 1.0 / float(B * st['Ho'] * st['Ho'])
            am = acc * vm
            mu = jnp.sum(am, axis=1, keepdims=True) * inv_n
            ex2 = jnp.sum(am * am, axis=1, keepdims=True) * inv_n
            scale = g_ref[...] * lax.rsqrt(ex2 - mu * mu + 1e-5)
            shift = b_ref[...] - mu * scale
            a = _softplus(am * scale + shift)                     # (Cout, M) f32

            if sn_ref is not None:
                # dilate/pad into the next stage's geometry: one MXU matmul
                # (zero rows of the scatter matrix drop the garbage columns).
                pad = jnp.dot(a.astype(bf16), sn_ref[...],
                              preferred_element_type=f32).astype(bf16)
            else:
                a_masked = a * vm                                 # garbage -> exact 0

        # ---- final Conv2d ('same', stride 1) directly on the last deconv's flat
        #      geometry: zero margin + masked garbage band supply the padding. ----
        amb_ref[...] = jnp.zeros(amb_ref.shape, bf16)
        amb_ref[:, MARG:MARG + Mlast] = a_masked.astype(bf16)
        wc = wc3_ref[...]                                         # (k3*k3*C3, Cin3)
        acc3 = jnp.zeros((C3, N3), f32)
        for dy in range(k3):
            for dx in range(k3):
                t = dy * k3 + dx
                off = base + dy * Wrow + dx
                acc3 = acc3 + jnp.dot(wc[t * C3:(t + 1) * C3, :],
                                      amb_ref[:, off:off + N3],
                                      preferred_element_type=f32)

        # lane-dense per-batch stores (last dim = Wrow*Wrow spatial positions)
        n = Wrow * Wrow
        for b in range(B):
            out_ref[b] = acc3[:, b * n:(b + 1) * n]

    def _full(shape):
        return pl.BlockSpec(tuple(shape), lambda i: (0,) * len(shape))

    in_shapes = [(B, params['linear0_size'])] + [tuple(a.shape) for a in prepared]
    fused = pl.pallas_call(
        kernel,
        out_shape=jax.ShapeDtypeStruct((B, C3, Wrow * Wrow), jnp.float32),
        grid=(1,),
        in_specs=[_full(s) for s in in_shapes],
        out_specs=_full((B, C3, Wrow * Wrow)),
        scratch_shapes=[pltpu.VMEM((Cin3, buf_w), jnp.bfloat16)],
        compiler_params=pltpu.CompilerParams(dimension_semantics=("arbitrary",)),
    )

    def forward(x, *pw):
        out = fused(x, *pw)                           # (B, C3, Wrow*Wrow)
        # crop the valid interior; tiny XLA slice outside the kernel
        return out.reshape(B, C3, Wrow, Wrow)[:, :, :Ho3, :Ho3]

    return jax.jit(forward)


# ----------------------------------------------------------- weights init --
def init_face_decoder(params, key):
    weights = {}
    L, CL = params['linear_layers'], params['conv_layers']
    keys = jax.random.split(key, 2 * L + 4 * CL)
    ki = 0
    for i in range(1, L + 1):
        fin, fout = params[f'linear{i - 1}_size'], params[f'linear{i}_size']
        weights[f'linear{i}'] = 0.1 * jax.random.normal(keys[ki], (fin, fout), jnp.float32)
        ki += 1
    for i in range(1, CL):
        cin, cout = params[f'conv{i - 1}_channels'], params[f'conv{i}_channels']
        k = params[f'conv{i}_kernel']
        weights[f'deconv{i}'] = 0.1 * jax.random.normal(keys[ki], (cin, cout, k, k), jnp.float32)
        ki += 1
        weights[f'bn{i}_gamma'] = 1.0 + 0.05 * jax.random.normal(keys[ki], (1, cout), jnp.float32)
        ki += 1
        weights[f'bn{i}_beta'] = 0.05 * jax.random.normal(keys[ki], (1, cout), jnp.float32)
        ki += 1
    cin, cout = params[f'conv{CL - 1}_channels'], params[f'conv{CL}_channels']
    k = params[f'conv{CL}_kernel']
    weights[f'deconv{CL}'] = 0.1 * jax.random.normal(keys[ki], (cout, cin, k, k), jnp.float32)
    return weights


# ----------------------------------------------------------- pure-JAX reference --
def _dilate_hw(x, s):
    if s == 1:
        return x
    B, H, W, C = x.shape
    out = jnp.zeros((B, (H - 1) * s + 1, (W - 1) * s + 1, C), x.dtype)
    return out.at[:, ::s, ::s, :].set(x)


def _deconv_weight_to_hwio(w_pt):
    return jnp.transpose(w_pt[:, :, ::-1, ::-1], (2, 3, 0, 1))


def _conv_weight_to_hwio(w_pt):
    return jnp.transpose(w_pt, (2, 3, 1, 0))


def face_decoder_reference(x, params, weights):
    """Pure-JAX/XLA reference at HIGHEST precision (validation only)."""
    L, CL = params['linear_layers'], params['conv_layers']
    hp = lax.Precision.HIGHEST
    for i in range(1, L + 1):
        x = _softplus(jnp.dot(x, weights[f'linear{i}'], precision=hp))
    C0 = params['conv0_channels']
    h = int(math.sqrt(params[f'linear{L}_size'] // C0))
    B = x.shape[0]
    x = jnp.transpose(x.reshape(B, C0, h, h), (0, 2, 3, 1))        # NHWC
    for i in range(1, CL):
        k, s = params[f'conv{i}_kernel'], params[f'conv{i}_stride']
        p, op = deconv_padding(k, s)
        lo, hi = k - 1 - p, k - 1 - p + op
        xd = jnp.pad(_dilate_hw(x, s), ((0, 0), (lo, hi), (lo, hi), (0, 0)))
        x = lax.conv_general_dilated(xd, _deconv_weight_to_hwio(weights[f'deconv{i}']),
                                     (1, 1), 'VALID',
                                     dimension_numbers=('NHWC', 'HWIO', 'NHWC'),
                                     precision=hp)
        m = jnp.mean(x, axis=(0, 1, 2), keepdims=True)
        v = jnp.mean((x - m) ** 2, axis=(0, 1, 2), keepdims=True)
        x = _softplus((x - m) * lax.rsqrt(v + 1e-5)
                      * weights[f'bn{i}_gamma'].reshape(1, 1, 1, -1)
                      + weights[f'bn{i}_beta'].reshape(1, 1, 1, -1))
    k, s = params[f'conv{CL}_kernel'], params[f'conv{CL}_stride']
    p = conv_padding(k, s)
    xp = jnp.pad(x, ((0, 0), (p, p), (p, p), (0, 0)))
    x = lax.conv_general_dilated(xp, _conv_weight_to_hwio(weights[f'deconv{CL}']),
                                 (s, s), 'VALID',
                                 dimension_numbers=('NHWC', 'HWIO', 'NHWC'),
                                 precision=hp)
    return jnp.transpose(x, (0, 3, 1, 2))                           # NCHW


# ------------------------------------------------------------------- main ----
if __name__ == "__main__":
    params = {
        'num_layers': 5,
        'linear_layers': 2,
        'conv_layers': 3,
        'linear0_size': 32,
        'linear1_size': 64,
        'linear2_size': 64,          # = conv0_channels * 4 * 4
        'conv0_channels': 4,
        'conv1_channels': 8, 'conv1_kernel': 4, 'conv1_stride': 2,
        'conv2_channels': 8, 'conv2_kernel': 4, 'conv2_stride': 2,
        'conv3_channels': 3, 'conv3_kernel': 3, 'conv3_stride': 1,
    }

    key = jax.random.PRNGKey(0)
    k_w, k_x = jax.random.split(key)
    weights = init_face_decoder(params, k_w)

    B = 2
    x = jax.random.normal(k_x, (B, params['linear0_size']), jnp.float32)

    prepared = prepare_pallas_weights(params, weights, B)
    forward = make_face_decoder_forward(params, B, prepared)

    out = jax.block_until_ready(forward(x, *prepared))
    ref = jax.block_until_ready(face_decoder_reference(x, params, weights))

    assert out.shape == (B, params['conv3_channels'], 16, 16), out.shape
    # Kernel matmuls use bf16 operands with f32 accumulation (standard MXU path),
    # including the 0/1 dilation-scatter matmuls; the reference is full f32 at
    # HIGHEST precision, hence the relaxed tolerance.
    np.testing.assert_allclose(np.asarray(out), np.asarray(ref), rtol=4e-2, atol=4e-2)
    print("KERNEL_OK")
</pallas_src>

<mosaic_0001>
module attributes {stable_mosaic.version = 11 : i64} {
  func.func @kernel(%arg0: i32, %arg1: memref<2x32xf32, #tpu.memory_space<vmem>>, %arg2: memref<32x64xbf16, #tpu.memory_space<vmem>>, %arg3: memref<64x64xbf16, #tpu.memory_space<vmem>>, %arg4: memref<32x242xbf16, #tpu.memory_space<vmem>>, %arg5: memref<128x4xbf16, #tpu.memory_space<vmem>>, %arg6: memref<8x1xf32, #tpu.memory_space<vmem>>, %arg7: memref<8x1xf32, #tpu.memory_space<vmem>>, %arg8: memref<1x206xf32, #tpu.memory_space<vmem>>, %arg9: memref<206x722xbf16, #tpu.memory_space<vmem>>, %arg10: memref<128x8xbf16, #tpu.memory_space<vmem>>, %arg11: memref<8x1xf32, #tpu.memory_space<vmem>>, %arg12: memref<8x1xf32, #tpu.memory_space<vmem>>, %arg13: memref<1x662xf32, #tpu.memory_space<vmem>>, %arg14: memref<27x8xbf16, #tpu.memory_space<vmem>>, %arg15: memref<2x3x361xf32, #tpu.memory_space<vmem>>, %arg16: memref<8x896xbf16, #tpu.memory_space<vmem>>) attributes {dimension_semantics = [#tpu.dimension_semantics<arbitrary>], iteration_bounds = array<i64: 1>, scalar_prefetch = 0 : i64, scratch_operands = 1 : i64, tpu.core_type = #tpu.core_type<tc>, window_params = [{pipeline_mode = #tpu.pipeline_mode<synchronous>, transform_indices = @transform_0, window_bounds = array<i64: 2, 32>}, {pipeline_mode = #tpu.pipeline_mode<synchronous>, transform_indices = @transform_1, window_bounds = array<i64: 32, 64>}, {pipeline_mode = #tpu.pipeline_mode<synchronous>, transform_indices = @transform_2, window_bounds = array<i64: 64, 64>}, {pipeline_mode = #tpu.pipeline_mode<synchronous>, transform_indices = @transform_3, window_bounds = array<i64: 32, 242>}, {pipeline_mode = #tpu.pipeline_mode<synchronous>, transform_indices = @transform_4, window_bounds = array<i64: 128, 4>}, {pipeline_mode = #tpu.pipeline_mode<synchronous>, transform_indices = @transform_5, window_bounds = array<i64: 8, 1>}, {pipeline_mode = #tpu.pipeline_mode<synchronous>, transform_indices = @transform_6, window_bounds = array<i64: 8, 1>}, {pipeline_mode = #tpu.pipeline_mode<synchronous>, transform_indices = @transform_7, window_bounds = array<i64: 1, 206>}, {pipeline_mode = #tpu.pipeline_mode<synchronous>, transform_indices = @transform_8, window_bounds = array<i64: 206, 722>}, {pipeline_mode = #tpu.pipeline_mode<synchronous>, transform_indices = @transform_9, window_bounds = array<i64: 128, 8>}, {pipeline_mode = #tpu.pipeline_mode<synchronous>, transform_indices = @transform_10, window_bounds = array<i64: 8, 1>}, {pipeline_mode = #tpu.pipeline_mode<synchronous>, transform_indices = @transform_11, window_bounds = array<i64: 8, 1>}, {pipeline_mode = #tpu.pipeline_mode<synchronous>, transform_indices = @transform_12, window_bounds = array<i64: 1, 662>}, {pipeline_mode = #tpu.pipeline_mode<synchronous>, transform_indices = @transform_13, window_bounds = array<i64: 27, 8>}, {pipeline_mode = #tpu.pipeline_mode<synchronous>, transform_indices = @transform_14, window_bounds = array<i64: 2, 3, 361>}]} {
    %c0 = arith.constant 0 : index
    %c0_0 = arith.constant 0 : index
    %0 = vector.load %arg1[%c0, %c0_0] : memref<2x32xf32, #tpu.memory_space<vmem>>, vector<2x32xf32>
    %1 = arith.truncf %0 : vector<2x32xf32> to vector<2x32xbf16>
    %c0_1 = arith.constant 0 : index
    %c0_2 = arith.constant 0 : index
    %2 = vector.load %arg2[%c0_1, %c0_2] : memref<32x64xbf16, #tpu.memory_space<vmem>>, vector<32x64xbf16>
    %cst = arith.constant dense<0.000000e+00> : vector<2x64xf32>
    %3 = tpu.matmul %1, %2, %cst {dimension_numbers = #tpu.dot_dimension_numbers<[1], [0], [0], [1], [0, 0, 1, 1], [], []>} : vector<2x32xbf16>, vector<32x64xbf16>, vector<2x64xf32> -> vector<2x64xf32>
    %cst_3 = arith.constant 0.000000e+00 : f32
    %4 = vector.broadcast %cst_3 : f32 to vector<2x64xf32>
    %5 = arith.maximumf %3, %4 : vector<2x64xf32>
    %6 = math.absf %3 : vector<2x64xf32>
    %cst_4 = arith.constant 0.000000e+00 : f32
    %7 = vector.broadcast %cst_4 : f32 to vector<2x64xf32>
    %8 = arith.subf %7, %6 : vector<2x64xf32>
    %9 = math.exp %8 : vector<2x64xf32>
    %cst_5 = arith.constant 1.000000e+00 : f32
    %10 = vector.broadcast %cst_5 : f32 to vector<2x64xf32>
    %11 = arith.addf %10, %9 : vector<2x64xf32>
    %12 = math.log %11 : vector<2x64xf32>
    %13 = arith.addf %5, %12 : vector<2x64xf32>
    %cst_6 = arith.constant 2.000000e+01 : f32
    %14 = vector.broadcast %cst_6 : f32 to vector<2x64xf32>
    %15 = arith.cmpf ogt, %3, %14 : vector<2x64xf32>
    %16 = arith.select %15, %3, %13 : vector<2x64xi1>, vector<2x64xf32>
    %17 = arith.truncf %16 : vector<2x64xf32> to vector<2x64xbf16>
    %c0_7 = arith.constant 0 : index
    %c0_8 = arith.constant 0 : index
    %18 = vector.load %arg3[%c0_7, %c0_8] : memref<64x64xbf16, #tpu.memory_space<vmem>>, vector<64x64xbf16>
    %cst_9 = arith.constant dense<0.000000e+00> : vector<2x64xf32>
    %19 = tpu.matmul %17, %18, %cst_9 {dimension_numbers = #tpu.dot_dimension_numbers<[1], [0], [0], [1], [0, 0, 1, 1], [], []>} : vector<2x64xbf16>, vector<64x64xbf16>, vector<2x64xf32> -> vector<2x64xf32>
    %cst_10 = arith.constant 0.000000e+00 : f32
    %20 = vector.broadcast %cst_10 : f32 to vector<2x64xf32>
    %21 = arith.maximumf %19, %20 : vector<2x64xf32>
    %22 = math.absf %19 : vector<2x64xf32>
    %cst_11 = arith.constant 0.000000e+00 : f32
    %23 = vector.broadcast %cst_11 : f32 to vector<2x64xf32>
    %24 = arith.subf %23, %22 : vector<2x64xf32>
    %25 = math.exp %24 : vector<2x64xf32>
    %cst_12 = arith.constant 1.000000e+00 : f32
    %26 = vector.broadcast %cst_12 : f32 to vector<2x64xf32>
    %27 = arith.addf %26, %25 : vector<2x64xf32>
    %28 = math.log %27 : vector<2x64xf32>
    %29 = arith.addf %21, %28 : vector<2x64xf32>
    %cst_13 = arith.constant 2.000000e+01 : f32
    %30 = vector.broadcast %cst_13 : f32 to vector<2x64xf32>
    %31 = arith.cmpf ogt, %19, %30 : vector<2x64xf32>
    %32 = arith.select %31, %19, %29 : vector<2x64xi1>, vector<2x64xf32>
    %33 = vector.extract_strided_slice %32 {offsets = [0, 0], sizes = [1, 16], strides = [1, 1]} : vector<2x64xf32> to vector<1x16xf32>
    %34 = vector.extract_strided_slice %32 {offsets = [1, 0], sizes = [1, 16], strides = [1, 1]} : vector<2x64xf32> to vector<1x16xf32>
    %35 = tpu.concatenate %33, %34 in 1 : vector<1x16xf32>, vector<1x16xf32> -> vector<1x32xf32>
    %36 = vector.extract_strided_slice %32 {offsets = [0, 16], sizes = [1, 16], strides = [1, 1]} : vector<2x64xf32> to vector<1x16xf32>
    %37 = vector.extract_strided_slice %32 {offsets = [1, 16], sizes = [1, 16], strides = [1, 1]} : vector<2x64xf32> to vector<1x16xf32>
    %38 = tpu.concatenate %36, %37 in 1 : vector<1x16xf32>, vector<1x16xf32> -> vector<1x32xf32>
    %39 = vector.extract_strided_slice %32 {offsets = [0, 32], sizes = [1, 16], strides = [1, 1]} : vector<2x64xf32> to vector<1x16xf32>
    %40 = vector.extract_strided_slice %32 {offsets = [1, 32], sizes = [1, 16], strides = [1, 1]} : vector<2x64xf32> to vector<1x16xf32>
    %41 = tpu.concatenate %39, %40 in 1 : vector<1x16xf32>, vector<1x16xf32> -> vector<1x32xf32>
    %42 = vector.extract_strided_slice %32 {offsets = [0, 48], sizes = [1, 16], strides = [1, 1]} : vector<2x64xf32> to vector<1x16xf32>
    %43 = vector.extract_strided_slice %32 {offsets = [1, 48], sizes = [1, 16], strides = [1, 1]} : vector<2x64xf32> to vector<1x16xf32>
    %44 = tpu.concatenate %42, %43 in 1 : vector<1x16xf32>, vector<1x16xf32> -> vector<1x32xf32>
    %45 = tpu.concatenate %35, %38, %41, %44 in 0 : vector<1x32xf32>, vector<1x32xf32>, vector<1x32xf32>, vector<1x32xf32> -> vector<4x32xf32>
    %46 = arith.truncf %45 : vector<4x32xf32> to vector<4x32xbf16>
    %c0_14 = arith.constant 0 : index
    %c0_15 = arith.constant 0 : index
    %47 = vector.load %arg4[%c0_14, %c0_15] : memref<32x242xbf16, #tpu.memory_space<vmem>>, vector<32x242xbf16>
    %cst_16 = arith.constant dense<0.000000e+00> : vector<4x242xf32>
    %48 = tpu.matmul %46, %47, %cst_16 {dimension_numbers = #tpu.dot_dimension_numbers<[1], [0], [0], [1], [0, 0, 1, 1], [], []>} : vector<4x32xbf16>, vector<32x242xbf16>, vector<4x242xf32> -> vector<4x242xf32>
    %49 = arith.truncf %48 : vector<4x242xf32> to vector<4x242xbf16>
    %c0_17 = arith.constant 0 : index
    %c0_18 = arith.constant 0 : index
    %50 = vector.load %arg5[%c0_17, %c0_18] : memref<128x4xbf16, #tpu.memory_space<vmem>>, vector<128x4xbf16>
    %cst_19 = arith.constant 0.000000e+00 : f32
    %51 = vector.broadcast %cst_19 : f32 to vector<8x206xf32>
    %52 = vector.extract_strided_slice %50 {offsets = [0, 0], sizes = [8, 4], strides = [1, 1]} : vector<128x4xbf16> to vector<8x4xbf16>
    %53 = vector.extract_strided_slice %49 {offsets = [0, 0], sizes = [4, 206], strides = [1, 1]} : vector<4x242xbf16> to vector<4x206xbf16>
    %cst_20 = arith.constant dense<0.000000e+00> : vector<8x206xf32>
    %54 = tpu.matmul %52, %53, %cst_20 {dimension_numbers = #tpu.dot_dimension_numbers<[1], [0], [0], [1], [0, 0, 1, 1], [], []>} : vector<8x4xbf16>, vector<4x206xbf16>, vector<8x206xf32> -> vector<8x206xf32>
    %55 = arith.addf %51, %54 : vector<8x206xf32>
    %56 = vector.extract_strided_slice %50 {offsets = [8, 0], sizes = [8, 4], strides = [1, 1]} : vector<128x4xbf16> to vector<8x4xbf16>
    %57 = vector.extract_strided_slice %49 {offsets = [0, 1], sizes = [4, 206], strides = [1, 1]} : vector<4x242xbf16> to vector<4x206xbf16>
    %cst_21 = arith.constant dense<0.000000e+00> : vector<8x206xf32>
    %58 = tpu.matmul %56, %57, %cst_21 {dimension_numbers = #tpu.dot_dimension_numbers<[1], [0], [0], [1], [0, 0, 1, 1], [], []>} : vector<8x4xbf16>, vector<4x206xbf16>, vector<8x206xf32> -> vector<8x206xf32>
    %59 = arith.addf %55, %58 : vector<8x206xf32>
    %60 = vector.extract_strided_slice %50 {offsets = [16, 0], sizes = [8, 4], strides = [1, 1]} : vector<128x4xbf16> to vector<8x4xbf16>
    %61 = vector.extract_strided_slice %49 {offsets = [0, 2], sizes = [4, 206], strides = [1, 1]} : vector<4x242xbf16> to vector<4x206xbf16>
    %cst_22 = arith.constant dense<0.000000e+00> : vector<8x206xf32>
    %62 = tpu.matmul %60, %61, %cst_22 {dimension_numbers = #tpu.dot_dimension_numbers<[1], [0], [0], [1], [0, 0, 1, 1], [], []>} : vector<8x4xbf16>, vector<4x206xbf16>, vector<8x206xf32> -> vector<8x206xf32>
    %63 = arith.addf %59, %62 : vector<8x206xf32>
    %64 = vector.extract_strided_slice %50 {offsets = [24, 0], sizes = [8, 4], strides = [1, 1]} : vector<128x4xbf16> to vector<8x4xbf16>
    %65 = vector.extract_strided_slice %49 {offsets = [0, 3], sizes = [4, 206], strides = [1, 1]} : vector<4x242xbf16> to vector<4x206xbf16>
    %cst_23 = arith.constant dense<0.000000e+00> : vector<8x206xf32>
    %66 = tpu.matmul %64, %65, %cst_23 {dimension_numbers = #tpu.dot_dimension_numbers<[1], [0], [0], [1], [0, 0, 1, 1], [], []>} : vector<8x4xbf16>, vector<4x206xbf16>, vector<8x206xf32> -> vector<8x206xf32>
    %67 = arith.addf %63, %66 : vector<8x206xf32>
    %68 = vector.extract_strided_slice %50 {offsets = [32, 0], sizes = [8, 4], strides = [1, 1]} : vector<128x4xbf16> to vector<8x4xbf16>
    %69 = vector.extract_strided_slice %49 {offsets = [0, 11], sizes = [4, 206], strides = [1, 1]} : vector<4x242xbf16> to vector<4x206xbf16>
    %cst_24 = arith.constant dense<0.000000e+00> : vector<8x206xf32>
    %70 = tpu.matmul %68, %69, %cst_24 {dimension_numbers = #tpu.dot_dimension_numbers<[1], [0], [0], [1], [0, 0, 1, 1], [], []>} : vector<8x4xbf16>, vector<4x206xbf16>, vector<8x206xf32> -> vector<8x206xf32>
    %71 = arith.addf %67, %70 : vector<8x206xf32>
    %72 = vector.extract_strided_slice %50 {offsets = [40, 0], sizes = [8, 4], strides = [1, 1]} : vector<128x4xbf16> to vector<8x4xbf16>
    %73 = vector.extract_strided_slice %49 {offsets = [0, 12], sizes = [4, 206], strides = [1, 1]} : vector<4x242xbf16> to vector<4x206xbf16>
    %cst_25 = arith.constant dense<0.000000e+00> : vector<8x206xf32>
    %74 = tpu.matmul %72, %73, %cst_25 {dimension_numbers = #tpu.dot_dimension_numbers<[1], [0], [0], [1], [0, 0, 1, 1], [], []>} : vector<8x4xbf16>, vector<4x206xbf16>, vector<8x206xf32> -> vector<8x206xf32>
    %75 = arith.addf %71, %74 : vector<8x206xf32>
    %76 = vector.extract_strided_slice %50 {offsets = [48, 0], sizes = [8, 4], strides = [1, 1]} : vector<128x4xbf16> to vector<8x4xbf16>
    %77 = vector.extract_strided_slice %49 {offsets = [0, 13], sizes = [4, 206], strides = [1, 1]} : vector<4x242xbf16> to vector<4x206xbf16>
    %cst_26 = arith.constant dense<0.000000e+00> : vector<8x206xf32>
    %78 = tpu.matmul %76, %77, %cst_26 {dimension_numbers = #tpu.dot_dimension_numbers<[1], [0], [0], [1], [0, 0, 1, 1], [], []>} : vector<8x4xbf16>, vector<4x206xbf16>, vector<8x206xf32> -> vector<8x206xf32>
    %79 = arith.addf %75, %78 : vector<8x206xf32>
    %80 = vector.extract_strided_slice %50 {offsets = [56, 0], sizes = [8, 4], strides = [1, 1]} : vector<128x4xbf16> to vector<8x4xbf16>
    %81 = vector.extract_strided_slice %49 {offsets = [0, 14], sizes = [4, 206], strides = [1, 1]} : vector<4x242xbf16> to vector<4x206xbf16>
    %cst_27 = arith.constant dense<0.000000e+00> : vector<8x206xf32>
    %82 = tpu.matmul %80, %81, %cst_27 {dimension_numbers = #tpu.dot_dimension_numbers<[1], [0], [0], [1], [0, 0, 1, 1], [], []>} : vector<8x4xbf16>, vector<4x206xbf16>, vector<8x206xf32> -> vector<8x206xf32>
    %83 = arith.addf %79, %82 : vector<8x206xf32>
    %84 = vector.extract_strided_slice %50 {offsets = [64, 0], sizes = [8, 4], strides = [1, 1]} : vector<128x4xbf16> to vector<8x4xbf16>
    %85 = vector.extract_strided_slice %49 {offsets = [0, 22], sizes = [4, 206], strides = [1, 1]} : vector<4x242xbf16> to vector<4x206xbf16>
    %cst_28 = arith.constant dense<0.000000e+00> : vector<8x206xf32>
    %86 = tpu.matmul %84, %85, %cst_28 {dimension_numbers = #tpu.dot_dimension_numbers<[1], [0], [0], [1], [0, 0, 1, 1], [], []>} : vector<8x4xbf16>, vector<4x206xbf16>, vector<8x206xf32> -> vector<8x206xf32>
    %87 = arith.addf %83, %86 : vector<8x206xf32>
    %88 = vector.extract_strided_slice %50 {offsets = [72, 0], sizes = [8, 4], strides = [1, 1]} : vector<128x4xbf16> to vector<8x4xbf16>
    %89 = vector.extract_strided_slice %49 {offsets = [0, 23], sizes = [4, 206], strides = [1, 1]} : vector<4x242xbf16> to vector<4x206xbf16>
    %cst_29 = arith.constant dense<0.000000e+00> : vector<8x206xf32>
    %90 = tpu.matmul %88, %89, %cst_29 {dimension_numbers = #tpu.dot_dimension_numbers<[1], [0], [0], [1], [0, 0, 1, 1], [], []>} : vector<8x4xbf16>, vector<4x206xbf16>, vector<8x206xf32> -> vector<8x206xf32>
    %91 = arith.addf %87, %90 : vector<8x206xf32>
    %92 = vector.extract_strided_slice %50 {offsets = [80, 0], sizes = [8, 4], strides = [1, 1]} : vector<128x4xbf16> to vector<8x4xbf16>
    %93 = vector.extract_strided_slice %49 {offsets = [0, 24], sizes = [4, 206], strides = [1, 1]} : vector<4x242xbf16> to vector<4x206xbf16>
    %cst_30 = arith.constant dense<0.000000e+00> : vector<8x206xf32>
    %94 = tpu.matmul %92, %93, %cst_30 {dimension_numbers = #tpu.dot_dimension_numbers<[1], [0], [0], [1], [0, 0, 1, 1], [], []>} : vector<8x4xbf16>, vector<4x206xbf16>, vector<8x206xf32> -> vector<8x206xf32>
    %95 = arith.addf %91, %94 : vector<8x206xf32>
    %96 = vector.extract_strided_slice %50 {offsets = [88, 0], sizes = [8, 4], strides = [1, 1]} : vector<128x4xbf16> to vector<8x4xbf16>
    %97 = vector.extract_strided_slice %49 {offsets = [0, 25], sizes = [4, 206], strides = [1, 1]} : vector<4x242xbf16> to vector<4x206xbf16>
    %cst_31 = arith.constant dense<0.000000e+00> : vector<8x206xf32>
    %98 = tpu.matmul %96, %97, %cst_31 {dimension_numbers = #tpu.dot_dimension_numbers<[1], [0], [0], [1], [0, 0, 1, 1], [], []>} : vector<8x4xbf16>, vector<4x206xbf16>, vector<8x206xf32> -> vector<8x206xf32>
    %99 = arith.addf %95, %98 : vector<8x206xf32>
    %100 = vector.extract_strided_slice %50 {offsets = [96, 0], sizes = [8, 4], strides = [1, 1]} : vector<128x4xbf16> to vector<8x4xbf16>
    %101 = vector.extract_strided_slice %49 {offsets = [0, 33], sizes = [4, 206], strides = [1, 1]} : vector<4x242xbf16> to vector<4x206xbf16>
    %cst_32 = arith.constant dense<0.000000e+00> : vector<8x206xf32>
    %102 = tpu.matmul %100, %101, %cst_32 {dimension_numbers = #tpu.dot_dimension_numbers<[1], [0], [0], [1], [0, 0, 1, 1], [], []>} : vector<8x4xbf16>, vector<4x206xbf16>, vector<8x206xf32> -> vector<8x206xf32>
    %103 = arith.addf %99, %102 : vector<8x206xf32>
    %104 = vector.extract_strided_slice %50 {offsets = [104, 0], sizes = [8, 4], strides = [1, 1]} : vector<128x4xbf16> to vector<8x4xbf16>
    %105 = vector.extract_strided_slice %49 {offsets = [0, 34], sizes = [4, 206], strides = [1, 1]} : vector<4x242xbf16> to vector<4x206xbf16>
    %cst_33 = arith.constant dense<0.000000e+00> : vector<8x206xf32>
    %106 = tpu.matmul %104, %105, %cst_33 {dimension_numbers = #tpu.dot_dimension_numbers<[1], [0], [0], [1], [0, 0, 1, 1], [], []>} : vector<8x4xbf16>, vector<4x206xbf16>, vector<8x206xf32> -> vector<8x206xf32>
    %107 = arith.addf %103, %106 : vector<8x206xf32>
    %108 = vector.extract_strided_slice %50 {offsets = [112, 0], sizes = [8, 4], strides = [1, 1]} : vector<128x4xbf16> to vector<8x4xbf16>
    %109 = vector.extract_strided_slice %49 {offsets = [0, 35], sizes = [4, 206], strides = [1, 1]} : vector<4x242xbf16> to vector<4x206xbf16>
    %cst_34 = arith.constant dense<0.000000e+00> : vector<8x206xf32>
    %110 = tpu.matmul %108, %109, %cst_34 {dimension_numbers = #tpu.dot_dimension_numbers<[1], [0], [0], [1], [0, 0, 1, 1], [], []>} : vector<8x4xbf16>, vector<4x206xbf16>, vector<8x206xf32> -> vector<8x206xf32>
    %111 = arith.addf %107, %110 : vector<8x206xf32>
    %112 = vector.extract_strided_slice %50 {offsets = [120, 0], sizes = [8, 4], strides = [1, 1]} : vector<128x4xbf16> to vector<8x4xbf16>
    %113 = vector.extract_strided_slice %49 {offsets = [0, 36], sizes = [4, 206], strides = [1, 1]} : vector<4x242xbf16> to vector<4x206xbf16>
    %cst_35 = arith.constant dense<0.000000e+00> : vector<8x206xf32>
    %114 = tpu.matmul %112, %113, %cst_35 {dimension_numbers = #tpu.dot_dimension_numbers<[1], [0], [0], [1], [0, 0, 1, 1], [], []>} : vector<8x4xbf16>, vector<4x206xbf16>, vector<8x206xf32> -> vector<8x206xf32>
    %115 = arith.addf %111, %114 : vector<8x206xf32>
    %c0_36 = arith.constant 0 : index
    %c0_37 = arith.constant 0 : index
    %116 = vector.load %arg8[%c0_36, %c0_37] : memref<1x206xf32, #tpu.memory_space<vmem>>, vector<1x206xf32>
    %117 = vector.broadcast %116 : vector<1x206xf32> to vector<8x206xf32>
    %118 = arith.mulf %115, %117 : vector<8x206xf32>
    %cst_38 = arith.constant dense<0.000000e+00> : vector<8xf32>
    %119 = vector.multi_reduction <add>, %118, %cst_38 [1] : vector<8x206xf32> to vector<8xf32>
    %120 = vector.shape_cast %119 : vector<8xf32> to vector<8x1xf32>
    %cst_39 = arith.constant 7.812500e-03 : f32
    %121 = vector.broadcast %cst_39 : f32 to vector<8x1xf32>
    %122 = arith.mulf %120, %121 : vector<8x1xf32>
    %123 = arith.mulf %118, %118 : vector<8x206xf32>
    %cst_40 = arith.constant dense<0.000000e+00> : vector<8xf32>
    %124 = vector.multi_reduction <add>, %123, %cst_40 [1] : vector<8x206xf32> to vector<8xf32>
    %125 = vector.shape_cast %124 : vector<8xf32> to vector<8x1xf32>
    %cst_41 = arith.constant 7.812500e-03 : f32
    %126 = vector.broadcast %cst_41 : f32 to vector<8x1xf32>
    %127 = arith.mulf %125, %126 : vector<8x1xf32>
    %c0_42 = arith.constant 0 : index
    %c0_43 = arith.constant 0 : index
    %128 = vector.load %arg6[%c0_42, %c0_43] : memref<8x1xf32, #tpu.memory_space<vmem>>, vector<8x1xf32>
    %129 = arith.mulf %122, %122 : vector<8x1xf32>
    %130 = arith.subf %127, %129 : vector<8x1xf32>
    %cst_44 = arith.constant 9.99999974E-6 : f32
    %131 = vector.broadcast %cst_44 : f32 to vector<8x1xf32>
    %132 = arith.addf %130, %131 : vector<8x1xf32>
    %133 = math.rsqrt %132 : vector<8x1xf32>
    %134 = arith.mulf %128, %133 : vector<8x1xf32>
    %c0_45 = arith.constant 0 : index
    %c0_46 = arith.constant 0 : index
    %135 = vector.load %arg7[%c0_45, %c0_46] : memref<8x1xf32, #tpu.memory_space<vmem>>, vector<8x1xf32>
    %136 = arith.mulf %122, %134 : vector<8x1xf32>
    %137 = arith.subf %135, %136 : vector<8x1xf32>
    %138 = vector.broadcast %134 : vector<8x1xf32> to vector<8x206xf32>
    %139 = arith.mulf %118, %138 : vector<8x206xf32>
    %140 = vector.broadcast %137 : vector<8x1xf32> to vector<8x206xf32>
    %141 = arith.addf %139, %140 : vector<8x206xf32>
    %cst_47 = arith.constant 0.000000e+00 : f32
    %142 = vector.broadcast %cst_47 : f32 to vector<8x206xf32>
    %143 = arith.maximumf %141, %142 : vector<8x206xf32>
    %144 = math.absf %141 : vector<8x206xf32>
    %cst_48 = arith.constant 0.000000e+00 : f32
    %145 = vector.broadcast %cst_48 : f32 to vector<8x206xf32>
    %146 = arith.subf %145, %144 : vector<8x206xf32>
    %147 = math.exp %146 : vector<8x206xf32>
    %cst_49 = arith.constant 1.000000e+00 : f32
    %148 = vector.broadcast %cst_49 : f32 to vector<8x206xf32>
    %149 = arith.addf %148, %147 : vector<8x206xf32>
    %150 = math.log %149 : vector<8x206xf32>
    %151 = arith.addf %143, %150 : vector<8x206xf32>
    %cst_50 = arith.constant 2.000000e+01 : f32
    %152 = vector.broadcast %cst_50 : f32 to vector<8x206xf32>
    %153 = arith.cmpf ogt, %141, %152 : vector<8x206xf32>
    %154 = arith.select %153, %141, %151 : vector<8x206xi1>, vector<8x206xf32>
    %155 = arith.truncf %154 : vector<8x206xf32> to vector<8x206xbf16>
    %c0_51 = arith.constant 0 : index
    %c0_52 = arith.constant 0 : index
    %156 = vector.load %arg9[%c0_51, %c0_52] : memref<206x722xbf16, #tpu.memory_space<vmem>>, vector<206x722xbf16>
    %cst_53 = arith.constant dense<0.000000e+00> : vector<8x722xf32>
    %157 = tpu.matmul %155, %156, %cst_53 {dimension_numbers = #tpu.dot_dimension_numbers<[1], [0], [0], [1], [0, 0, 1, 1], [], []>} : vector<8x206xbf16>, vector<206x722xbf16>, vector<8x722xf32> -> vector<8x722xf32>
    %158 = arith.truncf %157 : vector<8x722xf32> to vector<8x722xbf16>
    %c0_54 = arith.constant 0 : index
    %c0_55 = arith.constant 0 : index
    %159 = vector.load %arg10[%c0_54, %c0_55] : memref<128x8xbf16, #tpu.memory_space<vmem>>, vector<128x8xbf16>
    %cst_56 = arith.constant 0.000000e+00 : f32
    %160 = vector.broadcast %cst_56 : f32 to vector<8x662xf32>
    %161 = vector.extract_strided_slice %159 {offsets = [0, 0], sizes = [8, 8], strides = [1, 1]} : vector<128x8xbf16> to vector<8x8xbf16>
    %162 = vector.extract_strided_slice %158 {offsets = [0, 0], sizes = [8, 662], strides = [1, 1]} : vector<8x722xbf16> to vector<8x662xbf16>
    %cst_57 = arith.constant dense<0.000000e+00> : vector<8x662xf32>
    %163 = tpu.matmul %161, %162, %cst_57 {dimension_numbers = #tpu.dot_dimension_numbers<[1], [0], [0], [1], [0, 0, 1, 1], [], []>} : vector<8x8xbf16>, vector<8x662xbf16>, vector<8x662xf32> -> vector<8x662xf32>
    %164 = arith.addf %160, %163 : vector<8x662xf32>
    %165 = vector.extract_strided_slice %159 {offsets = [8, 0], sizes = [8, 8], strides = [1, 1]} : vector<128x8xbf16> to vector<8x8xbf16>
    %166 = vector.extract_strided_slice %158 {offsets = [0, 1], sizes = [8, 662], strides = [1, 1]} : vector<8x722xbf16> to vector<8x662xbf16>
    %cst_58 = arith.constant dense<0.000000e+00> : vector<8x662xf32>
    %167 = tpu.matmul %165, %166, %cst_58 {dimension_numbers = #tpu.dot_dimension_numbers<[1], [0], [0], [1], [0, 0, 1, 1], [], []>} : vector<8x8xbf16>, vector<8x662xbf16>, vector<8x662xf32> -> vector<8x662xf32>
    %168 = arith.addf %164, %167 : vector<8x662xf32>
    %169 = vector.extract_strided_slice %159 {offsets = [16, 0], sizes = [8, 8], strides = [1, 1]} : vector<128x8xbf16> to vector<8x8xbf16>
    %170 = vector.extract_strided_slice %158 {offsets = [0, 2], sizes = [8, 662], strides = [1, 1]} : vector<8x722xbf16> to vector<8x662xbf16>
    %cst_59 = arith.constant dense<0.000000e+00> : vector<8x662xf32>
    %171 = tpu.matmul %169, %170, %cst_59 {dimension_numbers = #tpu.dot_dimension_numbers<[1], [0], [0], [1], [0, 0, 1, 1], [], []>} : vector<8x8xbf16>, vector<8x662xbf16>, vector<8x662xf32> -> vector<8x662xf32>
    %172 = arith.addf %168, %171 : vector<8x662xf32>
    %173 = vector.extract_strided_slice %159 {offsets = [24, 0], sizes = [8, 8], strides = [1, 1]} : vector<128x8xbf16> to vector<8x8xbf16>
    %174 = vector.extract_strided_slice %158 {offsets = [0, 3], sizes = [8, 662], strides = [1, 1]} : vector<8x722xbf16> to vector<8x662xbf16>
    %cst_60 = arith.constant dense<0.000000e+00> : vector<8x662xf32>
    %175 = tpu.matmul %173, %174, %cst_60 {dimension_numbers = #tpu.dot_dimension_numbers<[1], [0], [0], [1], [0, 0, 1, 1], [], []>} : vector<8x8xbf16>, vector<8x662xbf16>, vector<8x662xf32> -> vector<8x662xf32>
    %176 = arith.addf %172, %175 : vector<8x662xf32>
    %177 = vector.extract_strided_slice %159 {offsets = [32, 0], sizes = [8, 8], strides = [1, 1]} : vector<128x8xbf16> to vector<8x8xbf16>
    %178 = vector.extract_strided_slice %158 {offsets = [0, 19], sizes = [8, 662], strides = [1, 1]} : vector<8x722xbf16> to vector<8x662xbf16>
    %cst_61 = arith.constant dense<0.000000e+00> : vector<8x662xf32>
    %179 = tpu.matmul %177, %178, %cst_61 {dimension_numbers = #tpu.dot_dimension_numbers<[1], [0], [0], [1], [0, 0, 1, 1], [], []>} : vector<8x8xbf16>, vector<8x662xbf16>, vector<8x662xf32> -> vector<8x662xf32>
    %180 = arith.addf %176, %179 : vector<8x662xf32>
    %181 = vector.extract_strided_slice %159 {offsets = [40, 0], sizes = [8, 8], strides = [1, 1]} : vector<128x8xbf16> to vector<8x8xbf16>
    %182 = vector.extract_strided_slice %158 {offsets = [0, 20], sizes = [8, 662], strides = [1, 1]} : vector<8x722xbf16> to vector<8x662xbf16>
    %cst_62 = arith.constant dense<0.000000e+00> : vector<8x662xf32>
    %183 = tpu.matmul %181, %182, %cst_62 {dimension_numbers = #tpu.dot_dimension_numbers<[1], [0], [0], [1], [0, 0, 1, 1], [], []>} : vector<8x8xbf16>, vector<8x662xbf16>, vector<8x662xf32> -> vector<8x662xf32>
    %184 = arith.addf %180, %183 : vector<8x662xf32>
    %185 = vector.extract_strided_slice %159 {offsets = [48, 0], sizes = [8, 8], strides = [1, 1]} : vector<128x8xbf16> to vector<8x8xbf16>
    %186 = vector.extract_strided_slice %158 {offsets = [0, 21], sizes = [8, 662], strides = [1, 1]} : vector<8x722xbf16> to vector<8x662xbf16>
    %cst_63 = arith.constant dense<0.000000e+00> : vector<8x662xf32>
    %187 = tpu.matmul %185, %186, %cst_63 {dimension_numbers = #tpu.dot_dimension_numbers<[1], [0], [0], [1], [0, 0, 1, 1], [], []>} : vector<8x8xbf16>, vector<8x662xbf16>, vector<8x662xf32> -> vector<8x662xf32>
    %188 = arith.addf %184, %187 : vector<8x662xf32>
    %189 = vector.extract_strided_slice %159 {offsets = [56, 0], sizes = [8, 8], strides = [1, 1]} : vector<128x8xbf16> to vector<8x8xbf16>
    %190 = vector.extract_strided_slice %158 {offsets = [0, 22], sizes = [8, 662], strides = [1, 1]} : vector<8x722xbf16> to vector<8x662xbf16>
    %cst_64 = arith.constant dense<0.000000e+00> : vector<8x662xf32>
    %191 = tpu.matmul %189, %190, %cst_64 {dimension_numbers = #tpu.dot_dimension_numbers<[1], [0], [0], [1], [0, 0, 1, 1], [], []>} : vector<8x8xbf16>, vector<8x662xbf16>, vector<8x662xf32> -> vector<8x662xf32>
    %192 = arith.addf %188, %191 : vector<8x662xf32>
    %193 = vector.extract_strided_slice %159 {offsets = [64, 0], sizes = [8, 8], strides = [1, 1]} : vector<128x8xbf16> to vector<8x8xbf16>
    %194 = vector.extract_strided_slice %158 {offsets = [0, 38], sizes = [8, 662], strides = [1, 1]} : vector<8x722xbf16> to vector<8x662xbf16>
    %cst_65 = arith.constant dense<0.000000e+00> : vector<8x662xf32>
    %195 = tpu.matmul %193, %194, %cst_65 {dimension_numbers = #tpu.dot_dimension_numbers<[1], [0], [0], [1], [0, 0, 1, 1], [], []>} : vector<8x8xbf16>, vector<8x662xbf16>, vector<8x662xf32> -> vector<8x662xf32>
    %196 = arith.addf %192, %195 : vector<8x662xf32>
    %197 = vector.extract_strided_slice %159 {offsets = [72, 0], sizes = [8, 8], strides = [1, 1]} : vector<128x8xbf16> to vector<8x8xbf16>
    %198 = vector.extract_strided_slice %158 {offsets = [0, 39], sizes = [8, 662], strides = [1, 1]} : vector<8x722xbf16> to vector<8x662xbf16>
    %cst_66 = arith.constant dense<0.000000e+00> : vector<8x662xf32>
    %199 = tpu.matmul %197, %198, %cst_66 {dimension_numbers = #tpu.dot_dimension_numbers<[1], [0], [0], [1], [0, 0, 1, 1], [], []>} : vector<8x8xbf16>, vector<8x662xbf16>, vector<8x662xf32> -> vector<8x662xf32>
    %200 = arith.addf %196, %199 : vector<8x662xf32>
    %201 = vector.extract_strided_slice %159 {offsets = [80, 0], sizes = [8, 8], strides = [1, 1]} : vector<128x8xbf16> to vector<8x8xbf16>
    %202 = vector.extract_strided_slice %158 {offsets = [0, 40], sizes = [8, 662], strides = [1, 1]} : vector<8x722xbf16> to vector<8x662xbf16>
    %cst_67 = arith.constant dense<0.000000e+00> : vector<8x662xf32>
    %203 = tpu.matmul %201, %202, %cst_67 {dimension_numbers = #tpu.dot_dimension_numbers<[1], [0], [0], [1], [0, 0, 1, 1], [], []>} : vector<8x8xbf16>, vector<8x662xbf16>, vector<8x662xf32> -> vector<8x662xf32>
    %204 = arith.addf %200, %203 : vector<8x662xf32>
    %205 = vector.extract_strided_slice %159 {offsets = [88, 0], sizes = [8, 8], strides = [1, 1]} : vector<128x8xbf16> to vector<8x8xbf16>
    %206 = vector.extract_strided_slice %158 {offsets = [0, 41], sizes = [8, 662], strides = [1, 1]} : vector<8x722xbf16> to vector<8x662xbf16>
    %cst_68 = arith.constant dense<0.000000e+00> : vector<8x662xf32>
    %207 = tpu.matmul %205, %206, %cst_68 {dimension_numbers = #tpu.dot_dimension_numbers<[1], [0], [0], [1], [0, 0, 1, 1], [], []>} : vector<8x8xbf16>, vector<8x662xbf16>, vector<8x662xf32> -> vector<8x662xf32>
    %208 = arith.addf %204, %207 : vector<8x662xf32>
    %209 = vector.extract_strided_slice %159 {offsets = [96, 0], sizes = [8, 8], strides = [1, 1]} : vector<128x8xbf16> to vector<8x8xbf16>
    %210 = vector.extract_strided_slice %158 {offsets = [0, 57], sizes = [8, 662], strides = [1, 1]} : vector<8x722xbf16> to vector<8x662xbf16>
    %cst_69 = arith.constant dense<0.000000e+00> : vector<8x662xf32>
    %211 = tpu.matmul %209, %210, %cst_69 {dimension_numbers = #tpu.dot_dimension_numbers<[1], [0], [0], [1], [0, 0, 1, 1], [], []>} : vector<8x8xbf16>, vector<8x662xbf16>, vector<8x662xf32> -> vector<8x662xf32>
    %212 = arith.addf %208, %211 : vector<8x662xf32>
    %213 = vector.extract_strided_slice %159 {offsets = [104, 0], sizes = [8, 8], strides = [1, 1]} : vector<128x8xbf16> to vector<8x8xbf16>
    %214 = vector.extract_strided_slice %158 {offsets = [0, 58], sizes = [8, 662], strides = [1, 1]} : vector<8x722xbf16> to vector<8x662xbf16>
    %cst_70 = arith.constant dense<0.000000e+00> : vector<8x662xf32>
    %215 = tpu.matmul %213, %214, %cst_70 {dimension_numbers = #tpu.dot_dimension_numbers<[1], [0], [0], [1], [0, 0, 1, 1], [], []>} : vector<8x8xbf16>, vector<8x662xbf16>, vector<8x662xf32> -> vector<8x662xf32>
    %216 = arith.addf %212, %215 : vector<8x662xf32>
    %217 = vector.extract_strided_slice %159 {offsets = [112, 0], sizes = [8, 8], strides = [1, 1]} : vector<128x8xbf16> to vector<8x8xbf16>
    %218 = vector.extract_strided_slice %158 {offsets = [0, 59], sizes = [8, 662], strides = [1, 1]} : vector<8x722xbf16> to vector<8x662xbf16>
    %cst_71 = arith.constant dense<0.000000e+00> : vector<8x662xf32>
    %219 = tpu.matmul %217, %218, %cst_71 {dimension_numbers = #tpu.dot_dimension_numbers<[1], [0], [0], [1], [0, 0, 1, 1], [], []>} : vector<8x8xbf16>, vector<8x662xbf16>, vector<8x662xf32> -> vector<8x662xf32>
    %220 = arith.addf %216, %219 : vector<8x662xf32>
    %221 = vector.extract_strided_slice %159 {offsets = [120, 0], sizes = [8, 8], strides = [1, 1]} : vector<128x8xbf16> to vector<8x8xbf16>
    %222 = vector.extract_strided_slice %158 {offsets = [0, 60], sizes = [8, 662], strides = [1, 1]} : vector<8x722xbf16> to vector<8x662xbf16>
    %cst_72 = arith.constant dense<0.000000e+00> : vector<8x662xf32>
    %223 = tpu.matmul %221, %222, %cst_72 {dimension_numbers = #tpu.dot_dimension_numbers<[1], [0], [0], [1], [0, 0, 1, 1], [], []>} : vector<8x8xbf16>, vector<8x662xbf16>, vector<8x662xf32> -> vector<8x662xf32>
    %224 = arith.addf %220, %223 : vector<8x662xf32>
    %c0_73 = arith.constant 0 : index
    %c0_74 = arith.constant 0 : index
    %225 = vector.load %arg13[%c0_73, %c0_74] : memref<1x662xf32, #tpu.memory_space<vmem>>, vector<1x662xf32>
    %226 = vector.broadcast %225 : vector<1x662xf32> to vector<8x662xf32>
    %227 = arith.mulf %224, %226 : vector<8x662xf32>
    %cst_75 = arith.constant dense<0.000000e+00> : vector<8xf32>
    %228 = vector.multi_reduction <add>, %227, %cst_75 [1] : vector<8x662xf32> to vector<8xf32>
    %229 = vector.shape_cast %228 : vector<8xf32> to vector<8x1xf32>
    %cst_76 = arith.constant 0.001953125 : f32
    %230 = vector.broadcast %cst_76 : f32 to vector<8x1xf32>
    %231 = arith.mulf %229, %230 : vector<8x1xf32>
    %232 = arith.mulf %227, %227 : vector<8x662xf32>
    %cst_77 = arith.constant dense<0.000000e+00> : vector<8xf32>
    %233 = vector.multi_reduction <add>, %232, %cst_77 [1] : vector<8x662xf32> to vector<8xf32>
    %234 = vector.shape_cast %233 : vector<8xf32> to vector<8x1xf32>
    %cst_78 = arith.constant 0.001953125 : f32
    %235 = vector.broadcast %cst_78 : f32 to vector<8x1xf32>
    %236 = arith.mulf %234, %235 : vector<8x1xf32>
    %c0_79 = arith.constant 0 : index
    %c0_80 = arith.constant 0 : index
    %237 = vector.load %arg11[%c0_79, %c0_80] : memref<8x1xf32, #tpu.memory_space<vmem>>, vector<8x1xf32>
    %238 = arith.mulf %231, %231 : vector<8x1xf32>
    %239 = arith.subf %236, %238 : vector<8x1xf32>
    %cst_81 = arith.constant 9.99999974E-6 : f32
    %240 = vector.broadcast %cst_81 : f32 to vector<8x1xf32>
    %241 = arith.addf %239, %240 : vector<8x1xf32>
    %242 = math.rsqrt %241 : vector<8x1xf32>
    %243 = arith.mulf %237, %242 : vector<8x1xf32>
    %c0_82 = arith.constant 0 : index
    %c0_83 = arith.constant 0 : index
    %244 = vector.load %arg12[%c0_82, %c0_83] : memref<8x1xf32, #tpu.memory_space<vmem>>, vector<8x1xf32>
    %245 = arith.mulf %231, %243 : vector<8x1xf32>
    %246 = arith.subf %244, %245 : vector<8x1xf32>
    %247 = vector.broadcast %243 : vector<8x1xf32> to vector<8x662xf32>
    %248 = arith.mulf %227, %247 : vector<8x662xf32>
    %249 = vector.broadcast %246 : vector<8x1xf32> to vector<8x662xf32>
    %250 = arith.addf %248, %249 : vector<8x662xf32>
    %cst_84 = arith.constant 0.000000e+00 : f32
    %251 = vector.broadcast %cst_84 : f32 to vector<8x662xf32>
    %252 = arith.maximumf %250, %251 : vector<8x662xf32>
    %253 = math.absf %250 : vector<8x662xf32>
    %cst_85 = arith.constant 0.000000e+00 : f32
    %254 = vector.broadcast %cst_85 : f32 to vector<8x662xf32>
    %255 = arith.subf %254, %253 : vector<8x662xf32>
    %256 = math.exp %255 : vector<8x662xf32>
    %cst_86 = arith.constant 1.000000e+00 : f32
    %257 = vector.broadcast %cst_86 : f32 to vector<8x662xf32>
    %258 = arith.addf %257, %256 : vector<8x662xf32>
    %259 = math.log %258 : vector<8x662xf32>
    %260 = arith.addf %252, %259 : vector<8x662xf32>
    %cst_87 = arith.constant 2.000000e+01 : f32
    %261 = vector.broadcast %cst_87 : f32 to vector<8x662xf32>
    %262 = arith.cmpf ogt, %250, %261 : vector<8x662xf32>
    %263 = arith.select %262, %250, %260 : vector<8x662xi1>, vector<8x662xf32>
    %264 = vector.broadcast %225 : vector<1x662xf32> to vector<8x662xf32>
    %265 = arith.mulf %263, %264 : vector<8x662xf32>
    %cst_88 = arith.constant 0.000000e+00 : bf16
    %266 = vector.broadcast %cst_88 : bf16 to vector<8x896xbf16>
    %c0_89 = arith.constant 0 : index
    %c0_90 = arith.constant 0 : index
    %267 = vector.load %arg16[%c0_89, %c0_90] : memref<8x896xbf16, #tpu.memory_space<vmem>>, vector<8x896xbf16>
    tpu.vector_store %arg16[%c0_89, %c0_90], %266 {strides = array<i32>} : memref<8x896xbf16, #tpu.memory_space<vmem>>, vector<8x896xbf16>,
    %268 = arith.truncf %265 : vector<8x662xf32> to vector<8x662xbf16>
    %c0_91 = arith.constant 0 : index
    %c128 = arith.constant 128 : index
    %269 = vector.load %arg16[%c0_91, %c128] : memref<8x896xbf16, #tpu.memory_space<vmem>>, vector<8x662xbf16>
    tpu.vector_store %arg16[%c0_91, %c128], %268 {strides = array<i32>} : memref<8x896xbf16, #tpu.memory_space<vmem>>, vector<8x662xbf16>,
    %c0_92 = arith.constant 0 : index
    %c0_93 = arith.constant 0 : index
    %270 = vector.load %arg14[%c0_92, %c0_93] : memref<27x8xbf16, #tpu.memory_space<vmem>>, vector<27x8xbf16>
    %cst_94 = arith.constant 0.000000e+00 : f32
    %271 = vector.broadcast %cst_94 : f32 to vector<3x722xf32>
    %272 = vector.extract_strided_slice %270 {offsets = [0, 0], sizes = [3, 8], strides = [1, 1]} : vector<27x8xbf16> to vector<3x8xbf16>
    %c0_95 = arith.constant 0 : index
    %c108 = arith.constant 108 : index
    %273 = vector.load %arg16[%c0_95, %c108] : memref<8x896xbf16, #tpu.memory_space<vmem>>, vector<8x722xbf16>
    %cst_96 = arith.constant dense<0.000000e+00> : vector<3x722xf32>
    %274 = tpu.matmul %272, %273, %cst_96 {dimension_numbers = #tpu.dot_dimension_numbers<[1], [0], [0], [1], [0, 0, 1, 1], [], []>} : vector<3x8xbf16>, vector<8x722xbf16>, vector<3x722xf32> -> vector<3x722xf32>
    %275 = arith.addf %271, %274 : vector<3x722xf32>
    %276 = vector.extract_strided_slice %270 {offsets = [3, 0], sizes = [3, 8], strides = [1, 1]} : vector<27x8xbf16> to vector<3x8xbf16>
    %c0_97 = arith.constant 0 : index
    %c109 = arith.constant 109 : index
    %277 = vector.load %arg16[%c0_97, %c109] : memref<8x896xbf16, #tpu.memory_space<vmem>>, vector<8x722xbf16>
    %cst_98 = arith.constant dense<0.000000e+00> : vector<3x722xf32>
    %278 = tpu.matmul %276, %277, %cst_98 {dimension_numbers = #tpu.dot_dimension_numbers<[1], [0], [0], [1], [0, 0, 1, 1], [], []>} : vector<3x8xbf16>, vector<8x722xbf16>, vector<3x722xf32> -> vector<3x722xf32>
    %279 = arith.addf %275, %278 : vector<3x722xf32>
    %280 = vector.extract_strided_slice %270 {offsets = [6, 0], sizes = [3, 8], strides = [1, 1]} : vector<27x8xbf16> to vector<3x8xbf16>
    %c0_99 = arith.constant 0 : index
    %c110 = arith.constant 110 : index
    %281 = vector.load %arg16[%c0_99, %c110] : memref<8x896xbf16, #tpu.memory_space<vmem>>, vector<8x722xbf16>
    %cst_100 = arith.constant dense<0.000000e+00> : vector<3x722xf32>
    %282 = tpu.matmul %280, %281, %cst_100 {dimension_numbers = #tpu.dot_dimension_numbers<[1], [0], [0], [1], [0, 0, 1, 1], [], []>} : vector<3x8xbf16>, vector<8x722xbf16>, vector<3x722xf32> -> vector<3x722xf32>
    %283 = arith.addf %279, %282 : vector<3x722xf32>
    %284 = vector.extract_strided_slice %270 {offsets = [9, 0], sizes = [3, 8], strides = [1, 1]} : vector<27x8xbf16> to vector<3x8xbf16>
    %c0_101 = arith.constant 0 : index
    %c127 = arith.constant 127 : index
    %285 = vector.load %arg16[%c0_101, %c127] : memref<8x896xbf16, #tpu.memory_space<vmem>>, vector<8x722xbf16>
    %cst_102 = arith.constant dense<0.000000e+00> : vector<3x722xf32>
    %286 = tpu.matmul %284, %285, %cst_102 {dimension_numbers = #tpu.dot_dimension_numbers<[1], [0], [0], [1], [0, 0, 1, 1], [], []>} : vector<3x8xbf16>, vector<8x722xbf16>, vector<3x722xf32> -> vector<3x722xf32>
    %287 = arith.addf %283, %286 : vector<3x722xf32>
    %288 = vector.extract_strided_slice %270 {offsets = [12, 0], sizes = [3, 8], strides = [1, 1]} : vector<27x8xbf16> to vector<3x8xbf16>
    %c0_103 = arith.constant 0 : index
    %c128_104 = arith.constant 128 : index
    %289 = vector.load %arg16[%c0_103, %c128_104] : memref<8x896xbf16, #tpu.memory_space<vmem>>, vector<8x722xbf16>
    %cst_105 = arith.constant dense<0.000000e+00> : vector<3x722xf32>
    %290 = tpu.matmul %288, %289, %cst_105 {dimension_numbers = #tpu.dot_dimension_numbers<[1], [0], [0], [1], [0, 0, 1, 1], [], []>} : vector<3x8xbf16>, vector<8x722xbf16>, vector<3x722xf32> -> vector<3x722xf32>
    %291 = arith.addf %287, %290 : vector<3x722xf32>
    %292 = vector.extract_strided_slice %270 {offsets = [15, 0], sizes = [3, 8], strides = [1, 1]} : vector<27x8xbf16> to vector<3x8xbf16>
    %c0_106 = arith.constant 0 : index
    %c129 = arith.constant 129 : index
    %293 = vector.load %arg16[%c0_106, %c129] : memref<8x896xbf16, #tpu.memory_space<vmem>>, vector<8x722xbf16>
    %cst_107 = arith.constant dense<0.000000e+00> : vector<3x722xf32>
    %294 = tpu.matmul %292, %293, %cst_107 {dimension_numbers = #tpu.dot_dimension_numbers<[1], [0], [0], [1], [0, 0, 1, 1], [], []>} : vector<3x8xbf16>, vector<8x722xbf16>, vector<3x722xf32> -> vector<3x722xf32>
    %295 = arith.addf %291, %294 : vector<3x722xf32>
    %296 = vector.extract_strided_slice %270 {offsets = [18, 0], sizes = [3, 8], strides = [1, 1]} : vector<27x8xbf16> to vector<3x8xbf16>
    %c0_108 = arith.constant 0 : index
    %c146 = arith.constant 146 : index
    %297 = vector.load %arg16[%c0_108, %c146] : memref<8x896xbf16, #tpu.memory_space<vmem>>, vector<8x722xbf16>
    %cst_109 = arith.constant dense<0.000000e+00> : vector<3x722xf32>
    %298 = tpu.matmul %296, %297, %cst_109 {dimension_numbers = #tpu.dot_dimension_numbers<[1], [0], [0], [1], [0, 0, 1, 1], [], []>} : vector<3x8xbf16>, vector<8x722xbf16>, vector<3x722xf32> -> vector<3x722xf32>
    %299 = arith.addf %295, %298 : vector<3x722xf32>
    %300 = vector.extract_strided_slice %270 {offsets = [21, 0], sizes = [3, 8], strides = [1, 1]} : vector<27x8xbf16> to vector<3x8xbf16>
    %c0_110 = arith.constant 0 : index
    %c147 = arith.constant 147 : index
    %301 = vector.load %arg16[%c0_110, %c147] : memref<8x896xbf16, #tpu.memory_space<vmem>>, vector<8x722xbf16>
    %cst_111 = arith.constant dense<0.000000e+00> : vector<3x722xf32>
    %302 = tpu.matmul %300, %301, %cst_111 {dimension_numbers = #tpu.dot_dimension_numbers<[1], [0], [0], [1], [0, 0, 1, 1], [], []>} : vector<3x8xbf16>, vector<8x722xbf16>, vector<3x722xf32> -> vector<3x722xf32>
    %303 = arith.addf %299, %302 : vector<3x722xf32>
    %304 = vector.extract_strided_slice %270 {offsets = [24, 0], sizes = [3, 8], strides = [1, 1]} : vector<27x8xbf16> to vector<3x8xbf16>
    %c0_112 = arith.constant 0 : index
    %c148 = arith.constant 148 : index
    %305 = vector.load %arg16[%c0_112, %c148] : memref<8x896xbf16, #tpu.memory_space<vmem>>, vector<8x722xbf16>
    %cst_113 = arith.constant dense<0.000000e+00> : vector<3x722xf32>
    %306 = tpu.matmul %304, %305, %cst_113 {dimension_numbers = #tpu.dot_dimension_numbers<[1], [0], [0], [1], [0, 0, 1, 1], [], []>} : vector<3x8xbf16>, vector<8x722xbf16>, vector<3x722xf32> -> vector<3x722xf32>
    %307 = arith.addf %303, %306 : vector<3x722xf32>
    %308 = vector.extract_strided_slice %307 {offsets = [0, 0], sizes = [3, 361], strides = [1, 1]} : vector<3x722xf32> to vector<3x361xf32>
    %c0_114 = arith.constant 0 : index
    %c0_115 = arith.constant 0 : index
    %c0_116 = arith.constant 0 : index
    %309 = vector.load %arg15[%c0_114, %c0_115, %c0_116] : memref<2x3x361xf32, #tpu.memory_space<vmem>>, vector<1x3x361xf32>
    %310 = vector.shape_cast %309 : vector<1x3x361xf32> to vector<3x361xf32>
    %311 = vector.shape_cast %308 : vector<3x361xf32> to vector<1x3x361xf32>
    tpu.vector_store %arg15[%c0_114, %c0_115, %c0_116], %311 {strides = array<i32>} : memref<2x3x361xf32, #tpu.memory_space<vmem>>, vector<1x3x361xf32>,
    %312 = vector.extract_strided_slice %307 {offsets = [0, 361], sizes = [3, 361], strides = [1, 1]} : vector<3x722xf32> to vector<3x361xf32>
    %c1 = arith.constant 1 : index
    %c0_117 = arith.constant 0 : index
    %c0_118 = arith.constant 0 : index
    %313 = vector.load %arg15[%c1, %c0_117, %c0_118] : memref<2x3x361xf32, #tpu.memory_space<vmem>>, vector<1x3x361xf32>
    %314 = vector.shape_cast %313 : vector<1x3x361xf32> to vector<3x361xf32>
    %315 = vector.shape_cast %312 : vector<3x361xf32> to vector<1x3x361xf32>
    tpu.vector_store %arg15[%c1, %c0_117, %c0_118], %315 {strides = array<i32>} : memref<2x3x361xf32, #tpu.memory_space<vmem>>, vector<1x3x361xf32>,
    return
  }
  func.func @transform_0(%arg0: i32) -> (i32, i32) {
    %c0_i32 = arith.constant 0 : i32
    %c0_i32_0 = arith.constant 0 : i32
    %c0_i32_1 = arith.constant 0 : i32
    return %c0_i32, %c0_i32_0 : i32, i32
  }
  func.func @transform_1(%arg0: i32) -> (i32, i32) {
    %c0_i32 = arith.constant 0 : i32
    %c0_i32_0 = arith.constant 0 : i32
    %c0_i32_1 = arith.constant 0 : i32
    return %c0_i32, %c0_i32_0 : i32, i32
  }
  func.func @transform_2(%arg0: i32) -> (i32, i32) {
    %c0_i32 = arith.constant 0 : i32
    %c0_i32_0 = arith.constant 0 : i32
    %c0_i32_1 = arith.constant 0 : i32
    return %c0_i32, %c0_i32_0 : i32, i32
  }
  func.func @transform_3(%arg0: i32) -> (i32, i32) {
    %c0_i32 = arith.constant 0 : i32
    %c0_i32_0 = arith.constant 0 : i32
    %c0_i32_1 = arith.constant 0 : i32
    return %c0_i32, %c0_i32_0 : i32, i32
  }
  func.func @transform_4(%arg0: i32) -> (i32, i32) {
    %c0_i32 = arith.constant 0 : i32
    %c0_i32_0 = arith.constant 0 : i32
    %c0_i32_1 = arith.constant 0 : i32
    return %c0_i32, %c0_i32_0 : i32, i32
  }
  func.func @transform_5(%arg0: i32) -> (i32, i32) {
    %c0_i32 = arith.constant 0 : i32
    %c0_i32_0 = arith.constant 0 : i32
    %c0_i32_1 = arith.constant 0 : i32
    return %c0_i32, %c0_i32_0 : i32, i32
  }
  func.func @transform_6(%arg0: i32) -> (i32, i32) {
    %c0_i32 = arith.constant 0 : i32
    %c0_i32_0 = arith.constant 0 : i32
    %c0_i32_1 = arith.constant 0 : i32
    return %c0_i32, %c0_i32_0 : i32, i32
  }
  func.func @transform_7(%arg0: i32) -> (i32, i32) {
    %c0_i32 = arith.constant 0 : i32
    %c0_i32_0 = arith.constant 0 : i32
    %c0_i32_1 = arith.constant 0 : i32
    return %c0_i32, %c0_i32_0 : i32, i32
  }
  func.func @transform_8(%arg0: i32) -> (i32, i32) {
    %c0_i32 = arith.constant 0 : i32
    %c0_i32_0 = arith.constant 0 : i32
    %c0_i32_1 = arith.constant 0 : i32
    return %c0_i32, %c0_i32_0 : i32, i32
  }
  func.func @transform_9(%arg0: i32) -> (i32, i32) {
    %c0_i32 = arith.constant 0 : i32
    %c0_i32_0 = arith.constant 0 : i32
    %c0_i32_1 = arith.constant 0 : i32
    return %c0_i32, %c0_i32_0 : i32, i32
  }
  func.func @transform_10(%arg0: i32) -> (i32, i32) {
    %c0_i32 = arith.constant 0 : i32
    %c0_i32_0 = arith.constant 0 : i32
    %c0_i32_1 = arith.constant 0 : i32
    return %c0_i32, %c0_i32_0 : i32, i32
  }
  func.func @transform_11(%arg0: i32) -> (i32, i32) {
    %c0_i32 = arith.constant 0 : i32
    %c0_i32_0 = arith.constant 0 : i32
    %c0_i32_1 = arith.constant 0 : i32
    return %c0_i32, %c0_i32_0 : i32, i32
  }
  func.func @transform_12(%arg0: i32) -> (i32, i32) {
    %c0_i32 = arith.constant 0 : i32
    %c0_i32_0 = arith.constant 0 : i32
    %c0_i32_1 = arith.constant 0 : i32
    return %c0_i32, %c0_i32_0 : i32, i32
  }
  func.func @transform_13(%arg0: i32) -> (i32, i32) {
    %c0_i32 = arith.constant 0 : i32
    %c0_i32_0 = arith.constant 0 : i32
    %c0_i32_1 = arith.constant 0 : i32
    return %c0_i32, %c0_i32_0 : i32, i32
  }
  func.func @transform_14(%arg0: i32) -> (i32, i32, i32) {
    %c0_i32 = arith.constant 0 : i32
    %c0_i32_0 = arith.constant 0 : i32
    %c0_i32_1 = arith.constant 0 : i32
    %c0_i32_2 = arith.constant 0 : i32
    return %c0_i32, %c0_i32_0, %c0_i32_1 : i32, i32, i32
  }
}

</mosaic_0001>

<llo_original>
// kernel: forward.1
$region0: #{forward.1}
  #allocation0 [shape = 'u32[]', space=smem, size = 0x4, offset = 0x4, fixed_abs, tag = 'smem constant byte address 0x4 - core index']
  #allocation1 [shape = 'u32[72,128]{1,0:T(1,128)}', space=vmem, size = 0x9000, scoped, tag = 'internal scratch']
  #allocation2 [shape = 'bf16[8,896]{1,0:T(8,128)(2,1)}', space=vmem, size = 0x3800, scoped, tag = 'scratch operand']
  %s0 = inlined_call_operand.vmem [shape: f32[2,32], index: 0, kind: input, shape index: {}]
  %s1 = inlined_call_operand.vmem [shape: bf16[32,64], index: 1, kind: input, shape index: {}]
  %s2 = inlined_call_operand.vmem [shape: bf16[64,64], index: 2, kind: input, shape index: {}]
  %s3 = inlined_call_operand.vmem [shape: bf16[32,242], index: 3, kind: input, shape index: {}]
  %s4 = inlined_call_operand.vmem [shape: bf16[128,4], index: 4, kind: input, shape index: {}]
  %s5 = inlined_call_operand.vmem [shape: f32[8,1], index: 5, kind: input, shape index: {}]
  %s6 = inlined_call_operand.vmem [shape: f32[8,1], index: 6, kind: input, shape index: {}]
  %s7 = inlined_call_operand.vmem [shape: f32[1,206], index: 7, kind: input, shape index: {}]
  %s8 = inlined_call_operand.hbm [shape: bf16[206,722], index: 8, kind: input, shape index: {}]
  %s9 = inlined_call_operand.vmem [shape: bf16[128,8], index: 9, kind: input, shape index: {}]
  %s10 = inlined_call_operand.vmem [shape: f32[8,1], index: 10, kind: input, shape index: {}]
  %s11 = inlined_call_operand.vmem [shape: f32[8,1], index: 11, kind: input, shape index: {}]
  %s12 = inlined_call_operand.vmem [shape: f32[1,662], index: 12, kind: input, shape index: {}]
  %s13 = inlined_call_operand.vmem [shape: bf16[27,8], index: 13, kind: input, shape index: {}]
  %s14 = inlined_call_operand.vmem [shape: f32[2,3,361], index: 14, kind: output, shape index: {}]
  %s15 = sld [smem:[#allocation0]]
  $region70: #{forward.1} parent=0
    _
  %s17 = ssub.s32 1, %s15
  %s18 = scalar_select 0, %s17, %s15
  $region1: #{forward.1} parent=0
    #allocation3 [shape = 'u8[319488]{0}', space=vmem, size = 0x4e000, scoped, tag = 'input window, operand 8, single buffered']
    #allocation4 [shape = 's32[1]{0}', space=sflag, size = 0x4, scoped, tag = 'scoped memory for forward.1']
    %19 = vsyncpa [#allocation4], 0
    // Predicated region
    $region2: #{forward.1} parent=1 // pred_check
      _
    $region3: #{forward.1} parent=1 // pred_check_branch
      %21 = sbr.rel (0) target = $region5
    $region4: #{forward.1} parent=1 // pred_region
      _
    $region5: #{forward.1} parent=1 // pred_fallthru
      _
    // Predicated region
    $region6: #{forward.1} parent=1 // pred_check
      _
    $region7: #{forward.1} parent=1 // pred_check_branch
      %23 = sbr.rel (0) target = $region9
    $region8: #{forward.1} parent=1 // pred_region
      _
    $region9: #{forward.1} parent=1 // pred_fallthru
      _
    // Predicated region
    $region10: #{forward.1} parent=1 // pred_check
      _
    $region11: #{forward.1} parent=1 // pred_check_branch
      %25 = sbr.rel (0) target = $region13
    $region12: #{forward.1} parent=1 // pred_region
      _
    $region13: #{forward.1} parent=1 // pred_fallthru
      _
    // Predicated region
    $region14: #{forward.1} parent=1 // pred_check
      _
    $region15: #{forward.1} parent=1 // pred_check_branch
      %27 = sbr.rel (0) target = $region17
    $region16: #{forward.1} parent=1 // pred_region
      _
    $region17: #{forward.1} parent=1 // pred_fallthru
      _
    // Predicated region
    $region18: #{forward.1} parent=1 // pred_check
      _
    $region19: #{forward.1} parent=1 // pred_check_branch
      %29 = sbr.rel (0) target = $region21
    $region20: #{forward.1} parent=1 // pred_region
      _
    $region21: #{forward.1} parent=1 // pred_fallthru
      _
    // Predicated region
    $region22: #{forward.1} parent=1 // pred_check
      _
    $region23: #{forward.1} parent=1 // pred_check_branch
      %31 = sbr.rel (0) target = $region25
    $region24: #{forward.1} parent=1 // pred_region
      _
    $region25: #{forward.1} parent=1 // pred_fallthru
      _
    // Predicated region
    $region26: #{forward.1} parent=1 // pred_check
      _
    $region27: #{forward.1} parent=1 // pred_check_branch
      %33 = sbr.rel (0) target = $region29
    $region28: #{forward.1} parent=1 // pred_region
      _
    $region29: #{forward.1} parent=1 // pred_fallthru
      _
    // Predicated region
    $region30: #{forward.1} parent=1 // pred_check
      _
    $region31: #{forward.1} parent=1 // pred_check_branch
      %35 = sbr.rel (0) target = $region33
    $region32: #{forward.1} parent=1 // pred_region
      _
    $region33: #{forward.1} parent=1 // pred_fallthru
      _
    // Predicated region
    $region34: #{forward.1} parent=1 // pred_check
      _
    $region35: #{forward.1} parent=1 // pred_check_branch
      %37 = sbr.rel (0) target = $region37
    $region36: #{forward.1} parent=1 // pred_region
      %39 = vsyncadd [#allocation4], 0
      %s40 = sshll.u32 %s8, 4
      %s41 = int_to_ptr.hbm [resolvable:$true] %s40
      %s42 = sshll.u32 [#allocation3], 4
      %s43 = int_to_ptr.vmem [resolvable:$true] %s42
      %48 = dma.hbm_to_vmem [thread:$0]  %s41, 9984, %s43, [#allocation4], 384, 384, 24
    $region37: #{forward.1} parent=1 // pred_fallthru
      _
    // Predicated region
    $region38: #{forward.1} parent=1 // pred_check
      _
    $region39: #{forward.1} parent=1 // pred_check_branch
      %50 = sbr.rel (0) target = $region41
    $region40: #{forward.1} parent=1 // pred_region
      _
    $region41: #{forward.1} parent=1 // pred_fallthru
      _
    // Predicated region
    $region42: #{forward.1} parent=1 // pred_check
      _
    $region43: #{forward.1} parent=1 // pred_check_branch
      %52 = sbr.rel (0) target = $region45
    $region44: #{forward.1} parent=1 // pred_region
      _
    $region45: #{forward.1} parent=1 // pred_fallthru
      _
    // Predicated region
    $region46: #{forward.1} parent=1 // pred_check
      _
    $region47: #{forward.1} parent=1 // pred_check_branch
      %54 = sbr.rel (0) target = $region49
    $region48: #{forward.1} parent=1 // pred_region
      _
    $region49: #{forward.1} parent=1 // pred_fallthru
      _
    // Predicated region
    $region50: #{forward.1} parent=1 // pred_check
      _
    $region51: #{forward.1} parent=1 // pred_check_branch
      %56 = sbr.rel (0) target = $region53
    $region52: #{forward.1} parent=1 // pred_region
      _
    $region53: #{forward.1} parent=1 // pred_fallthru
      _
    // Predicated region
    $region54: #{forward.1} parent=1 // pred_check
      _
    $region55: #{forward.1} parent=1 // pred_check_branch
      %58 = sbr.rel (0) target = $region57
    $region56: #{forward.1} parent=1 // pred_region
      _
    $region57: #{forward.1} parent=1 // pred_fallthru
      _
    // Predicated region
    $region58: #{forward.1} parent=1 // pred_check
      _
    $region59: #{forward.1} parent=1 // pred_check_branch
      %60 = sbr.rel (0) target = $region61
    $region60: #{forward.1} parent=1 // pred_region
      %62 = dma.done [#allocation4], 9984
    $region61: #{forward.1} parent=1 // pred_fallthru
      _
    %v64 = vld [vmem:[%s0] sm:$0x3]
    %v65 = vpack.c.bf16 %v64, %v64
    %v66 = vld [vmem:[%s1] sm:$0xf]
    %v67 = vld [vmem:[%s1 + $0x4] sm:$0xf]
    %v68 = vld [vmem:[%s1 + $0x8] sm:$0xf]
    %v69 = vld [vmem:[%s1 + $0xc] sm:$0xf]
    %v74 = vunpack.c.l.b16 %v66
    %v75 = vunpack.c.l.b16 %v67
    %v76 = vunpack.c.l.b16 %v68
    %v77 = vunpack.c.l.b16 %v69
    %v78 = vpack.c.b16 %v75, %v74
    %v79 = vpack.c.b16 %v77, %v76
    %vm82 = vcmask 261120
    %v84 = vsel %vm82, %v65, 0
    %86 = vmatpush.bf16.msra.mxu0 0
    %87 = vmatpush.bf16.msra.mxu0 0
    %88 = vmatpush.bf16.msra.mxu0 0
    %89 = vmatpush.bf16.msra.mxu0 0
    %90 = vmatpush.bf16.msra.mxu0 0
    %91 = vmatpush.bf16.msra.mxu0 0
    %92 = vmatpush.bf16.msra.mxu0 %v79
    %93 = vmatpush.bf16.msra.mxu0 %v78
    %94 = vmatmul.bf16.gmra.mxu0 %v84
    %v95 = vpop.f32.mrf.mxu0
    %v96 = vadd.f32 0.0, %v95
    %v97 = vpop.f32.mrf.mxu0
    %98 = vdwg.mxu0
    %v99 = vmax.f32 %v96, 0.0
    %v100 = vand.u32 2147483647, %v96
    %v101 = vsub.f32 0.0, %v100
    %v102 = vmul.f32 %v101, 1.442695
    %v103 = vpow.pop %v102
    %v104 = vadd.f32 %v103, 1.0
    %v105 = vlog2.pop %v104
    %v106 = vmul.f32 %v105, 0.6931472
    %v107 = vadd.f32 %v99, %v106
    %vm108 = vcmp.gt.f32.partialorder %v96, 20.0
    %v109 = vsel %vm108, %v96, %v107
    %v110 = vpack.c.bf16 %v109, %v109
    %v111 = vld [vmem:[%s2] sm:$0xf]
    %v112 = vld [vmem:[%s2 + $0x4] sm:$0xf]
    %v113 = vld [vmem:[%s2 + $0x8] sm:$0xf]
    %v114 = vld [vmem:[%s2 + $0xc] sm:$0xf]
    %v115 = vld [vmem:[%s2 + $0x10] sm:$0xf]
    %v116 = vld [vmem:[%s2 + $0x14] sm:$0xf]
    %v117 = vld [vmem:[%s2 + $0x18] sm:$0xf]
    %v118 = vld [vmem:[%s2 + $0x1c] sm:$0xf]
    %v127 = vunpack.c.l.b16 %v111
    %v128 = vunpack.c.l.b16 %v112
    %v129 = vunpack.c.l.b16 %v113
    %v130 = vunpack.c.l.b16 %v114
    %v131 = vunpack.c.l.b16 %v115
    %v132 = vunpack.c.l.b16 %v116
    %v133 = vunpack.c.l.b16 %v117
    %v134 = vunpack.c.l.b16 %v118
    %v135 = vpack.c.b16 %v128, %v127
    %v136 = vpack.c.b16 %v130, %v129
    %v137 = vpack.c.b16 %v132, %v131
    %v138 = vpack.c.b16 %v134, %v133
    %vm143 = vcmask 523264
    %v145 = vsel %vm143, %v110, 0
    %147 = vmatpush.bf16.msra.mxu0 0
    %148 = vmatpush.bf16.msra.mxu0 0
    %149 = vmatpush.bf16.msra.mxu0 0
    %150 = vmatpush.bf16.msra.mxu0 0
    %151 = vmatpush.bf16.msra.mxu0 %v138
    %152 = vmatpush.bf16.msra.mxu0 %v137
    %153 = vmatpush.bf16.msra.mxu0 %v136
    %154 = vmatpush.bf16.msra.mxu0 %v135
    %155 = vmatmul.bf16.gmra.mxu0 %v145
    %v156 = vpop.f32.mrf.mxu0
    %v157 = vadd.f32 0.0, %v156
    %v158 = vpop.f32.mrf.mxu0
    %159 = vdwg.mxu0
    %v160 = vmax.f32 %v157, 0.0
    %v161 = vand.u32 2147483647, %v157
    %v162 = vsub.f32 0.0, %v161
    %v163 = vmul.f32 %v162, 1.442695
    %v164 = vpow.pop %v163
    %v165 = vadd.f32 %v164, 1.0
    %v166 = vlog2.pop %v165
    %v167 = vmul.f32 %v166, 0.6931472
    %v168 = vadd.f32 %v160, %v167
    %vm169 = vcmp.gt.f32.partialorder %v157, 20.0
    %v170 = vsel %vm169, %v157, %v168
    %v172 = vrot.slane %v170, 1
    %173 = vrot.lane.b32.xlu0 %v172, 16
    %v174 = vpop.permute.xlu0 %173
    %vm176 = vcmask 130048
    %v177 = vsel %vm176, %v170, %v174
    %178 = vrot.lane.b32.xlu0 %v170, 112
    %v179 = vpop.permute.xlu0 %178
    %v182 = vsel %vm176, %v179, %v172
    %183 = vrot.lane.b32.xlu0 %v170, 96
    %v184 = vpop.permute.xlu0 %183
    %186 = vrot.lane.b32.xlu0 %v172, 112
    %v187 = vpop.permute.xlu0 %186
    %v189 = vsel %vm176, %v184, %v187
    %190 = vrot.lane.b32.xlu0 %v170, 80
    %v191 = vpop.permute.xlu0 %190
    %193 = vrot.lane.b32.xlu0 %v172, 96
    %v194 = vpop.permute.xlu0 %193
    %v196 = vsel %vm176, %v191, %v194
    %v198 = vrot.slane %v182, 7
    %v201 = vrot.slane %v189, 6
    %v204 = vrot.slane %v196, 5
    %vm206 = vcmask 1040384
    %v207 = vsel %vm206, %v177, %v198
    %vm208 = vcmask 1041408
    %v209 = vsel %vm208, %v207, %v201
    %vm210 = vcmask 1042432
    %v211 = vsel %vm210, %v209, %v204
    %v212 = vpack.c.bf16 %v211, %v211
    %v213 = vld [vmem:[%s3] sm:$0xff]
    %v214 = vld [vmem:[%s3 + $0x8] sm:$0xff]
    %v215 = vld [vmem:[%s3 + $0x10] sm:$0xff]
    %v216 = vld [vmem:[%s3 + $0x18] sm:$0xff]
    %v221 = vunpack.c.l.b16 %v213
    %v222 = vunpack.c.h.b16 %v213
    %v223 = vunpack.c.l.b16 %v214
    %v224 = vunpack.c.h.b16 %v214
    %v225 = vunpack.c.l.b16 %v215
    %v226 = vunpack.c.h.b16 %v215
    %v227 = vunpack.c.l.b16 %v216
    %v228 = vunpack.c.h.b16 %v216
    %v229 = vpack.c.b16 %v223, %v221
    %v230 = vpack.c.b16 %v224, %v222
    %v231 = vpack.c.b16 %v227, %v225
    %v232 = vpack.c.b16 %v228, %v226
    %v238 = vsel %vm82, %v212, 0
    %240 = vmatpush.bf16.msra.mxu0 0
    %241 = vmatpush.bf16.msra.mxu0 0
    %242 = vmatpush.bf16.msra.mxu0 0
    %243 = vmatpush.bf16.msra.mxu0 0
    %244 = vmatpush.bf16.msra.mxu0 0
    %245 = vmatpush.bf16.msra.mxu0 0
    %246 = vmatpush.bf16.msra.mxu0 %v231
    %247 = vmatpush.bf16.msra.mxu0 %v229
    %248 = vmatmul.bf16.gmra.mxu0 %v238
    %v249 = vpop.f32.mrf.mxu0
    %v250 = vadd.f32 0.0, %v249
    %v251 = vpop.f32.mrf.mxu0
    %252 = vdwg.mxu0
    %253 = vmatpush.bf16.msra.mxu0 0
    %254 = vmatpush.bf16.msra.mxu0 0
    %255 = vmatpush.bf16.msra.mxu0 0
    %256 = vmatpush.bf16.msra.mxu0 0
    %257 = vmatpush.bf16.msra.mxu0 0
    %258 = vmatpush.bf16.msra.mxu0 0
    %259 = vmatpush.bf16.msra.mxu0 %v232
    %260 = vmatpush.bf16.msra.mxu0 %v230
    %261 = vmatmul.bf16.gmra.mxu0 %v238
    %v262 = vpop.f32.mrf.mxu0
    %v263 = vadd.f32 0.0, %v262
    %v264 = vpop.f32.mrf.mxu0
    %265 = vdwg.mxu0
    %v266 = vpack.c.bf16 %v263, %v250
    %v267 = vld [vmem:[%s4] sm:$0xf]
    %v268 = vld [vmem:[%s4 + $0x4] sm:$0xf]
    %v269 = vld [vmem:[%s4 + $0x8] sm:$0xf]
    %v270 = vld [vmem:[%s4 + $0xc] sm:$0xf]
    %v271 = vld [vmem:[%s4 + $0x10] sm:$0xf]
    %v272 = vld [vmem:[%s4 + $0x14] sm:$0xf]
    %v273 = vld [vmem:[%s4 + $0x18] sm:$0xf]
    %v274 = vld [vmem:[%s4 + $0x1c] sm:$0xf]
    %v275 = vld [vmem:[%s4 + $0x20] sm:$0xf]
    %v276 = vld [vmem:[%s4 + $0x24] sm:$0xf]
    %v277 = vld [vmem:[%s4 + $0x28] sm:$0xf]
    %v278 = vld [vmem:[%s4 + $0x2c] sm:$0xf]
    %v279 = vld [vmem:[%s4 + $0x30] sm:$0xf]
    %v280 = vld [vmem:[%s4 + $0x34] sm:$0xf]
    %v281 = vld [vmem:[%s4 + $0x38] sm:$0xf]
    %v282 = vld [vmem:[%s4 + $0x3c] sm:$0xf]
    %v284 = vunpack.c.l.b16 %v266
    %v285 = vunpack.c.h.b16 %v266
    %v286 = vpack.c.b16 %v284, %v284
    %v287 = vpack.c.b16 %v285, %v285
    %288 = vrot.lane.b32.xlu0 %v286, 127
    %v289 = vpop.permute.xlu0 %288
    %290 = vrot.lane.b32.xlu0 %v287, 127
    %v291 = vpop.permute.xlu0 %290
    %vm292 = vcmask 1039360
    %v293 = vsel %vm292, %v289, %v291
    %vm294 = vcmask 31744
    %v296 = vsel %vm294, %v268, 0
    %v299 = vsel %vm208, %v293, 0
    %v302 = vsel %vm208, %v291, 0
    %304 = vmatpush.bf16.msra.mxu0 0
    %305 = vmatpush.bf16.msra.mxu0 0
    %306 = vmatpush.bf16.msra.mxu0 0
    %307 = vmatpush.bf16.msra.mxu0 0
    %308 = vmatpush.bf16.msra.mxu0 0
    %309 = vmatpush.bf16.msra.mxu0 0
    %310 = vmatpush.bf16.msra.mxu0 0
    %311 = vmatpush.bf16.msra.mxu0 %v299
    %312 = vmatmul.bf16.gmra.mxu0 %v296
    %v313 = vpop.f32.mrf.mxu0
    %v314 = vadd.f32 0.0, %v313
    %v315 = vpop.f32.mrf.mxu0
    %316 = vdwg.mxu0
    %317 = vmatpush.bf16.msra.mxu0 0
    %318 = vmatpush.bf16.msra.mxu0 0
    %319 = vmatpush.bf16.msra.mxu0 0
    %320 = vmatpush.bf16.msra.mxu0 0
    %321 = vmatpush.bf16.msra.mxu0 0
    %322 = vmatpush.bf16.msra.mxu0 0
    %323 = vmatpush.bf16.msra.mxu0 0
    %324 = vmatpush.bf16.msra.mxu0 %v302
    %325 = vmatmul.bf16.gmra.mxu0 %v296
    %v326 = vpop.f32.mrf.mxu0
    %v327 = vadd.f32 0.0, %v326
    %v328 = vpop.f32.mrf.mxu0
    %329 = vdwg.mxu0
    %v331 = vsel %vm294, %v267, 0
    %v334 = vsel %vm208, %v286, 0
    %v337 = vsel %vm208, %v287, 0
    %339 = vmatpush.bf16.msra.mxu0 0
    %340 = vmatpush.bf16.msra.mxu0 0
    %341 = vmatpush.bf16.msra.mxu0 0
    %342 = vmatpush.bf16.msra.mxu0 0
    %343 = vmatpush.bf16.msra.mxu0 0
    %344 = vmatpush.bf16.msra.mxu0 0
    %345 = vmatpush.bf16.msra.mxu0 0
    %346 = vmatpush.bf16.msra.mxu0 %v334
    %347 = vmatmul.bf16.gmra.mxu0 %v331
    %v348 = vpop.f32.mrf.mxu0
    %v349 = vadd.f32 %v314, %v348
    %v350 = vpop.f32.mrf.mxu0
    %351 = vdwg.mxu0
    %352 = vmatpush.bf16.msra.mxu0 0
    %353 = vmatpush.bf16.msra.mxu0 0
    %354 = vmatpush.bf16.msra.mxu0 0
    %355 = vmatpush.bf16.msra.mxu0 0
    %356 = vmatpush.bf16.msra.mxu0 0
    %357 = vmatpush.bf16.msra.mxu0 0
    %358 = vmatpush.bf16.msra.mxu0 0
    %359 = vmatpush.bf16.msra.mxu0 %v337
    %360 = vmatmul.bf16.gmra.mxu0 %v331
    %v361 = vpop.f32.mrf.mxu0
    %v362 = vadd.f32 %v327, %v361
    %v363 = vpop.f32.mrf.mxu0
    %364 = vdwg.mxu0
    %365 = vrot.lane.b32.xlu0 %v286, 126
    %v366 = vpop.permute.xlu0 %365
    %367 = vrot.lane.b32.xlu0 %v287, 126
    %v368 = vpop.permute.xlu0 %367
    %vm369 = vcmask 1031168
    %v370 = vsel %vm369, %v366, %v368
    %v372 = vsel %vm294, %v269, 0
    %v375 = vsel %vm208, %v370, 0
    %v378 = vsel %vm208, %v368, 0
    %380 = vmatpush.bf16.msra.mxu0 0
    %381 = vmatpush.bf16.msra.mxu0 0
    %382 = vmatpush.bf16.msra.mxu0 0
    %383 = vmatpush.bf16.msra.mxu0 0
    %384 = vmatpush.bf16.msra.mxu0 0
    %385 = vmatpush.bf16.msra.mxu0 0
    %386 = vmatpush.bf16.msra.mxu0 0
    %387 = vmatpush.bf16.msra.mxu0 %v375
    %388 = vmatmul.bf16.gmra.mxu0 %v372
    %v389 = vpop.f32.mrf.mxu0
    %v390 = vadd.f32 0.0, %v389
    %v391 = vpop.f32.mrf.mxu0
    %392 = vdwg.mxu0
    %393 = vmatpush.bf16.msra.mxu0 0
    %394 = vmatpush.bf16.msra.mxu0 0
    %395 = vmatpush.bf16.msra.mxu0 0
    %396 = vmatpush.bf16.msra.mxu0 0
    %397 = vmatpush.bf16.msra.mxu0 0
    %398 = vmatpush.bf16.msra.mxu0 0
    %399 = vmatpush.bf16.msra.mxu0 0
    %400 = vmatpush.bf16.msra.mxu0 %v378
    %401 = vmatmul.bf16.gmra.mxu0 %v372
    %v402 = vpop.f32.mrf.mxu0
    %v403 = vadd.f32 0.0, %v402
    %v404 = vpop.f32.mrf.mxu0
    %405 = vdwg.mxu0
    %v406 = vadd.f32 %v349, %v390
    %v407 = vadd.f32 %v362, %v403
    %408 = vrot.lane.b32.xlu0 %v286, 125
    %v409 = vpop.permute.xlu0 %408
    %410 = vrot.lane.b32.xlu0 %v287, 125
    %v411 = vpop.permute.xlu0 %410
    %vm412 = vcmask 1022976
    %v413 = vsel %vm412, %v409, %v411
    %v415 = vsel %vm294, %v270, 0
    %v418 = vsel %vm208, %v413, 0
    %v421 = vsel %vm208, %v411, 0
    %423 = vmatpush.bf16.msra.mxu0 0
    %424 = vmatpush.bf16.msra.mxu0 0
    %425 = vmatpush.bf16.msra.mxu0 0
    %426 = vmatpush.bf16.msra.mxu0 0
    %427 = vmatpush.bf16.msra.mxu0 0
    %428 = vmatpush.bf16.msra.mxu0 0
    %429 = vmatpush.bf16.msra.mxu0 0
    %430 = vmatpush.bf16.msra.mxu0 %v418
    %431 = vmatmul.bf16.gmra.mxu0 %v415
    %v432 = vpop.f32.mrf.mxu0
    %v433 = vadd.f32 0.0, %v432
    %v434 = vpop.f32.mrf.mxu0
    %435 = vdwg.mxu0
    %436 = vmatpush.bf16.msra.mxu0 0
    %437 = vmatpush.bf16.msra.mxu0 0
    %438 = vmatpush.bf16.msra.mxu0 0
    %439 = vmatpush.bf16.msra.mxu0 0
    %440 = vmatpush.bf16.msra.mxu0 0
    %441 = vmatpush.bf16.msra.mxu0 0
    %442 = vmatpush.bf16.msra.mxu0 0
    %443 = vmatpush.bf16.msra.mxu0 %v421
    %444 = vmatmul.bf16.gmra.mxu0 %v415
    %v445 = vpop.f32.mrf.mxu0
    %v446 = vadd.f32 0.0, %v445
    %v447 = vpop.f32.mrf.mxu0
    %448 = vdwg.mxu0
    %v449 = vadd.f32 %v406, %v433
    %v450 = vadd.f32 %v407, %v446
    %451 = vrot.lane.b32.xlu0 %v286, 117
    %v452 = vpop.permute.xlu0 %451
    %453 = vrot.lane.b32.xlu0 %v287, 117
    %v454 = vpop.permute.xlu0 %453
    %vm455 = vcmask 957440
    %v456 = vsel %vm455, %v452, %v454
    %v458 = vsel %vm294, %v271, 0
    %v461 = vsel %vm208, %v456, 0
    %v464 = vsel %vm208, %v454, 0
    %466 = vmatpush.bf16.msra.mxu0 0
    %467 = vmatpush.bf16.msra.mxu0 0
    %468 = vmatpush.bf16.msra.mxu0 0
    %469 = vmatpush.bf16.msra.mxu0 0
    %470 = vmatpush.bf16.msra.mxu0 0
    %471 = vmatpush.bf16.msra.mxu0 0
    %472 = vmatpush.bf16.msra.mxu0 0
    %473 = vmatpush.bf16.msra.mxu0 %v461
    %474 = vmatmul.bf16.gmra.mxu0 %v458
    %v475 = vpop.f32.mrf.mxu0
    %v476 = vadd.f32 0.0, %v475
    %v477 = vpop.f32.mrf.mxu0
    %478 = vdwg.mxu0
    %479 = vmatpush.bf16.msra.mxu0 0
    %480 = vmatpush.bf16.msra.mxu0 0
    %481 = vmatpush.bf16.msra.mxu0 0
    %482 = vmatpush.bf16.msra.mxu0 0
    %483 = vmatpush.bf16.msra.mxu0 0
    %484 = vmatpush.bf16.msra.mxu0 0
    %485 = vmatpush.bf16.msra.mxu0 0
    %486 = vmatpush.bf16.msra.mxu0 %v464
    %487 = vmatmul.bf16.gmra.mxu0 %v458
    %v488 = vpop.f32.mrf.mxu0
    %v489 = vadd.f32 0.0, %v488
    %v490 = vpop.f32.mrf.mxu0
    %491 = vdwg.mxu0
    %v492 = vadd.f32 %v449, %v476
    %v493 = vadd.f32 %v450, %v489
    %494 = vrot.lane.b32.xlu0 %v286, 116
    %v495 = vpop.permute.xlu0 %494
    %496 = vrot.lane.b32.xlu0 %v287, 116
    %v497 = vpop.permute.xlu0 %496
    %vm498 = vcmask 949248
    %v499 = vsel %vm498, %v495, %v497
    %v501 = vsel %vm294, %v272, 0
    %v504 = vsel %vm208, %v499, 0
    %v507 = vsel %vm208, %v497, 0
    %509 = vmatpush.bf16.msra.mxu0 0
    %510 = vmatpush.bf16.msra.mxu0 0
    %511 = vmatpush.bf16.msra.mxu0 0
    %512 = vmatpush.bf16.msra.mxu0 0
    %513 = vmatpush.bf16.msra.mxu0 0
    %514 = vmatpush.bf16.msra.mxu0 0
    %515 = vmatpush.bf16.msra.mxu0 0
    %516 = vmatpush.bf16.msra.mxu0 %v504
    %517 = vmatmul.bf16.gmra.mxu0 %v501
    %v518 = vpop.f32.mrf.mxu0
    %v519 = vadd.f32 0.0, %v518
    %v520 = vpop.f32.mrf.mxu0
    %521 = vdwg.mxu0
    %522 = vmatpush.bf16.msra.mxu0 0
    %523 = vmatpush.bf16.msra.mxu0 0
    %524 = vmatpush.bf16.msra.mxu0 0
    %525 = vmatpush.bf16.msra.mxu0 0
    %526 = vmatpush.bf16.msra.mxu0 0
    %527 = vmatpush.bf16.msra.mxu0 0
    %528 = vmatpush.bf16.msra.mxu0 0
    %529 = vmatpush.bf16.msra.mxu0 %v507
    %530 = vmatmul.bf16.gmra.mxu0 %v501
    %v531 = vpop.f32.mrf.mxu0
    %v532 = vadd.f32 0.0, %v531
    %v533 = vpop.f32.mrf.mxu0
    %534 = vdwg.mxu0
    %v535 = vadd.f32 %v492, %v519
    %v536 = vadd.f32 %v493, %v532
    %537 = vrot.lane.b32.xlu0 %v286, 115
    %v538 = vpop.permute.xlu0 %537
    %539 = vrot.lane.b32.xlu0 %v287, 115
    %v540 = vpop.permute.xlu0 %539
    %vm541 = vcmask 941056
    %v542 = vsel %vm541, %v538, %v540
    %v544 = vsel %vm294, %v273, 0
    %v547 = vsel %vm208, %v542, 0
    %v550 = vsel %vm208, %v540, 0
    %552 = vmatpush.bf16.msra.mxu0 0
    %553 = vmatpush.bf16.msra.mxu0 0
    %554 = vmatpush.bf16.msra.mxu0 0
    %555 = vmatpush.bf16.msra.mxu0 0
    %556 = vmatpush.bf16.msra.mxu0 0
    %557 = vmatpush.bf16.msra.mxu0 0
    %558 = vmatpush.bf16.msra.mxu0 0
    %559 = vmatpush.bf16.msra.mxu0 %v547
    %560 = vmatmul.bf16.gmra.mxu0 %v544
    %v561 = vpop.f32.mrf.mxu0
    %v562 = vadd.f32 0.0, %v561
    %v563 = vpop.f32.mrf.mxu0
    %564 = vdwg.mxu0
    %565 = vmatpush.bf16.msra.mxu0 0
    %566 = vmatpush.bf16.msra.mxu0 0
    %567 = vmatpush.bf16.msra.mxu0 0
    %568 = vmatpush.bf16.msra.mxu0 0
    %569 = vmatpush.bf16.msra.mxu0 0
    %570 = vmatpush.bf16.msra.mxu0 0
    %571 = vmatpush.bf16.msra.mxu0 0
    %572 = vmatpush.bf16.msra.mxu0 %v550
    %573 = vmatmul.bf16.gmra.mxu0 %v544
    %v574 = vpop.f32.mrf.mxu0
    %v575 = vadd.f32 0.0, %v574
    %v576 = vpop.f32.mrf.mxu0
    %577 = vdwg.mxu0
    %v578 = vadd.f32 %v535, %v562
    %v579 = vadd.f32 %v536, %v575
    %580 = vrot.lane.b32.xlu0 %v286, 114
    %v581 = vpop.permute.xlu0 %580
    %582 = vrot.lane.b32.xlu0 %v287, 114
    %v583 = vpop.permute.xlu0 %582
    %vm584 = vcmask 932864
    %v585 = vsel %vm584, %v581, %v583
    %v587 = vsel %vm294, %v274, 0
    %v590 = vsel %vm208, %v585, 0
    %v593 = vsel %vm208, %v583, 0
    %595 = vmatpush.bf16.msra.mxu0 0
    %596 = vmatpush.bf16.msra.mxu0 0
    %597 = vmatpush.bf16.msra.mxu0 0
    %598 = vmatpush.bf16.msra.mxu0 0
    %599 = vmatpush.bf16.msra.mxu0 0
    %600 = vmatpush.bf16.msra.mxu0 0
    %601 = vmatpush.bf16.msra.mxu0 0
    %602 = vmatpush.bf16.msra.mxu0 %v590
    %603 = vmatmul.bf16.gmra.mxu0 %v587
    %v604 = vpop.f32.mrf.mxu0
    %v605 = vadd.f32 0.0, %v604
    %v606 = vpop.f32.mrf.mxu0
    %607 = vdwg.mxu0
    %608 = vmatpush.bf16.msra.mxu0 0
    %609 = vmatpush.bf16.msra.mxu0 0
    %610 = vmatpush.bf16.msra.mxu0 0
    %611 = vmatpush.bf16.msra.mxu0 0
    %612 = vmatpush.bf16.msra.mxu0 0
    %613 = vmatpush.bf16.msra.mxu0 0
    %614 = vmatpush.bf16.msra.mxu0 0
    %615 = vmatpush.bf16.msra.mxu0 %v593
    %616 = vmatmul.bf16.gmra.mxu0 %v587
    %v617 = vpop.f32.mrf.mxu0
    %v618 = vadd.f32 0.0, %v617
    %v619 = vpop.f32.mrf.mxu0
    %620 = vdwg.mxu0
    %v621 = vadd.f32 %v578, %v605
    %v622 = vadd.f32 %v579, %v618
    %623 = vrot.lane.b32.xlu0 %v286, 106
    %v624 = vpop.permute.xlu0 %623
    %625 = vrot.lane.b32.xlu0 %v287, 106
    %v626 = vpop.permute.xlu0 %625
    %vm627 = vcmask 867328
    %v628 = vsel %vm627, %v624, %v626
    %v630 = vsel %vm294, %v275, 0
    %v633 = vsel %vm208, %v628, 0
    %v636 = vsel %vm208, %v626, 0
    %638 = vmatpush.bf16.msra.mxu0 0
    %639 = vmatpush.bf16.msra.mxu0 0
    %640 = vmatpush.bf16.msra.mxu0 0
    %641 = vmatpush.bf16.msra.mxu0 0
    %642 = vmatpush.bf16.msra.mxu0 0
    %643 = vmatpush.bf16.msra.mxu0 0
    %644 = vmatpush.bf16.msra.mxu0 0
    %645 = vmatpush.bf16.msra.mxu0 %v633
    %646 = vmatmul.bf16.gmra.mxu0 %v630
    %v647 = vpop.f32.mrf.mxu0
    %v648 = vadd.f32 0.0, %v647
    %v649 = vpop.f32.mrf.mxu0
    %650 = vdwg.mxu0
    %651 = vmatpush.bf16.msra.mxu0 0
    %652 = vmatpush.bf16.msra.mxu0 0
    %653 = vmatpush.bf16.msra.mxu0 0
    %654 = vmatpush.bf16.msra.mxu0 0
    %655 = vmatpush.bf16.msra.mxu0 0
    %656 = vmatpush.bf16.msra.mxu0 0
    %657 = vmatpush.bf16.msra.mxu0 0
    %658 = vmatpush.bf16.msra.mxu0 %v636
    %659 = vmatmul.bf16.gmra.mxu0 %v630
    %v660 = vpop.f32.mrf.mxu0
    %v661 = vadd.f32 0.0, %v660
    %v662 = vpop.f32.mrf.mxu0
    %663 = vdwg.mxu0
    %v664 = vadd.f32 %v621, %v648
    %v665 = vadd.f32 %v622, %v661
    %666 = vrot.lane.b32.xlu0 %v286, 105
    %v667 = vpop.permute.xlu0 %666
    %668 = vrot.lane.b32.xlu0 %v287, 105
    %v669 = vpop.permute.xlu0 %668
    %vm670 = vcmask 859136
    %v671 = vsel %vm670, %v667, %v669
    %v673 = vsel %vm294, %v276, 0
    %v676 = vsel %vm208, %v671, 0
    %v679 = vsel %vm208, %v669, 0
    %681 = vmatpush.bf16.msra.mxu0 0
    %682 = vmatpush.bf16.msra.mxu0 0
    %683 = vmatpush.bf16.msra.mxu0 0
    %684 = vmatpush.bf16.msra.mxu0 0
    %685 = vmatpush.bf16.msra.mxu0 0
    %686 = vmatpush.bf16.msra.mxu0 0
    %687 = vmatpush.bf16.msra.mxu0 0
    %688 = vmatpush.bf16.msra.mxu0 %v676
    %689 = vmatmul.bf16.gmra.mxu0 %v673
    %v690 = vpop.f32.mrf.mxu0
    %v691 = vadd.f32 0.0, %v690
    %v692 = vpop.f32.mrf.mxu0
    %693 = vdwg.mxu0
    %694 = vmatpush.bf16.msra.mxu0 0
    %695 = vmatpush.bf16.msra.mxu0 0
    %696 = vmatpush.bf16.msra.mxu0 0
    %697 = vmatpush.bf16.msra.mxu0 0
    %698 = vmatpush.bf16.msra.mxu0 0
    %699 = vmatpush.bf16.msra.mxu0 0
    %700 = vmatpush.bf16.msra.mxu0 0
    %701 = vmatpush.bf16.msra.mxu0 %v679
    %702 = vmatmul.bf16.gmra.mxu0 %v673
    %v703 = vpop.f32.mrf.mxu0
    %v704 = vadd.f32 0.0, %v703
    %v705 = vpop.f32.mrf.mxu0
    %706 = vdwg.mxu0
    %v707 = vadd.f32 %v664, %v691
    %v708 = vadd.f32 %v665, %v704
    %709 = vrot.lane.b32.xlu0 %v286, 104
    %v710 = vpop.permute.xlu0 %709
    %711 = vrot.lane.b32.xlu0 %v287, 104
    %v712 = vpop.permute.xlu0 %711
    %vm713 = vcmask 850944
    %v714 = vsel %vm713, %v710, %v712
    %v716 = vsel %vm294, %v277, 0
    %v719 = vsel %vm208, %v714, 0
    %v722 = vsel %vm208, %v712, 0
    %724 = vmatpush.bf16.msra.mxu0 0
    %725 = vmatpush.bf16.msra.mxu0 0
    %726 = vmatpush.bf16.msra.mxu0 0
    %727 = vmatpush.bf16.msra.mxu0 0
    %728 = vmatpush.bf16.msra.mxu0 0
    %729 = vmatpush.bf16.msra.mxu0 0
    %730 = vmatpush.bf16.msra.mxu0 0
    %731 = vmatpush.bf16.msra.mxu0 %v719
    %732 = vmatmul.bf16.gmra.mxu0 %v716
    %v733 = vpop.f32.mrf.mxu0
    %v734 = vadd.f32 0.0, %v733
    %v735 = vpop.f32.mrf.mxu0
    %736 = vdwg.mxu0
    %737 = vmatpush.bf16.msra.mxu0 0
    %738 = vmatpush.bf16.msra.mxu0 0
    %739 = vmatpush.bf16.msra.mxu0 0
    %740 = vmatpush.bf16.msra.mxu0 0
    %741 = vmatpush.bf16.msra.mxu0 0
    %742 = vmatpush.bf16.msra.mxu0 0
    %743 = vmatpush.bf16.msra.mxu0 0
    %744 = vmatpush.bf16.msra.mxu0 %v722
    %745 = vmatmul.bf16.gmra.mxu0 %v716
    %v746 = vpop.f32.mrf.mxu0
    %v747 = vadd.f32 0.0, %v746
    %v748 = vpop.f32.mrf.mxu0
    %749 = vdwg.mxu0
    %v750 = vadd.f32 %v707, %v734
    %v751 = vadd.f32 %v708, %v747
    %752 = vrot.lane.b32.xlu0 %v286, 103
    %v753 = vpop.permute.xlu0 %752
    %754 = vrot.lane.b32.xlu0 %v287, 103
    %v755 = vpop.permute.xlu0 %754
    %vm756 = vcmask 842752
    %v757 = vsel %vm756, %v753, %v755
    %v759 = vsel %vm294, %v278, 0
    %v762 = vsel %vm208, %v757, 0
    %v765 = vsel %vm208, %v755, 0
    %767 = vmatpush.bf16.msra.mxu0 0
    %768 = vmatpush.bf16.msra.mxu0 0
    %769 = vmatpush.bf16.msra.mxu0 0
    %770 = vmatpush.bf16.msra.mxu0 0
    %771 = vmatpush.bf16.msra.mxu0 0
    %772 = vmatpush.bf16.msra.mxu0 0
    %773 = vmatpush.bf16.msra.mxu0 0
    %774 = vmatpush.bf16.msra.mxu0 %v762
    %775 = vmatmul.bf16.gmra.mxu0 %v759
    %v776 = vpop.f32.mrf.mxu0
    %v777 = vadd.f32 0.0, %v776
    %v778 = vpop.f32.mrf.mxu0
    %779 = vdwg.mxu0
    %780 = vmatpush.bf16.msra.mxu0 0
    %781 = vmatpush.bf16.msra.mxu0 0
    %782 = vmatpush.bf16.msra.mxu0 0
    %783 = vmatpush.bf16.msra.mxu0 0
    %784 = vmatpush.bf16.msra.mxu0 0
    %785 = vmatpush.bf16.msra.mxu0 0
    %786 = vmatpush.bf16.msra.mxu0 0
    %787 = vmatpush.bf16.msra.mxu0 %v765
    %788 = vmatmul.bf16.gmra.mxu0 %v759
    %v789 = vpop.f32.mrf.mxu0
    %v790 = vadd.f32 0.0, %v789
    %v791 = vpop.f32.mrf.mxu0
    %792 = vdwg.mxu0
    %v793 = vadd.f32 %v750, %v777
    %v794 = vadd.f32 %v751, %v790
    %795 = vrot.lane.b32.xlu0 %v286, 95
    %v796 = vpop.permute.xlu0 %795
    %797 = vrot.lane.b32.xlu0 %v287, 95
    %v798 = vpop.permute.xlu0 %797
    %vm799 = vcmask 777216
    %v800 = vsel %vm799, %v796, %v798
    %v802 = vsel %vm294, %v279, 0
    %v805 = vsel %vm208, %v800, 0
    %v808 = vsel %vm208, %v798, 0
    %810 = vmatpush.bf16.msra.mxu0 0
    %811 = vmatpush.bf16.msra.mxu0 0
    %812 = vmatpush.bf16.msra.mxu0 0
    %813 = vmatpush.bf16.msra.mxu0 0
    %814 = vmatpush.bf16.msra.mxu0 0
    %815 = vmatpush.bf16.msra.mxu0 0
    %816 = vmatpush.bf16.msra.mxu0 0
    %817 = vmatpush.bf16.msra.mxu0 %v805
    %818 = vmatmul.bf16.gmra.mxu0 %v802
    %v819 = vpop.f32.mrf.mxu0
    %v820 = vadd.f32 0.0, %v819
    %v821 = vpop.f32.mrf.mxu0
    %822 = vdwg.mxu0
    %823 = vmatpush.bf16.msra.mxu0 0
    %824 = vmatpush.bf16.msra.mxu0 0
    %825 = vmatpush.bf16.msra.mxu0 0
    %826 = vmatpush.bf16.msra.mxu0 0
    %827 = vmatpush.bf16.msra.mxu0 0
    %828 = vmatpush.bf16.msra.mxu0 0
    %829 = vmatpush.bf16.msra.mxu0 0
    %830 = vmatpush.bf16.msra.mxu0 %v808
    %831 = vmatmul.bf16.gmra.mxu0 %v802
    %v832 = vpop.f32.mrf.mxu0
    %v833 = vadd.f32 0.0, %v832
    %v834 = vpop.f32.mrf.mxu0
    %835 = vdwg.mxu0
    %v836 = vadd.f32 %v793, %v820
    %v837 = vadd.f32 %v794, %v833
    %838 = vrot.lane.b32.xlu0 %v286, 94
    %v839 = vpop.permute.xlu0 %838
    %840 = vrot.lane.b32.xlu0 %v287, 94
    %v841 = vpop.permute.xlu0 %840
    %vm842 = vcmask 769024
    %v843 = vsel %vm842, %v839, %v841
    %v845 = vsel %vm294, %v280, 0
    %v848 = vsel %vm208, %v843, 0
    %v851 = vsel %vm208, %v841, 0
    %853 = vmatpush.bf16.msra.mxu0 0
    %854 = vmatpush.bf16.msra.mxu0 0
    %855 = vmatpush.bf16.msra.mxu0 0
    %856 = vmatpush.bf16.msra.mxu0 0
    %857 = vmatpush.bf16.msra.mxu0 0
    %858 = vmatpush.bf16.msra.mxu0 0
    %859 = vmatpush.bf16.msra.mxu0 0
    %860 = vmatpush.bf16.msra.mxu0 %v848
    %861 = vmatmul.bf16.gmra.mxu0 %v845
    %v862 = vpop.f32.mrf.mxu0
    %v863 = vadd.f32 0.0, %v862
    %v864 = vpop.f32.mrf.mxu0
    %865 = vdwg.mxu0
    %866 = vmatpush.bf16.msra.mxu0 0
    %867 = vmatpush.bf16.msra.mxu0 0
    %868 = vmatpush.bf16.msra.mxu0 0
    %869 = vmatpush.bf16.msra.mxu0 0
    %870 = vmatpush.bf16.msra.mxu0 0
    %871 = vmatpush.bf16.msra.mxu0 0
    %872 = vmatpush.bf16.msra.mxu0 0
    %873 = vmatpush.bf16.msra.mxu0 %v851
    %874 = vmatmul.bf16.gmra.mxu0 %v845
    %v875 = vpop.f32.mrf.mxu0
    %v876 = vadd.f32 0.0, %v875
    %v877 = vpop.f32.mrf.mxu0
    %878 = vdwg.mxu0
    %v879 = vadd.f32 %v836, %v863
    %v880 = vadd.f32 %v837, %v876
    %881 = vrot.lane.b32.xlu0 %v286, 93
    %v882 = vpop.permute.xlu0 %881
    %883 = vrot.lane.b32.xlu0 %v287, 93
    %v884 = vpop.permute.xlu0 %883
    %vm885 = vcmask 760832
    %v886 = vsel %vm885, %v882, %v884
    %v888 = vsel %vm294, %v281, 0
    %v891 = vsel %vm208, %v886, 0
    %v894 = vsel %vm208, %v884, 0
    %896 = vmatpush.bf16.msra.mxu0 0
    %897 = vmatpush.bf16.msra.mxu0 0
    %898 = vmatpush.bf16.msra.mxu0 0
    %899 = vmatpush.bf16.msra.mxu0 0
    %900 = vmatpush.bf16.msra.mxu0 0
    %901 = vmatpush.bf16.msra.mxu0 0
    %902 = vmatpush.bf16.msra.mxu0 0
    %903 = vmatpush.bf16.msra.mxu0 %v891
    %904 = vmatmul.bf16.gmra.mxu0 %v888
    %v905 = vpop.f32.mrf.mxu0
    %v906 = vadd.f32 0.0, %v905
    %v907 = vpop.f32.mrf.mxu0
    %908 = vdwg.mxu0
    %909 = vmatpush.bf16.msra.mxu0 0
    %910 = vmatpush.bf16.msra.mxu0 0
    %911 = vmatpush.bf16.msra.mxu0 0
    %912 = vmatpush.bf16.msra.mxu0 0
    %913 = vmatpush.bf16.msra.mxu0 0
    %914 = vmatpush.bf16.msra.mxu0 0
    %915 = vmatpush.bf16.msra.mxu0 0
    %916 = vmatpush.bf16.msra.mxu0 %v894
    %917 = vmatmul.bf16.gmra.mxu0 %v888
    %v918 = vpop.f32.mrf.mxu0
    %v919 = vadd.f32 0.0, %v918
    %v920 = vpop.f32.mrf.mxu0
    %921 = vdwg.mxu0
    %v922 = vadd.f32 %v879, %v906
    %v923 = vadd.f32 %v880, %v919
    %924 = vrot.lane.b32.xlu0 %v286, 92
    %v925 = vpop.permute.xlu0 %924
    %926 = vrot.lane.b32.xlu0 %v287, 92
    %v927 = vpop.permute.xlu0 %926
    %vm928 = vcmask 752640
    %v929 = vsel %vm928, %v925, %v927
    %v931 = vsel %vm294, %v282, 0
    %v934 = vsel %vm208, %v929, 0
    %v937 = vsel %vm208, %v927, 0
    %939 = vmatpush.bf16.msra.mxu0 0
    %940 = vmatpush.bf16.msra.mxu0 0
    %941 = vmatpush.bf16.msra.mxu0 0
    %942 = vmatpush.bf16.msra.mxu0 0
    %943 = vmatpush.bf16.msra.mxu0 0
    %944 = vmatpush.bf16.msra.mxu0 0
    %945 = vmatpush.bf16.msra.mxu0 0
    %946 = vmatpush.bf16.msra.mxu0 %v934
    %947 = vmatmul.bf16.gmra.mxu0 %v931
    %v948 = vpop.f32.mrf.mxu0
    %v949 = vadd.f32 0.0, %v948
    %v950 = vpop.f32.mrf.mxu0
    %951 = vdwg.mxu0
    %952 = vmatpush.bf16.msra.mxu0 0
    %953 = vmatpush.bf16.msra.mxu0 0
    %954 = vmatpush.bf16.msra.mxu0 0
    %955 = vmatpush.bf16.msra.mxu0 0
    %956 = vmatpush.bf16.msra.mxu0 0
    %957 = vmatpush.bf16.msra.mxu0 0
    %958 = vmatpush.bf16.msra.mxu0 0
    %959 = vmatpush.bf16.msra.mxu0 %v937
    %960 = vmatmul.bf16.gmra.mxu0 %v931
    %v961 = vpop.f32.mrf.mxu0
    %v962 = vadd.f32 0.0, %v961
    %v963 = vpop.f32.mrf.mxu0
    %964 = vdwg.mxu0
    %v965 = vadd.f32 %v922, %v949
    %v966 = vadd.f32 %v923, %v962
    %v967 = vld [vmem:[%s7] sm:$0x3]
    %v969 = vperm.slane %v967, 0
    %v970 = vperm.slane %v967, 1
    %v973 = vmul.f32 %v965, %v969
    %v974 = vmul.f32 %v966, %v970
    %vm975 = vcmask 637952
    %v976 = vsel %vm975, %v974, 0.0
    %v977 = vadd.f32 %v973, %v976
    %978 = vadd.xlane.f32.xlu0 %v977
    %v979 = vpop.xlane.xlu0 %978
    %v980 = vmul.f32 %v979, 0.0078125
    %v981 = vmul.f32 %v973, %v973
    %v982 = vmul.f32 %v974, %v974
    %v983 = vsel %vm975, %v982, 0.0
    %v984 = vadd.f32 %v981, %v983
    %985 = vadd.xlane.f32.xlu0 %v984
    %v986 = vpop.xlane.xlu0 %985
    %v987 = vmul.f32 %v986, 0.0078125
    %v988 = vld [vmem:[%s5] sm:$0xff]
    %v989 = vmul.f32 %v980, %v980
    %v990 = vsub.f32 %v987, %v989
    %v991 = vadd.f32 %v990, 1e-05
    %v992 = vrsqrt.pop %v991
    %v993 = vmul.f32 %v992, %v991
    %v994 = vmul.f32 %v993, %v992
    %v995 = vmul.f32 0.5, %v994
    %v996 = vsub.f32 1.5, %v995
    %v997 = vmul.f32 %v992, %v996
    %vm998 = vweird.f32 %v991
    %vm999 = vweird.f32 %v992
    %vm1000 = vmor %vm998, %vm999
    %v1001 = vsel %vm1000, %v992, %v997
    %v1002 = vmul.f32 %v988, %v1001
    %v1003 = vld [vmem:[%s6] sm:$0xff]
    %v1004 = vmul.f32 %v980, %v1002
    %v1005 = vsub.f32 %v1003, %v1004
    %1007 = vset.pattern.permute.xlu0 0
    %1008 = vperm.xlu0 %1007, %v1002
    %v1009 = vpop.permute.xlu0 %1008
    %v1011 = vmul.f32 %v973, %v1009
    %v1012 = vmul.f32 %v974, %v1009
    %1014 = vset.pattern.permute.xlu0 0
    %1015 = vperm.xlu0 %1014, %v1005
    %v1016 = vpop.permute.xlu0 %1015
    %v1018 = vadd.f32 %v1011, %v1016
    %v1019 = vadd.f32 %v1012, %v1016
    %v1020 = vmax.f32 %v1018, 0.0
    %v1021 = vmax.f32 %v1019, 0.0
    %v1022 = vand.u32 2147483647, %v1018
    %v1023 = vand.u32 2147483647, %v1019
    %v1024 = vsub.f32 0.0, %v1022
    %v1025 = vsub.f32 0.0, %v1023
    %v1026 = vmul.f32 %v1024, 1.442695
    %v1027 = vpow.pop %v1026
    %v1028 = vmul.f32 %v1025, 1.442695
    %v1029 = vpow.pop %v1028
    %v1030 = vadd.f32 %v1027, 1.0
    %v1031 = vadd.f32 %v1029, 1.0
    %v1032 = vlog2.pop %v1030
    %v1033 = vmul.f32 %v1032, 0.6931472
    %v1034 = vlog2.pop %v1031
    %v1035 = vmul.f32 %v1034, 0.6931472
    %v1036 = vadd.f32 %v1020, %v1033
    %v1037 = vadd.f32 %v1021, %v1035
    %vm1038 = vcmp.gt.f32.partialorder %v1018, 20.0
    %vm1039 = vcmp.gt.f32.partialorder %v1019, 20.0
    %v1040 = vsel %vm1038, %v1018, %v1036
    %v1041 = vsel %vm1039, %v1019, %v1037
    %v1042 = vpack.c.bf16 %v1040, %v1040
    %v1043 = vpack.c.bf16 %v1041, %v1041
    %v1044 = vld [vmem:[#allocation3] sm:$0xff]
    %v1045 = vld [vmem:[#allocation3 + $0x8] sm:$0xff]
    %v1046 = vld [vmem:[#allocation3 + $0x10] sm:$0xff]
    %v1047 = vld [vmem:[#allocation3 + $0x18] sm:$0xff]
    %v1048 = vld [vmem:[#allocation3 + $0x20] sm:$0xff]
    %v1049 = vld [vmem:[#allocation3 + $0x28] sm:$0xff]
    %v1050 = vld [vmem:[#allocation3 + $0x30] sm:$0xff]
    %v1051 = vld [vmem:[#allocation3 + $0x38] sm:$0xff]
    %v1052 = vld [vmem:[#allocation3 + $0x40] sm:$0xff]
    %v1053 = vld [vmem:[#allocation3 + $0x48] sm:$0xff]
    %v1054 = vld [vmem:[#allocation3 + $0x50] sm:$0xff]
    %v1055 = vld [vmem:[#allocation3 + $0x58] sm:$0xff]
    %v1056 = vld [vmem:[#allocation3 + $0x60] sm:$0xff]
    %v1057 = vld [vmem:[#allocation3 + $0x68] sm:$0xff]
    %v1058 = vld [vmem:[#allocation3 + $0x70] sm:$0xff]
    %v1059 = vld [vmem:[#allocation3 + $0x78] sm:$0xff]
    %v1060 = vld [vmem:[#allocation3 + $0x80] sm:$0xff]
    %v1061 = vld [vmem:[#allocation3 + $0x88] sm:$0xff]
    %v1062 = vld [vmem:[#allocation3 + $0x90] sm:$0xff]
    %v1063 = vld [vmem:[#allocation3 + $0x98] sm:$0xff]
    %v1064 = vld [vmem:[#allocation3 + $0xa0] sm:$0xff]
    %v1065 = vld [vmem:[#allocation3 + $0xa8] sm:$0xff]
    %v1066 = vld [vmem:[#allocation3 + $0xb0] sm:$0xff]
    %v1067 = vld [vmem:[#allocation3 + $0xb8] sm:$0xff]
    %v1068 = vld [vmem:[#allocation3 + $0xc0] sm:$0xff]
    %v1069 = vld [vmem:[#allocation3 + $0xc8] sm:$0xff]
    %v1070 = vld [vmem:[#allocation3 + $0xd0] sm:$0xff]
    %v1071 = vld [vmem:[#allocation3 + $0xd8] sm:$0xff]
    %v1072 = vld [vmem:[#allocation3 + $0xe0] sm:$0xff]
    %v1073 = vld [vmem:[#allocation3 + $0xe8] sm:$0xff]
    %v1074 = vld [vmem:[#allocation3 + $0xf0] sm:$0xff]
    %v1075 = vld [vmem:[#allocation3 + $0xf8] sm:$0xff]
    %v1076 = vld [vmem:[#allocation3 + $0x100] sm:$0xff]
    %v1077 = vld [vmem:[#allocation3 + $0x108] sm:$0xff]
    %v1078 = vld [vmem:[#allocation3 + $0x110] sm:$0xff]
    %v1079 = vld [vmem:[#allocation3 + $0x118] sm:$0xff]
    %v1080 = vld [vmem:[#allocation3 + $0x120] sm:$0xff]
    %v1081 = vld [vmem:[#allocation3 + $0x128] sm:$0xff]
    %v1082 = vld [vmem:[#allocation3 + $0x130] sm:$0xff]
    %v1083 = vld [vmem:[#allocation3 + $0x138] sm:$0xff]
    %v1084 = vld [vmem:[#allocation3 + $0x140] sm:$0xff]
    %v1085 = vld [vmem:[#allocation3 + $0x148] sm:$0xff]
    %v1086 = vld [vmem:[#allocation3 + $0x150] sm:$0xff]
    %v1087 = vld [vmem:[#allocation3 + $0x158] sm:$0xff]
    %v1088 = vld [vmem:[#allocation3 + $0x160] sm:$0xff]
    %v1089 = vld [vmem:[#allocation3 + $0x168] sm:$0xff]
    %v1090 = vld [vmem:[#allocation3 + $0x170] sm:$0xff]
    %v1091 = vld [vmem:[#allocation3 + $0x178] sm:$0xff]
    %v1092 = vld [vmem:[#allocation3 + $0x180] sm:$0xff]
    %v1093 = vld [vmem:[#allocation3 + $0x188] sm:$0xff]
    %v1094 = vld [vmem:[#allocation3 + $0x190] sm:$0xff]
    %v1095 = vld [vmem:[#allocation3 + $0x198] sm:$0xff]
    %v1096 = vld [vmem:[#allocation3 + $0x1a0] sm:$0xff]
    %v1097 = vld [vmem:[#allocation3 + $0x1a8] sm:$0xff]
    %v1098 = vld [vmem:[#allocation3 + $0x1b0] sm:$0xff]
    %v1099 = vld [vmem:[#allocation3 + $0x1b8] sm:$0xff]
    %v1100 = vld [vmem:[#allocation3 + $0x1c0] sm:$0xff]
    %v1101 = vld [vmem:[#allocation3 + $0x1c8] sm:$0xff]
    %v1102 = vld [vmem:[#allocation3 + $0x1d0] sm:$0xff]
    %v1103 = vld [vmem:[#allocation3 + $0x1d8] sm:$0xff]
    %v1104 = vld [vmem:[#allocation3 + $0x1e0] sm:$0xff]
    %v1105 = vld [vmem:[#allocation3 + $0x1e8] sm:$0xff]
    %v1106 = vld [vmem:[#allocation3 + $0x1f0] sm:$0xff]
    %v1107 = vld [vmem:[#allocation3 + $0x1f8] sm:$0xff]
    %v1108 = vld [vmem:[#allocation3 + $0x200] sm:$0xff]
    %v1109 = vld [vmem:[#allocation3 + $0x208] sm:$0xff]
    %v1110 = vld [vmem:[#allocation3 + $0x210] sm:$0xff]
    %v1111 = vld [vmem:[#allocation3 + $0x218] sm:$0xff]
    %v1112 = vld [vmem:[#allocation3 + $0x220] sm:$0xff]
    %v1113 = vld [vmem:[#allocation3 + $0x228] sm:$0xff]
    %v1114 = vld [vmem:[#allocation3 + $0x230] sm:$0xff]
    %v1115 = vld [vmem:[#allocation3 + $0x238] sm:$0xff]
    %v1116 = vld [vmem:[#allocation3 + $0x240] sm:$0xff]
    %v1117 = vld [vmem:[#allocation3 + $0x248] sm:$0xff]
    %v1118 = vld [vmem:[#allocation3 + $0x250] sm:$0xff]
    %v1119 = vld [vmem:[#allocation3 + $0x258] sm:$0x77]
    %v1120 = vld [vmem:[#allocation3 + $0x260] sm:$0x77]
    %v1121 = vld [vmem:[#allocation3 + $0x268] sm:$0x77]
    %v1200 = vunpack.c.l.b16 %v1044
    %v1201 = vunpack.c.h.b16 %v1044
    %v1202 = vunpack.c.l.b16 %v1045
    %v1203 = vunpack.c.h.b16 %v1045
    %v1204 = vunpack.c.l.b16 %v1046
    %v1205 = vunpack.c.h.b16 %v1046
    %v1206 = vunpack.c.l.b16 %v1047
    %v1207 = vunpack.c.h.b16 %v1047
    %v1208 = vunpack.c.l.b16 %v1048
    %v1209 = vunpack.c.h.b16 %v1048
    %v1210 = vunpack.c.l.b16 %v1049
    %v1211 = vunpack.c.h.b16 %v1049
    %v1212 = vunpack.c.l.b16 %v1050
    %v1213 = vunpack.c.h.b16 %v1050
    %v1214 = vunpack.c.l.b16 %v1051
    %v1215 = vunpack.c.h.b16 %v1051
    %v1216 = vunpack.c.l.b16 %v1052
    %v1217 = vunpack.c.h.b16 %v1052
    %v1218 = vunpack.c.l.b16 %v1053
    %v1219 = vunpack.c.h.b16 %v1053
    %v1220 = vunpack.c.l.b16 %v1054
    %v1221 = vunpack.c.h.b16 %v1054
    %v1222 = vunpack.c.l.b16 %v1055
    %v1223 = vunpack.c.h.b16 %v1055
    %v1224 = vunpack.c.l.b16 %v1056
    %v1225 = vunpack.c.h.b16 %v1056
    %v1226 = vunpack.c.l.b16 %v1057
    %v1227 = vunpack.c.h.b16 %v1057
    %v1228 = vunpack.c.l.b16 %v1058
    %v1229 = vunpack.c.h.b16 %v1058
    %v1230 = vunpack.c.l.b16 %v1059
    %v1231 = vunpack.c.h.b16 %v1059
    %v1232 = vunpack.c.l.b16 %v1060
    %v1233 = vunpack.c.h.b16 %v1060
    %v1234 = vunpack.c.l.b16 %v1061
    %v1235 = vunpack.c.h.b16 %v1061
    %v1236 = vunpack.c.l.b16 %v1062
    %v1237 = vunpack.c.h.b16 %v1062
    %v1238 = vunpack.c.l.b16 %v1063
    %v1239 = vunpack.c.h.b16 %v1063
    %v1240 = vunpack.c.l.b16 %v1064
    %v1241 = vunpack.c.h.b16 %v1064
    %v1242 = vunpack.c.l.b16 %v1065
    %v1243 = vunpack.c.h.b16 %v1065
    %v1244 = vunpack.c.l.b16 %v1066
    %v1245 = vunpack.c.h.b16 %v1066
    %v1246 = vunpack.c.l.b16 %v1067
    %v1247 = vunpack.c.h.b16 %v1067
    %v1248 = vunpack.c.l.b16 %v1068
    %v1249 = vunpack.c.h.b16 %v1068
    %v1250 = vunpack.c.l.b16 %v1069
    %v1251 = vunpack.c.h.b16 %v1069
    %v1252 = vunpack.c.l.b16 %v1070
    %v1253 = vunpack.c.h.b16 %v1070
    %v1254 = vunpack.c.l.b16 %v1071
    %v1255 = vunpack.c.h.b16 %v1071
    %v1256 = vunpack.c.l.b16 %v1072
    %v1257 = vunpack.c.h.b16 %v1072
    %v1258 = vunpack.c.l.b16 %v1073
    %v1259 = vunpack.c.h.b16 %v1073
    %v1260 = vunpack.c.l.b16 %v1074
    %v1261 = vunpack.c.h.b16 %v1074
    %v1262 = vunpack.c.l.b16 %v1075
    %v1263 = vunpack.c.h.b16 %v1075
    %v1264 = vunpack.c.l.b16 %v1076
    %v1265 = vunpack.c.h.b16 %v1076
    %v1266 = vunpack.c.l.b16 %v1077
    %v1267 = vunpack.c.h.b16 %v1077
    %v1268 = vunpack.c.l.b16 %v1078
    %v1269 = vunpack.c.h.b16 %v1078
    %v1270 = vunpack.c.l.b16 %v1079
    %v1271 = vunpack.c.h.b16 %v1079
    %v1272 = vunpack.c.l.b16 %v1080
    %v1273 = vunpack.c.h.b16 %v1080
    %v1274 = vunpack.c.l.b16 %v1081
    %v1275 = vunpack.c.h.b16 %v1081
    %v1276 = vunpack.c.l.b16 %v1082
    %v1277 = vunpack.c.h.b16 %v1082
    %v1278 = vunpack.c.l.b16 %v1083
    %v1279 = vunpack.c.h.b16 %v1083
    %v1280 = vunpack.c.l.b16 %v1084
    %v1281 = vunpack.c.h.b16 %v1084
    %v1282 = vunpack.c.l.b16 %v1085
    %v1283 = vunpack.c.h.b16 %v1085
    %v1284 = vunpack.c.l.b16 %v1086
    %v1285 = vunpack.c.h.b16 %v1086
    %v1286 = vunpack.c.l.b16 %v1087
    %v1287 = vunpack.c.h.b16 %v1087
    %v1288 = vunpack.c.l.b16 %v1088
    %v1289 = vunpack.c.h.b16 %v1088
    %v1290 = vunpack.c.l.b16 %v1089
    %v1291 = vunpack.c.h.b16 %v1089
    %v1292 = vunpack.c.l.b16 %v1090
    %v1293 = vunpack.c.h.b16 %v1090
    %v1294 = vunpack.c.l.b16 %v1091
    %v1295 = vunpack.c.h.b16 %v1091
    %v1296 = vunpack.c.l.b16 %v1092
    %v1297 = vunpack.c.h.b16 %v1092
    %v1298 = vunpack.c.l.b16 %v1093
    %v1299 = vunpack.c.h.b16 %v1093
    %v1300 = vunpack.c.l.b16 %v1094
    %v1301 = vunpack.c.h.b16 %v1094
    %v1302 = vunpack.c.l.b16 %v1095
    %v1303 = vunpack.c.h.b16 %v1095
    %v1304 = vunpack.c.l.b16 %v1096
    %v1305 = vunpack.c.h.b16 %v1096
    %v1306 = vunpack.c.l.b16 %v1097
    %v1307 = vunpack.c.h.b16 %v1097
    %v1308 = vunpack.c.l.b16 %v1098
    %v1309 = vunpack.c.h.b16 %v1098
    %v1310 = vunpack.c.l.b16 %v1099
    %v1311 = vunpack.c.h.b16 %v1099
    %v1312 = vunpack.c.l.b16 %v1100
    %v1313 = vunpack.c.h.b16 %v1100
    %v1314 = vunpack.c.l.b16 %v1101
    %v1315 = vunpack.c.h.b16 %v1101
    %v1316 = vunpack.c.l.b16 %v1102
    %v1317 = vunpack.c.h.b16 %v1102
    %v1318 = vunpack.c.l.b16 %v1103
    %v1319 = vunpack.c.h.b16 %v1103
    %v1320 = vunpack.c.l.b16 %v1104
    %v1321 = vunpack.c.h.b16 %v1104
    %v1322 = vunpack.c.l.b16 %v1105
    %v1323 = vunpack.c.h.b16 %v1105
    %v1324 = vunpack.c.l.b16 %v1106
    %v1325 = vunpack.c.h.b16 %v1106
    %v1326 = vunpack.c.l.b16 %v1107
    %v1327 = vunpack.c.h.b16 %v1107
    %v1328 = vunpack.c.l.b16 %v1108
    %v1329 = vunpack.c.h.b16 %v1108
    %v1330 = vunpack.c.l.b16 %v1109
    %v1331 = vunpack.c.h.b16 %v1109
    %v1332 = vunpack.c.l.b16 %v1110
    %v1333 = vunpack.c.h.b16 %v1110
    %v1334 = vunpack.c.l.b16 %v1111
    %v1335 = vunpack.c.h.b16 %v1111
    %v1336 = vunpack.c.l.b16 %v1112
    %v1337 = vunpack.c.h.b16 %v1112
    %v1338 = vunpack.c.l.b16 %v1113
    %v1339 = vunpack.c.h.b16 %v1113
    %v1340 = vunpack.c.l.b16 %v1114
    %v1341 = vunpack.c.h.b16 %v1114
    %v1342 = vunpack.c.l.b16 %v1115
    %v1343 = vunpack.c.h.b16 %v1115
    %v1344 = vunpack.c.l.b16 %v1116
    %v1345 = vunpack.c.h.b16 %v1116
    %v1346 = vunpack.c.l.b16 %v1117
    %v1347 = vunpack.c.h.b16 %v1117
    %v1348 = vunpack.c.l.b16 %v1118
    %v1349 = vunpack.c.h.b16 %v1118
    %v1350 = vunpack.c.l.b16 %v1119
    %v1351 = vunpack.c.h.b16 %v1119
    %v1352 = vunpack.c.l.b16 %v1120
    %v1353 = vunpack.c.h.b16 %v1120
    %v1354 = vunpack.c.l.b16 %v1121
    %v1355 = vunpack.c.h.b16 %v1121
    %v1356 = vpack.c.b16 %v1206, %v1200
    %v1357 = vpack.c.b16 %v1207, %v1201
    %v1358 = vpack.c.b16 %v1208, %v1202
    %v1359 = vpack.c.b16 %v1209, %v1203
    %v1360 = vpack.c.b16 %v1210, %v1204
    %v1361 = vpack.c.b16 %v1211, %v1205
    %v1362 = vpack.c.b16 %v1218, %v1212
    %v1363 = vpack.c.b16 %v1219, %v1213
    %v1364 = vpack.c.b16 %v1220, %v1214
    %v1365 = vpack.c.b16 %v1221, %v1215
    %v1366 = vpack.c.b16 %v1222, %v1216
    %v1367 = vpack.c.b16 %v1223, %v1217
    %v1368 = vpack.c.b16 %v1230, %v1224
    %v1369 = vpack.c.b16 %v1231, %v1225
    %v1370 = vpack.c.b16 %v1232, %v1226
    %v1371 = vpack.c.b16 %v1233, %v1227
    %v1372 = vpack.c.b16 %v1234, %v1228
    %v1373 = vpack.c.b16 %v1235, %v1229
    %v1374 = vpack.c.b16 %v1242, %v1236
    %v1375 = vpack.c.b16 %v1243, %v1237
    %v1376 = vpack.c.b16 %v1244, %v1238
    %v1377 = vpack.c.b16 %v1245, %v1239
    %v1378 = vpack.c.b16 %v1246, %v1240
    %v1379 = vpack.c.b16 %v1247, %v1241
    %v1380 = vpack.c.b16 %v1254, %v1248
    %v1381 = vpack.c.b16 %v1255, %v1249
    %v1382 = vpack.c.b16 %v1256, %v1250
    %v1383 = vpack.c.b16 %v1257, %v1251
    %v1384 = vpack.c.b16 %v1258, %v1252
    %v1385 = vpack.c.b16 %v1259, %v1253
    %v1386 = vpack.c.b16 %v1266, %v1260
    %v1387 = vpack.c.b16 %v1267, %v1261
    %v1388 = vpack.c.b16 %v1268, %v1262
    %v1389 = vpack.c.b16 %v1269, %v1263
    %v1390 = vpack.c.b16 %v1270, %v1264
    %v1391 = vpack.c.b16 %v1271, %v1265
    %v1392 = vpack.c.b16 %v1278, %v1272
    %v1393 = vpack.c.b16 %v1279, %v1273
    %v1394 = vpack.c.b16 %v1280, %v1274
    %v1395 = vpack.c.b16 %v1281, %v1275
    %v1396 = vpack.c.b16 %v1282, %v1276
    %v1397 = vpack.c.b16 %v1283, %v1277
    %v1398 = vpack.c.b16 %v1290, %v1284
    %v1399 = vpack.c.b16 %v1291, %v1285
    %v1400 = vpack.c.b16 %v1292, %v1286
    %v1401 = vpack.c.b16 %v1293, %v1287
    %v1402 = vpack.c.b16 %v1294, %v1288
    %v1403 = vpack.c.b16 %v1295, %v1289
    %v1404 = vpack.c.b16 %v1302, %v1296
    %v1405 = vpack.c.b16 %v1303, %v1297
    %v1406 = vpack.c.b16 %v1304, %v1298
    %v1407 = vpack.c.b16 %v1305, %v1299
    %v1408 = vpack.c.b16 %v1306, %v1300
    %v1409 = vpack.c.b16 %v1307, %v1301
    %v1410 = vpack.c.b16 %v1314, %v1308
    %v1411 = vpack.c.b16 %v1315, %v1309
    %v1412 = vpack.c.b16 %v1316, %v1310
    %v1413 = vpack.c.b16 %v1317, %v1311
    %v1414 = vpack.c.b16 %v1318, %v1312
    %v1415 = vpack.c.b16 %v1319, %v1313
    %v1416 = vpack.c.b16 %v1326, %v1320
    %v1417 = vpack.c.b16 %v1327, %v1321
    %v1418 = vpack.c.b16 %v1328, %v1322
    %v1419 = vpack.c.b16 %v1329, %v1323
    %v1420 = vpack.c.b16 %v1330, %v1324
    %v1421 = vpack.c.b16 %v1331, %v1325
    %v1422 = vpack.c.b16 %v1338, %v1332
    %v1423 = vpack.c.b16 %v1339, %v1333
    %v1424 = vpack.c.b16 %v1340, %v1334
    %v1425 = vpack.c.b16 %v1341, %v1335
    %v1426 = vpack.c.b16 %v1342, %v1336
    %v1427 = vpack.c.b16 %v1343, %v1337
    %v1428 = vpack.c.b16 %v1350, %v1344
    %v1429 = vpack.c.b16 %v1351, %v1345
    %v1430 = vpack.c.b16 %v1352, %v1346
    %v1431 = vpack.c.b16 %v1353, %v1347
    %v1432 = vpack.c.b16 %v1354, %v1348
    %v1433 = vpack.c.b16 %v1355, %v1349
    %v1507 = vsel %vm975, %v1043, 0
    %vm1509 = vcmask 1046528
    %v1511 = vsel %vm1509, %v1428, 0
    %v1514 = vsel %vm1509, %v1429, 0
    %v1517 = vsel %vm1509, %v1430, 0
    %v1520 = vsel %vm1509, %v1431, 0
    %v1523 = vsel %vm1509, %v1432, 0
    %v1526 = vsel %vm1509, %v1433, 0
    %1528 = vmatpush.bf16.msra.mxu0 %v1398
    %1529 = vmatpush.bf16.msra.mxu0 %v1392
    %1530 = vmatpush.bf16.msra.mxu0 %v1386
    %1531 = vmatpush.bf16.msra.mxu0 %v1380
    %1532 = vmatpush.bf16.msra.mxu0 %v1374
    %1533 = vmatpush.bf16.msra.mxu0 %v1368
    %1534 = vmatpush.bf16.msra.mxu0 %v1362
    %1535 = vmatpush.bf16.msra.mxu0 %v1356
    %1536 = vmatmul.bf16.gmra.mxu0 %v1042
    %v1537 = vpop.f32.mrf.mxu0
    %v1538 = vadd.f32 0.0, %v1537
    %v1539 = vpop.f32.mrf.mxu0
    %1540 = vdwg.mxu0
    %1541 = vmatpush.bf16.msra.mxu0 0
    %1542 = vmatpush.bf16.msra.mxu0 0
    %1543 = vmatpush.bf16.msra.mxu0 0
    %1544 = vmatpush.bf16.msra.mxu0 %v1511
    %1545 = vmatpush.bf16.msra.mxu0 %v1422
    %1546 = vmatpush.bf16.msra.mxu0 %v1416
    %1547 = vmatpush.bf16.msra.mxu0 %v1410
    %1548 = vmatpush.bf16.msra.mxu0 %v1404
    %1549 = vmatmul.bf16.gmra.mxu0 %v1507
    %v1550 = vpop.f32.mrf.mxu0
    %v1551 = vadd.f32 %v1538, %v1550
    %v1552 = vpop.f32.mrf.mxu0
    %1553 = vdwg.mxu0
    %1554 = vmatpush.bf16.msra.mxu0 %v1399
    %1555 = vmatpush.bf16.msra.mxu0 %v1393
    %1556 = vmatpush.bf16.msra.mxu0 %v1387
    %1557 = vmatpush.bf16.msra.mxu0 %v1381
    %1558 = vmatpush.bf16.msra.mxu0 %v1375
    %1559 = vmatpush.bf16.msra.mxu0 %v1369
    %1560 = vmatpush.bf16.msra.mxu0 %v1363
    %1561 = vmatpush.bf16.msra.mxu0 %v1357
    %1562 = vmatmul.bf16.gmra.mxu0 %v1042
    %v1563 = vpop.f32.mrf.mxu0
    %v1564 = vadd.f32 0.0, %v1563
    %v1565 = vpop.f32.mrf.mxu0
    %1566 = vdwg.mxu0
    %1567 = vmatpush.bf16.msra.mxu0 0
    %1568 = vmatpush.bf16.msra.mxu0 0
    %1569 = vmatpush.bf16.msra.mxu0 0
    %1570 = vmatpush.bf16.msra.mxu0 %v1514
    %1571 = vmatpush.bf16.msra.mxu0 %v1423
    %1572 = vmatpush.bf16.msra.mxu0 %v1417
    %1573 = vmatpush.bf16.msra.mxu0 %v1411
    %1574 = vmatpush.bf16.msra.mxu0 %v1405
    %1575 = vmatmul.bf16.gmra.mxu0 %v1507
    %v1576 = vpop.f32.mrf.mxu0
    %v1577 = vadd.f32 %v1564, %v1576
    %v1578 = vpop.f32.mrf.mxu0
    %1579 = vdwg.mxu0
    %1580 = vmatpush.bf16.msra.mxu0 %v1400
    %1581 = vmatpush.bf16.msra.mxu0 %v1394
    %1582 = vmatpush.bf16.msra.mxu0 %v1388
    %1583 = vmatpush.bf16.msra.mxu0 %v1382
    %1584 = vmatpush.bf16.msra.mxu0 %v1376
    %1585 = vmatpush.bf16.msra.mxu0 %v1370
    %1586 = vmatpush.bf16.msra.mxu0 %v1364
    %1587 = vmatpush.bf16.msra.mxu0 %v1358
    %1588 = vmatmul.bf16.gmra.mxu0 %v1042
    %v1589 = vpop.f32.mrf.mxu0
    %v1590 = vadd.f32 0.0, %v1589
    %v1591 = vpop.f32.mrf.mxu0
    %1592 = vdwg.mxu0
    %1593 = vmatpush.bf16.msra.mxu0 0
    %1594 = vmatpush.bf16.msra.mxu0 0
    %1595 = vmatpush.bf16.msra.mxu0 0
    %1596 = vmatpush.bf16.msra.mxu0 %v1517
    %1597 = vmatpush.bf16.msra.mxu0 %v1424
    %1598 = vmatpush.bf16.msra.mxu0 %v1418
    %1599 = vmatpush.bf16.msra.mxu0 %v1412
    %1600 = vmatpush.bf16.msra.mxu0 %v1406
    %1601 = vmatmul.bf16.gmra.mxu0 %v1507
    %v1602 = vpop.f32.mrf.mxu0
    %v1603 = vadd.f32 %v1590, %v1602
    %v1604 = vpop.f32.mrf.mxu0
    %1605 = vdwg.mxu0
    %1606 = vmatpush.bf16.msra.mxu0 %v1401
    %1607 = vmatpush.bf16.msra.mxu0 %v1395
    %1608 = vmatpush.bf16.msra.mxu0 %v1389
    %1609 = vmatpush.bf16.msra.mxu0 %v1383
    %1610 = vmatpush.bf16.msra.mxu0 %v1377
    %1611 = vmatpush.bf16.msra.mxu0 %v1371
    %1612 = vmatpush.bf16.msra.mxu0 %v1365
    %1613 = vmatpush.bf16.msra.mxu0 %v1359
    %1614 = vmatmul.bf16.gmra.mxu0 %v1042
    %v1615 = vpop.f32.mrf.mxu0
    %v1616 = vadd.f32 0.0, %v1615
    %v1617 = vpop.f32.mrf.mxu0
    %1618 = vdwg.mxu0
    %1619 = vmatpush.bf16.msra.mxu0 0
    %1620 = vmatpush.bf16.msra.mxu0 0
    %1621 = vmatpush.bf16.msra.mxu0 0
    %1622 = vmatpush.bf16.msra.mxu0 %v1520
    %1623 = vmatpush.bf16.msra.mxu0 %v1425
    %1624 = vmatpush.bf16.msra.mxu0 %v1419
    %1625 = vmatpush.bf16.msra.mxu0 %v1413
    %1626 = vmatpush.bf16.msra.mxu0 %v1407
    %1627 = vmatmul.bf16.gmra.mxu0 %v1507
    %v1628 = vpop.f32.mrf.mxu0
    %v1629 = vadd.f32 %v1616, %v1628
    %v1630 = vpop.f32.mrf.mxu0
    %1631 = vdwg.mxu0
    %1632 = vmatpush.bf16.msra.mxu0 %v1402
    %1633 = vmatpush.bf16.msra.mxu0 %v1396
    %1634 = vmatpush.bf16.msra.mxu0 %v1390
    %1635 = vmatpush.bf16.msra.mxu0 %v1384
    %1636 = vmatpush.bf16.msra.mxu0 %v1378
    %1637 = vmatpush.bf16.msra.mxu0 %v1372
    %1638 = vmatpush.bf16.msra.mxu0 %v1366
    %1639 = vmatpush.bf16.msra.mxu0 %v1360
    %1640 = vmatmul.bf16.gmra.mxu0 %v1042
    %v1641 = vpop.f32.mrf.mxu0
    %v1642 = vadd.f32 0.0, %v1641
    %v1643 = vpop.f32.mrf.mxu0
    %1644 = vdwg.mxu0
    %1645 = vmatpush.bf16.msra.mxu0 0
    %1646 = vmatpush.bf16.msra.mxu0 0
    %1647 = vmatpush.bf16.msra.mxu0 0
    %1648 = vmatpush.bf16.msra.mxu0 %v1523
    %1649 = vmatpush.bf16.msra.mxu0 %v1426
    %1650 = vmatpush.bf16.msra.mxu0 %v1420
    %1651 = vmatpush.bf16.msra.mxu0 %v1414
    %1652 = vmatpush.bf16.msra.mxu0 %v1408
    %1653 = vmatmul.bf16.gmra.mxu0 %v1507
    %v1654 = vpop.f32.mrf.mxu0
    %v1655 = vadd.f32 %v1642, %v1654
    %v1656 = vpop.f32.mrf.mxu0
    %1657 = vdwg.mxu0
    %1658 = vmatpush.bf16.msra.mxu0 %v1403
    %1659 = vmatpush.bf16.msra.mxu0 %v1397
    %1660 = vmatpush.bf16.msra.mxu0 %v1391
    %1661 = vmatpush.bf16.msra.mxu0 %v1385
    %1662 = vmatpush.bf16.msra.mxu0 %v1379
    %1663 = vmatpush.bf16.msra.mxu0 %v1373
    %1664 = vmatpush.bf16.msra.mxu0 %v1367
    %1665 = vmatpush.bf16.msra.mxu0 %v1361
    %1666 = vmatmul.bf16.gmra.mxu0 %v1042
    %v1667 = vpop.f32.mrf.mxu0
    %v1668 = vadd.f32 0.0, %v1667
    %v1669 = vpop.f32.mrf.mxu0
    %1670 = vdwg.mxu0
    %1671 = vmatpush.bf16.msra.mxu0 0
    %1672 = vmatpush.bf16.msra.mxu0 0
    %1673 = vmatpush.bf16.msra.mxu0 0
    %1674 = vmatpush.bf16.msra.mxu0 %v1526
    %1675 = vmatpush.bf16.msra.mxu0 %v1427
    %1676 = vmatpush.bf16.msra.mxu0 %v1421
    %1677 = vmatpush.bf16.msra.mxu0 %v1415
    %1678 = vmatpush.bf16.msra.mxu0 %v1409
    %1679 = vmatmul.bf16.gmra.mxu0 %v1507
    %v1680 = vpop.f32.mrf.mxu0
    %v1681 = vadd.f32 %v1668, %v1680
    %v1682 = vpop.f32.mrf.mxu0
    %1683 = vdwg.mxu0
    %v1684 = vpack.c.bf16 %v1577, %v1551
    %v1685 = vpack.c.bf16 %v1629, %v1603
    %v1686 = vpack.c.bf16 %v1681, %v1655
    %v1687 = vld [vmem:[%s9] sm:$0xf]
    %v1688 = vld [vmem:[%s9 + $0x4] sm:$0xf]
    %v1689 = vld [vmem:[%s9 + $0x8] sm:$0xf]
    %v1690 = vld [vmem:[%s9 + $0xc] sm:$0xf]
    %v1691 = vld [vmem:[%s9 + $0x10] sm:$0xf]
    %v1692 = vld [vmem:[%s9 + $0x14] sm:$0xf]
    %v1693 = vld [vmem:[%s9 + $0x18] sm:$0xf]
    %v1694 = vld [vmem:[%s9 + $0x1c] sm:$0xf]
    %v1695 = vld [vmem:[%s9 + $0x20] sm:$0xf]
    %v1696 = vld [vmem:[%s9 + $0x24] sm:$0xf]
    %v1697 = vld [vmem:[%s9 + $0x28] sm:$0xf]
    %v1698 = vld [vmem:[%s9 + $0x2c] sm:$0xf]
    %v1699 = vld [vmem:[%s9 + $0x30] sm:$0xf]
    %v1700 = vld [vmem:[%s9 + $0x34] sm:$0xf]
    %v1701 = vld [vmem:[%s9 + $0x38] sm:$0xf]
    %v1702 = vld [vmem:[%s9 + $0x3c] sm:$0xf]
    %v1706 = vunpack.c.l.b16 %v1684
    %v1707 = vunpack.c.h.b16 %v1684
    %v1708 = vunpack.c.l.b16 %v1685
    %v1709 = vunpack.c.h.b16 %v1685
    %v1710 = vunpack.c.l.b16 %v1686
    %v1711 = vunpack.c.h.b16 %v1686
    %v1712 = vpack.c.b16 %v1706, %v1706
    %v1713 = vpack.c.b16 %v1707, %v1707
    %v1714 = vpack.c.b16 %v1708, %v1708
    %v1715 = vpack.c.b16 %v1709, %v1709
    %v1716 = vpack.c.b16 %v1710, %v1710
    %v1717 = vpack.c.b16 %v1711, %v1711
    %1718 = vrot.lane.b32.xlu0 %v1712, 127
    %v1719 = vpop.permute.xlu0 %1718
    %1720 = vrot.lane.b32.xlu0 %v1713, 127
    %v1721 = vpop.permute.xlu0 %1720
    %1722 = vrot.lane.b32.xlu0 %v1714, 127
    %v1723 = vpop.permute.xlu0 %1722
    %1724 = vrot.lane.b32.xlu0 %v1715, 127
    %v1725 = vpop.permute.xlu0 %1724
    %1726 = vrot.lane.b32.xlu0 %v1716, 127
    %v1727 = vpop.permute.xlu0 %1726
    %1728 = vrot.lane.b32.xlu0 %v1717, 127
    %v1729 = vpop.permute.xlu0 %1728
    %v1730 = vsel %vm292, %v1719, %v1721
    %v1731 = vsel %vm292, %v1721, %v1723
    %v1732 = vsel %vm292, %v1723, %v1725
    %v1733 = vsel %vm292, %v1725, %v1727
    %v1734 = vsel %vm292, %v1727, %v1729
    %vm1735 = vcmask 64512
    %v1737 = vsel %vm1735, %v1688, 0
    %vm1739 = vcmask 1043456
    %v1741 = vsel %vm1739, %v1730, 0
    %v1744 = vsel %vm1739, %v1731, 0
    %v1747 = vsel %vm1739, %v1732, 0
    %v1750 = vsel %vm1739, %v1733, 0
    %v1753 = vsel %vm1739, %v1734, 0
    %v1756 = vsel %vm1739, %v1729, 0
    %1758 = vmatpush.bf16.msra.mxu0 0
    %1759 = vmatpush.bf16.msra.mxu0 0
    %1760 = vmatpush.bf16.msra.mxu0 0
    %1761 = vmatpush.bf16.msra.mxu0 0
    %1762 = vmatpush.bf16.msra.mxu0 0
    %1763 = vmatpush.bf16.msra.mxu0 0
    %1764 = vmatpush.bf16.msra.mxu0 0
    %1765 = vmatpush.bf16.msra.mxu0 %v1741
    %1766 = vmatmul.bf16.gmra.mxu0 %v1737
    %v1767 = vpop.f32.mrf.mxu0
    %v1768 = vadd.f32 0.0, %v1767
    %v1769 = vpop.f32.mrf.mxu0
    %1770 = vdwg.mxu0
    %1771 = vmatpush.bf16.msra.mxu0 0
    %1772 = vmatpush.bf16.msra.mxu0 0
    %1773 = vmatpush.bf16.msra.mxu0 0
    %1774 = vmatpush.bf16.msra.mxu0 0
    %1775 = vmatpush.bf16.msra.mxu0 0
    %1776 = vmatpush.bf16.msra.mxu0 0
    %1777 = vmatpush.bf16.msra.mxu0 0
    %1778 = vmatpush.bf16.msra.mxu0 %v1744
    %1779 = vmatmul.bf16.gmra.mxu0 %v1737
    %v1780 = vpop.f32.mrf.mxu0
    %v1781 = vadd.f32 0.0, %v1780
    %v1782 = vpop.f32.mrf.mxu0
    %1783 = vdwg.mxu0
    %1784 = vmatpush.bf16.msra.mxu0 0
    %1785 = vmatpush.bf16.msra.mxu0 0
    %1786 = vmatpush.bf16.msra.mxu0 0
    %1787 = vmatpush.bf16.msra.mxu0 0
    %1788 = vmatpush.bf16.msra.mxu0 0
    %1789 = vmatpush.bf16.msra.mxu0 0
    %1790 = vmatpush.bf16.msra.mxu0 0
    %1791 = vmatpush.bf16.msra.mxu0 %v1747
    %1792 = vmatmul.bf16.gmra.mxu0 %v1737
    %v1793 = vpop.f32.mrf.mxu0
    %v1794 = vadd.f32 0.0, %v1793
    %v1795 = vpop.f32.mrf.mxu0
    %1796 = vdwg.mxu0
    %1797 = vmatpush.bf16.msra.mxu0 0
    %1798 = vmatpush.bf16.msra.mxu0 0
    %1799 = vmatpush.bf16.msra.mxu0 0
    %1800 = vmatpush.bf16.msra.mxu0 0
    %1801 = vmatpush.bf16.msra.mxu0 0
    %1802 = vmatpush.bf16.msra.mxu0 0
    %1803 = vmatpush.bf16.msra.mxu0 0
    %1804 = vmatpush.bf16.msra.mxu0 %v1750
    %1805 = vmatmul.bf16.gmra.mxu0 %v1737
    %v1806 = vpop.f32.mrf.mxu0
    %v1807 = vadd.f32 0.0, %v1806
    %v1808 = vpop.f32.mrf.mxu0
    %1809 = vdwg.mxu0
    %1810 = vmatpush.bf16.msra.mxu0 0
    %1811 = vmatpush.bf16.msra.mxu0 0
    %1812 = vmatpush.bf16.msra.mxu0 0
    %1813 = vmatpush.bf16.msra.mxu0 0
    %1814 = vmatpush.bf16.msra.mxu0 0
    %1815 = vmatpush.bf16.msra.mxu0 0
    %1816 = vmatpush.bf16.msra.mxu0 0
    %1817 = vmatpush.bf16.msra.mxu0 %v1753
    %1818 = vmatmul.bf16.gmra.mxu0 %v1737
    %v1819 = vpop.f32.mrf.mxu0
    %v1820 = vadd.f32 0.0, %v1819
    %v1821 = vpop.f32.mrf.mxu0
    %1822 = vdwg.mxu0
    %1823 = vmatpush.bf16.msra.mxu0 0
    %1824 = vmatpush.bf16.msra.mxu0 0
    %1825 = vmatpush.bf16.msra.mxu0 0
    %1826 = vmatpush.bf16.msra.mxu0 0
    %1827 = vmatpush.bf16.msra.mxu0 0
    %1828 = vmatpush.bf16.msra.mxu0 0
    %1829 = vmatpush.bf16.msra.mxu0 0
    %1830 = vmatpush.bf16.msra.mxu0 %v1756
    %1831 = vmatmul.bf16.gmra.mxu0 %v1737
    %v1832 = vpop.f32.mrf.mxu0
    %v1833 = vadd.f32 0.0, %v1832
    %v1834 = vpop.f32.mrf.mxu0
    %1835 = vdwg.mxu0
    %v1837 = vsel %vm1735, %v1687, 0
    %v1840 = vsel %vm1739, %v1712, 0
    %v1843 = vsel %vm1739, %v1713, 0
    %v1846 = vsel %vm1739, %v1714, 0
    %v1849 = vsel %vm1739, %v1715, 0
    %v1852 = vsel %vm1739, %v1716, 0
    %v1855 = vsel %vm1739, %v1717, 0
    %1857 = vmatpush.bf16.msra.mxu0 0
    %1858 = vmatpush.bf16.msra.mxu0 0
    %1859 = vmatpush.bf16.msra.mxu0 0
    %1860 = vmatpush.bf16.msra.mxu0 0
    %1861 = vmatpush.bf16.msra.mxu0 0
    %1862 = vmatpush.bf16.msra.mxu0 0
    %1863 = vmatpush.bf16.msra.mxu0 0
    %1864 = vmatpush.bf16.msra.mxu0 %v1840
    %1865 = vmatmul.bf16.gmra.mxu0 %v1837
    %v1866 = vpop.f32.mrf.mxu0
    %v1867 = vadd.f32 %v1768, %v1866
    %v1868 = vpop.f32.mrf.mxu0
    %1869 = vdwg.mxu0
    %1870 = vmatpush.bf16.msra.mxu0 0
    %1871 = vmatpush.bf16.msra.mxu0 0
    %1872 = vmatpush.bf16.msra.mxu0 0
    %1873 = vmatpush.bf16.msra.mxu0 0
    %1874 = vmatpush.bf16.msra.mxu0 0
    %1875 = vmatpush.bf16.msra.mxu0 0
    %1876 = vmatpush.bf16.msra.mxu0 0
    %1877 = vmatpush.bf16.msra.mxu0 %v1843
    %1878 = vmatmul.bf16.gmra.mxu0 %v1837
    %v1879 = vpop.f32.mrf.mxu0
    %v1880 = vadd.f32 %v1781, %v1879
    %v1881 = vpop.f32.mrf.mxu0
    %1882 = vdwg.mxu0
    %1883 = vmatpush.bf16.msra.mxu0 0
    %1884 = vmatpush.bf16.msra.mxu0 0
    %1885 = vmatpush.bf16.msra.mxu0 0
    %1886 = vmatpush.bf16.msra.mxu0 0
    %1887 = vmatpush.bf16.msra.mxu0 0
    %1888 = vmatpush.bf16.msra.mxu0 0
    %1889 = vmatpush.bf16.msra.mxu0 0
    %1890 = vmatpush.bf16.msra.mxu0 %v1846
    %1891 = vmatmul.bf16.gmra.mxu0 %v1837
    %v1892 = vpop.f32.mrf.mxu0
    %v1893 = vadd.f32 %v1794, %v1892
    %v1894 = vpop.f32.mrf.mxu0
    %1895 = vdwg.mxu0
    %1896 = vmatpush.bf16.msra.mxu0 0
    %1897 = vmatpush.bf16.msra.mxu0 0
    %1898 = vmatpush.bf16.msra.mxu0 0
    %1899 = vmatpush.bf16.msra.mxu0 0
    %1900 = vmatpush.bf16.msra.mxu0 0
    %1901 = vmatpush.bf16.msra.mxu0 0
    %1902 = vmatpush.bf16.msra.mxu0 0
    %1903 = vmatpush.bf16.msra.mxu0 %v1849
    %1904 = vmatmul.bf16.gmra.mxu0 %v1837
    %v1905 = vpop.f32.mrf.mxu0
    %v1906 = vadd.f32 %v1807, %v1905
    %v1907 = vpop.f32.mrf.mxu0
    %1908 = vdwg.mxu0
    %1909 = vmatpush.bf16.msra.mxu0 0
    %1910 = vmatpush.bf16.msra.mxu0 0
    %1911 = vmatpush.bf16.msra.mxu0 0
    %1912 = vmatpush.bf16.msra.mxu0 0
    %1913 = vmatpush.bf16.msra.mxu0 0
    %1914 = vmatpush.bf16.msra.mxu0 0
    %1915 = vmatpush.bf16.msra.mxu0 0
    %1916 = vmatpush.bf16.msra.mxu0 %v1852
    %1917 = vmatmul.bf16.gmra.mxu0 %v1837
    %v1918 = vpop.f32.mrf.mxu0
    %v1919 = vadd.f32 %v1820, %v1918
    %v1920 = vpop.f32.mrf.mxu0
    %1921 = vdwg.mxu0
    %1922 = vmatpush.bf16.msra.mxu0 0
    %1923 = vmatpush.bf16.msra.mxu0 0
    %1924 = vmatpush.bf16.msra.mxu0 0
    %1925 = vmatpush.bf16.msra.mxu0 0
    %1926 = vmatpush.bf16.msra.mxu0 0
    %1927 = vmatpush.bf16.msra.mxu0 0
    %1928 = vmatpush.bf16.msra.mxu0 0
    %1929 = vmatpush.bf16.msra.mxu0 %v1855
    %1930 = vmatmul.bf16.gmra.mxu0 %v1837
    %v1931 = vpop.f32.mrf.mxu0
    %v1932 = vadd.f32 %v1833, %v1931
    %v1933 = vpop.f32.mrf.mxu0
    %1934 = vdwg.mxu0
    %1935 = vrot.lane.b32.xlu0 %v1712, 126
    %v1936 = vpop.permute.xlu0 %1935
    %1937 = vrot.lane.b32.xlu0 %v1713, 126
    %v1938 = vpop.permute.xlu0 %1937
    %1939 = vrot.lane.b32.xlu0 %v1714, 126
    %v1940 = vpop.permute.xlu0 %1939
    %1941 = vrot.lane.b32.xlu0 %v1715, 126
    %v1942 = vpop.permute.xlu0 %1941
    %1943 = vrot.lane.b32.xlu0 %v1716, 126
    %v1944 = vpop.permute.xlu0 %1943
    %1945 = vrot.lane.b32.xlu0 %v1717, 126
    %v1946 = vpop.permute.xlu0 %1945
    %v1947 = vsel %vm369, %v1936, %v1938
    %v1948 = vsel %vm369, %v1938, %v1940
    %v1949 = vsel %vm369, %v1940, %v1942
    %v1950 = vsel %vm369, %v1942, %v1944
    %v1951 = vsel %vm369, %v1944, %v1946
    %v1953 = vsel %vm1735, %v1689, 0
    %v1956 = vsel %vm1739, %v1947, 0
    %v1959 = vsel %vm1739, %v1948, 0
    %v1962 = vsel %vm1739, %v1949, 0
    %v1965 = vsel %vm1739, %v1950, 0
    %v1968 = vsel %vm1739, %v1951, 0
    %v1971 = vsel %vm1739, %v1946, 0
    %1973 = vmatpush.bf16.msra.mxu0 0
    %1974 = vmatpush.bf16.msra.mxu0 0
    %1975 = vmatpush.bf16.msra.mxu0 0
    %1976 = vmatpush.bf16.msra.mxu0 0
    %1977 = vmatpush.bf16.msra.mxu0 0
    %1978 = vmatpush.bf16.msra.mxu0 0
    %1979 = vmatpush.bf16.msra.mxu0 0
    %1980 = vmatpush.bf16.msra.mxu0 %v1956
    %1981 = vmatmul.bf16.gmra.mxu0 %v1953
    %v1982 = vpop.f32.mrf.mxu0
    %v1983 = vadd.f32 0.0, %v1982
    %v1984 = vpop.f32.mrf.mxu0
    %1985 = vdwg.mxu0
    %1986 = vmatpush.bf16.msra.mxu0 0
    %1987 = vmatpush.bf16.msra.mxu0 0
    %1988 = vmatpush.bf16.msra.mxu0 0
    %1989 = vmatpush.bf16.msra.mxu0 0
    %1990 = vmatpush.bf16.msra.mxu0 0
    %1991 = vmatpush.bf16.msra.mxu0 0
    %1992 = vmatpush.bf16.msra.mxu0 0
    %1993 = vmatpush.bf16.msra.mxu0 %v1959
    %1994 = vmatmul.bf16.gmra.mxu0 %v1953
    %v1995 = vpop.f32.mrf.mxu0
    %v1996 = vadd.f32 0.0, %v1995
    %v1997 = vpop.f32.mrf.mxu0
    %1998 = vdwg.mxu0
    %1999 = vmatpush.bf16.msra.mxu0 0
    %2000 = vmatpush.bf16.msra.mxu0 0
    %2001 = vmatpush.bf16.msra.mxu0 0
    %2002 = vmatpush.bf16.msra.mxu0 0
    %2003 = vmatpush.bf16.msra.mxu0 0
    %2004 = vmatpush.bf16.msra.mxu0 0
    %2005 = vmatpush.bf16.msra.mxu0 0
    %2006 = vmatpush.bf16.msra.mxu0 %v1962
    %2007 = vmatmul.bf16.gmra.mxu0 %v1953
    %v2008 = vpop.f32.mrf.mxu0
    %v2009 = vadd.f32 0.0, %v2008
    %v2010 = vpop.f32.mrf.mxu0
    %2011 = vdwg.mxu0
    %2012 = vmatpush.bf16.msra.mxu0 0
    %2013 = vmatpush.bf16.msra.mxu0 0
    %2014 = vmatpush.bf16.msra.mxu0 0
    %2015 = vmatpush.bf16.msra.mxu0 0
    %2016 = vmatpush.bf16.msra.mxu0 0
    %2017 = vmatpush.bf16.msra.mxu0 0
    %2018 = vmatpush.bf16.msra.mxu0 0
    %2019 = vmatpush.bf16.msra.mxu0 %v1965
    %2020 = vmatmul.bf16.gmra.mxu0 %v1953
    %v2021 = vpop.f32.mrf.mxu0
    %v2022 = vadd.f32 0.0, %v2021
    %v2023 = vpop.f32.mrf.mxu0
    %2024 = vdwg.mxu0
    %2025 = vmatpush.bf16.msra.mxu0 0
    %2026 = vmatpush.bf16.msra.mxu0 0
    %2027 = vmatpush.bf16.msra.mxu0 0
    %2028 = vmatpush.bf16.msra.mxu0 0
    %2029 = vmatpush.bf16.msra.mxu0 0
    %2030 = vmatpush.bf16.msra.mxu0 0
    %2031 = vmatpush.bf16.msra.mxu0 0
    %2032 = vmatpush.bf16.msra.mxu0 %v1968
    %2033 = vmatmul.bf16.gmra.mxu0 %v1953
    %v2034 = vpop.f32.mrf.mxu0
    %v2035 = vadd.f32 0.0, %v2034
    %v2036 = vpop.f32.mrf.mxu0
    %2037 = vdwg.mxu0
    %2038 = vmatpush.bf16.msra.mxu0 0
    %2039 = vmatpush.bf16.msra.mxu0 0
    %2040 = vmatpush.bf16.msra.mxu0 0
    %2041 = vmatpush.bf16.msra.mxu0 0
    %2042 = vmatpush.bf16.msra.mxu0 0
    %2043 = vmatpush.bf16.msra.mxu0 0
    %2044 = vmatpush.bf16.msra.mxu0 0
    %2045 = vmatpush.bf16.msra.mxu0 %v1971
    %2046 = vmatmul.bf16.gmra.mxu0 %v1953
    %v2047 = vpop.f32.mrf.mxu0
    %v2048 = vadd.f32 0.0, %v2047
    %v2049 = vpop.f32.mrf.mxu0
    %2050 = vdwg.mxu0
    %v2051 = vadd.f32 %v1867, %v1983
    %v2052 = vadd.f32 %v1880, %v1996
    %v2053 = vadd.f32 %v1893, %v2009
    %v2054 = vadd.f32 %v1906, %v2022
    %v2055 = vadd.f32 %v1919, %v2035
    %v2056 = vadd.f32 %v1932, %v2048
    %2057 = vrot.lane.b32.xlu0 %v1712, 125
    %v2058 = vpop.permute.xlu0 %2057
    %2059 = vrot.lane.b32.xlu0 %v1713, 125
    %v2060 = vpop.permute.xlu0 %2059
    %2061 = vrot.lane.b32.xlu0 %v1714, 125
    %v2062 = vpop.permute.xlu0 %2061
    %2063 = vrot.lane.b32.xlu0 %v1715, 125
    %v2064 = vpop.permute.xlu0 %2063
    %2065 = vrot.lane.b32.xlu0 %v1716, 125
    %v2066 = vpop.permute.xlu0 %2065
    %2067 = vrot.lane.b32.xlu0 %v1717, 125
    %v2068 = vpop.permute.xlu0 %2067
    %v2069 = vsel %vm412, %v2058, %v2060
    %v2070 = vsel %vm412, %v2060, %v2062
    %v2071 = vsel %vm412, %v2062, %v2064
    %v2072 = vsel %vm412, %v2064, %v2066
    %v2073 = vsel %vm412, %v2066, %v2068
    %v2075 = vsel %vm1735, %v1690, 0
    %v2078 = vsel %vm1739, %v2069, 0
    %v2081 = vsel %vm1739, %v2070, 0
    %v2084 = vsel %vm1739, %v2071, 0
    %v2087 = vsel %vm1739, %v2072, 0
    %v2090 = vsel %vm1739, %v2073, 0
    %v2093 = vsel %vm1739, %v2068, 0
    %2095 = vmatpush.bf16.msra.mxu0 0
    %2096 = vmatpush.bf16.msra.mxu0 0
    %2097 = vmatpush.bf16.msra.mxu0 0
    %2098 = vmatpush.bf16.msra.mxu0 0
    %2099 = vmatpush.bf16.msra.mxu0 0
    %2100 = vmatpush.bf16.msra.mxu0 0
    %2101 = vmatpush.bf16.msra.mxu0 0
    %2102 = vmatpush.bf16.msra.mxu0 %v2078
    %2103 = vmatmul.bf16.gmra.mxu0 %v2075
    %v2104 = vpop.f32.mrf.mxu0
    %v2105 = vadd.f32 0.0, %v2104
    %v2106 = vpop.f32.mrf.mxu0
    %2107 = vdwg.mxu0
    %2108 = vmatpush.bf16.msra.mxu0 0
    %2109 = vmatpush.bf16.msra.mxu0 0
    %2110 = vmatpush.bf16.msra.mxu0 0
    %2111 = vmatpush.bf16.msra.mxu0 0
    %2112 = vmatpush.bf16.msra.mxu0 0
    %2113 = vmatpush.bf16.msra.mxu0 0
    %2114 = vmatpush.bf16.msra.mxu0 0
    %2115 = vmatpush.bf16.msra.mxu0 %v2081
    %2116 = vmatmul.bf16.gmra.mxu0 %v2075
    %v2117 = vpop.f32.mrf.mxu0
    %v2118 = vadd.f32 0.0, %v2117
    %v2119 = vpop.f32.mrf.mxu0
    %2120 = vdwg.mxu0
    %2121 = vmatpush.bf16.msra.mxu0 0
    %2122 = vmatpush.bf16.msra.mxu0 0
    %2123 = vmatpush.bf16.msra.mxu0 0
    %2124 = vmatpush.bf16.msra.mxu0 0
    %2125 = vmatpush.bf16.msra.mxu0 0
    %2126 = vmatpush.bf16.msra.mxu0 0
    %2127 = vmatpush.bf16.msra.mxu0 0
    %2128 = vmatpush.bf16.msra.mxu0 %v2084
    %2129 = vmatmul.bf16.gmra.mxu0 %v2075
    %v2130 = vpop.f32.mrf.mxu0
    %v2131 = vadd.f32 0.0, %v2130
    %v2132 = vpop.f32.mrf.mxu0
    %2133 = vdwg.mxu0
    %2134 = vmatpush.bf16.msra.mxu0 0
    %2135 = vmatpush.bf16.msra.mxu0 0
    %2136 = vmatpush.bf16.msra.mxu0 0
    %2137 = vmatpush.bf16.msra.mxu0 0
    %2138 = vmatpush.bf16.msra.mxu0 0
    %2139 = vmatpush.bf16.msra.mxu0 0
    %2140 = vmatpush.bf16.msra.mxu0 0
    %2141 = vmatpush.bf16.msra.mxu0 %v2087
    %2142 = vmatmul.bf16.gmra.mxu0 %v2075
    %v2143 = vpop.f32.mrf.mxu0
    %v2144 = vadd.f32 0.0, %v2143
    %v2145 = vpop.f32.mrf.mxu0
    %2146 = vdwg.mxu0
    %2147 = vmatpush.bf16.msra.mxu0 0
    %2148 = vmatpush.bf16.msra.mxu0 0
    %2149 = vmatpush.bf16.msra.mxu0 0
    %2150 = vmatpush.bf16.msra.mxu0 0
    %2151 = vmatpush.bf16.msra.mxu0 0
    %2152 = vmatpush.bf16.msra.mxu0 0
    %2153 = vmatpush.bf16.msra.mxu0 0
    %2154 = vmatpush.bf16.msra.mxu0 %v2090
    %2155 = vmatmul.bf16.gmra.mxu0 %v2075
    %v2156 = vpop.f32.mrf.mxu0
    %v2157 = vadd.f32 0.0, %v2156
    %v2158 = vpop.f32.mrf.mxu0
    %2159 = vdwg.mxu0
    %2160 = vmatpush.bf16.msra.mxu0 0
    %2161 = vmatpush.bf16.msra.mxu0 0
    %2162 = vmatpush.bf16.msra.mxu0 0
    %2163 = vmatpush.bf16.msra.mxu0 0
    %2164 = vmatpush.bf16.msra.mxu0 0
    %2165 = vmatpush.bf16.msra.mxu0 0
    %2166 = vmatpush.bf16.msra.mxu0 0
    %2167 = vmatpush.bf16.msra.mxu0 %v2093
    %2168 = vmatmul.bf16.gmra.mxu0 %v2075
    %v2169 = vpop.f32.mrf.mxu0
    %v2170 = vadd.f32 0.0, %v2169
    %v2171 = vpop.f32.mrf.mxu0
    %2172 = vdwg.mxu0
    %v2173 = vadd.f32 %v2051, %v2105
    %v2174 = vadd.f32 %v2052, %v2118
    %v2175 = vadd.f32 %v2053, %v2131
    %v2176 = vadd.f32 %v2054, %v2144
    %v2177 = vadd.f32 %v2055, %v2157
    %v2178 = vadd.f32 %v2056, %v2170
    %2179 = vrot.lane.b32.xlu0 %v1712, 109
    %v2180 = vpop.permute.xlu0 %2179
    %2181 = vrot.lane.b32.xlu0 %v1713, 109
    %v2182 = vpop.permute.xlu0 %2181
    %2183 = vrot.lane.b32.xlu0 %v1714, 109
    %v2184 = vpop.permute.xlu0 %2183
    %2185 = vrot.lane.b32.xlu0 %v1715, 109
    %v2186 = vpop.permute.xlu0 %2185
    %2187 = vrot.lane.b32.xlu0 %v1716, 109
    %v2188 = vpop.permute.xlu0 %2187
    %2189 = vrot.lane.b32.xlu0 %v1717, 109
    %v2190 = vpop.permute.xlu0 %2189
    %vm2191 = vcmask 891904
    %v2192 = vsel %vm2191, %v2180, %v2182
    %v2193 = vsel %vm2191, %v2182, %v2184
    %v2194 = vsel %vm2191, %v2184, %v2186
    %v2195 = vsel %vm2191, %v2186, %v2188
    %v2196 = vsel %vm2191, %v2188, %v2190
    %v2198 = vsel %vm1735, %v1691, 0
    %v2201 = vsel %vm1739, %v2192, 0
    %v2204 = vsel %vm1739, %v2193, 0
    %v2207 = vsel %vm1739, %v2194, 0
    %v2210 = vsel %vm1739, %v2195, 0
    %v2213 = vsel %vm1739, %v2196, 0
    %v2216 = vsel %vm1739, %v2190, 0
    %2218 = vmatpush.bf16.msra.mxu0 0
    %2219 = vmatpush.bf16.msra.mxu0 0
    %2220 = vmatpush.bf16.msra.mxu0 0
    %2221 = vmatpush.bf16.msra.mxu0 0
    %2222 = vmatpush.bf16.msra.mxu0 0
    %2223 = vmatpush.bf16.msra.mxu0 0
    %2224 = vmatpush.bf16.msra.mxu0 0
    %2225 = vmatpush.bf16.msra.mxu0 %v2201
    %2226 = vmatmul.bf16.gmra.mxu0 %v2198
    %v2227 = vpop.f32.mrf.mxu0
    %v2228 = vadd.f32 0.0, %v2227
    %v2229 = vpop.f32.mrf.mxu0
    %2230 = vdwg.mxu0
    %2231 = vmatpush.bf16.msra.mxu0 0
    %2232 = vmatpush.bf16.msra.mxu0 0
    %2233 = vmatpush.bf16.msra.mxu0 0
    %2234 = vmatpush.bf16.msra.mxu0 0
    %2235 = vmatpush.bf16.msra.mxu0 0
    %2236 = vmatpush.bf16.msra.mxu0 0
    %2237 = vmatpush.bf16.msra.mxu0 0
    %2238 = vmatpush.bf16.msra.mxu0 %v2204
    %2239 = vmatmul.bf16.gmra.mxu0 %v2198
    %v2240 = vpop.f32.mrf.mxu0
    %v2241 = vadd.f32 0.0, %v2240
    %v2242 = vpop.f32.mrf.mxu0
    %2243 = vdwg.mxu0
    %2244 = vmatpush.bf16.msra.mxu0 0
    %2245 = vmatpush.bf16.msra.mxu0 0
    %2246 = vmatpush.bf16.msra.mxu0 0
    %2247 = vmatpush.bf16.msra.mxu0 0
    %2248 = vmatpush.bf16.msra.mxu0 0
    %2249 = vmatpush.bf16.msra.mxu0 0
    %2250 = vmatpush.bf16.msra.mxu0 0
    %2251 = vmatpush.bf16.msra.mxu0 %v2207
    %2252 = vmatmul.bf16.gmra.mxu0 %v2198
    %v2253 = vpop.f32.mrf.mxu0
    %v2254 = vadd.f32 0.0, %v2253
    %v2255 = vpop.f32.mrf.mxu0
    %2256 = vdwg.mxu0
    %2257 = vmatpush.bf16.msra.mxu0 0
    %2258 = vmatpush.bf16.msra.mxu0 0
    %2259 = vmatpush.bf16.msra.mxu0 0
    %2260 = vmatpush.bf16.msra.mxu0 0
    %2261 = vmatpush.bf16.msra.mxu0 0
    %2262 = vmatpush.bf16.msra.mxu0 0
    %2263 = vmatpush.bf16.msra.mxu0 0
    %2264 = vmatpush.bf16.msra.mxu0 %v2210
    %2265 = vmatmul.bf16.gmra.mxu0 %v2198
    %v2266 = vpop.f32.mrf.mxu0
    %v2267 = vadd.f32 0.0, %v2266
    %v2268 = vpop.f32.mrf.mxu0
    %2269 = vdwg.mxu0
    %2270 = vmatpush.bf16.msra.mxu0 0
    %2271 = vmatpush.bf16.msra.mxu0 0
    %2272 = vmatpush.bf16.msra.mxu0 0
    %2273 = vmatpush.bf16.msra.mxu0 0
    %2274 = vmatpush.bf16.msra.mxu0 0
    %2275 = vmatpush.bf16.msra.mxu0 0
    %2276 = vmatpush.bf16.msra.mxu0 0
    %2277 = vmatpush.bf16.msra.mxu0 %v2213
    %2278 = vmatmul.bf16.gmra.mxu0 %v2198
    %v2279 = vpop.f32.mrf.mxu0
    %v2280 = vadd.f32 0.0, %v2279
    %v2281 = vpop.f32.mrf.mxu0
    %2282 = vdwg.mxu0
    %2283 = vmatpush.bf16.msra.mxu0 0
    %2284 = vmatpush.bf16.msra.mxu0 0
    %2285 = vmatpush.bf16.msra.mxu0 0
    %2286 = vmatpush.bf16.msra.mxu0 0
    %2287 = vmatpush.bf16.msra.mxu0 0
    %2288 = vmatpush.bf16.msra.mxu0 0
    %2289 = vmatpush.bf16.msra.mxu0 0
    %2290 = vmatpush.bf16.msra.mxu0 %v2216
    %2291 = vmatmul.bf16.gmra.mxu0 %v2198
    %v2292 = vpop.f32.mrf.mxu0
    %v2293 = vadd.f32 0.0, %v2292
    %v2294 = vpop.f32.mrf.mxu0
    %2295 = vdwg.mxu0
    %v2296 = vadd.f32 %v2173, %v2228
    %v2297 = vadd.f32 %v2174, %v2241
    %v2298 = vadd.f32 %v2175, %v2254
    %v2299 = vadd.f32 %v2176, %v2267
    %v2300 = vadd.f32 %v2177, %v2280
    %v2301 = vadd.f32 %v2178, %v2293
    %2302 = vrot.lane.b32.xlu0 %v1712, 108
    %v2303 = vpop.permute.xlu0 %2302
    %2304 = vrot.lane.b32.xlu0 %v1713, 108
    %v2305 = vpop.permute.xlu0 %2304
    %2306 = vrot.lane.b32.xlu0 %v1714, 108
    %v2307 = vpop.permute.xlu0 %2306
    %2308 = vrot.lane.b32.xlu0 %v1715, 108
    %v2309 = vpop.permute.xlu0 %2308
    %2310 = vrot.lane.b32.xlu0 %v1716, 108
    %v2311 = vpop.permute.xlu0 %2310
    %2312 = vrot.lane.b32.xlu0 %v1717, 108
    %v2313 = vpop.permute.xlu0 %2312
    %vm2314 = vcmask 883712
    %v2315 = vsel %vm2314, %v2303, %v2305
    %v2316 = vsel %vm2314, %v2305, %v2307
    %v2317 = vsel %vm2314, %v2307, %v2309
    %v2318 = vsel %vm2314, %v2309, %v2311
    %v2319 = vsel %vm2314, %v2311, %v2313
    %v2321 = vsel %vm1735, %v1692, 0
    %v2324 = vsel %vm1739, %v2315, 0
    %v2327 = vsel %vm1739, %v2316, 0
    %v2330 = vsel %vm1739, %v2317, 0
    %v2333 = vsel %vm1739, %v2318, 0
    %v2336 = vsel %vm1739, %v2319, 0
    %v2339 = vsel %vm1739, %v2313, 0
    %2341 = vmatpush.bf16.msra.mxu0 0
    %2342 = vmatpush.bf16.msra.mxu0 0
    %2343 = vmatpush.bf16.msra.mxu0 0
    %2344 = vmatpush.bf16.msra.mxu0 0
    %2345 = vmatpush.bf16.msra.mxu0 0
    %2346 = vmatpush.bf16.msra.mxu0 0
    %2347 = vmatpush.bf16.msra.mxu0 0
    %2348 = vmatpush.bf16.msra.mxu0 %v2324
    %2349 = vmatmul.bf16.gmra.mxu0 %v2321
    %v2350 = vpop.f32.mrf.mxu0
    %v2351 = vadd.f32 0.0, %v2350
    %v2352 = vpop.f32.mrf.mxu0
    %2353 = vdwg.mxu0
    %2354 = vmatpush.bf16.msra.mxu0 0
    %2355 = vmatpush.bf16.msra.mxu0 0
    %2356 = vmatpush.bf16.msra.mxu0 0
    %2357 = vmatpush.bf16.msra.mxu0 0
    %2358 = vmatpush.bf16.msra.mxu0 0
    %2359 = vmatpush.bf16.msra.mxu0 0
    %2360 = vmatpush.bf16.msra.mxu0 0
    %2361 = vmatpush.bf16.msra.mxu0 %v2327
    %2362 = vmatmul.bf16.gmra.mxu0 %v2321
    %v2363 = vpop.f32.mrf.mxu0
    %v2364 = vadd.f32 0.0, %v2363
    %v2365 = vpop.f32.mrf.mxu0
    %2366 = vdwg.mxu0
    %2367 = vmatpush.bf16.msra.mxu0 0
    %2368 = vmatpush.bf16.msra.mxu0 0
    %2369 = vmatpush.bf16.msra.mxu0 0
    %2370 = vmatpush.bf16.msra.mxu0 0
    %2371 = vmatpush.bf16.msra.mxu0 0
    %2372 = vmatpush.bf16.msra.mxu0 0
    %2373 = vmatpush.bf16.msra.mxu0 0
    %2374 = vmatpush.bf16.msra.mxu0 %v2330
    %2375 = vmatmul.bf16.gmra.mxu0 %v2321
    %v2376 = vpop.f32.mrf.mxu0
    %v2377 = vadd.f32 0.0, %v2376
    %v2378 = vpop.f32.mrf.mxu0
    %2379 = vdwg.mxu0
    %2380 = vmatpush.bf16.msra.mxu0 0
    %2381 = vmatpush.bf16.msra.mxu0 0
    %2382 = vmatpush.bf16.msra.mxu0 0
    %2383 = vmatpush.bf16.msra.mxu0 0
    %2384 = vmatpush.bf16.msra.mxu0 0
    %2385 = vmatpush.bf16.msra.mxu0 0
    %2386 = vmatpush.bf16.msra.mxu0 0
    %2387 = vmatpush.bf16.msra.mxu0 %v2333
    %2388 = vmatmul.bf16.gmra.mxu0 %v2321
    %v2389 = vpop.f32.mrf.mxu0
    %v2390 = vadd.f32 0.0, %v2389
    %v2391 = vpop.f32.mrf.mxu0
    %2392 = vdwg.mxu0
    %2393 = vmatpush.bf16.msra.mxu0 0
    %2394 = vmatpush.bf16.msra.mxu0 0
    %2395 = vmatpush.bf16.msra.mxu0 0
    %2396 = vmatpush.bf16.msra.mxu0 0
    %2397 = vmatpush.bf16.msra.mxu0 0
    %2398 = vmatpush.bf16.msra.mxu0 0
    %2399 = vmatpush.bf16.msra.mxu0 0
    %2400 = vmatpush.bf16.msra.mxu0 %v2336
    %2401 = vmatmul.bf16.gmra.mxu0 %v2321
    %v2402 = vpop.f32.mrf.mxu0
    %v2403 = vadd.f32 0.0, %v2402
    %v2404 = vpop.f32.mrf.mxu0
    %2405 = vdwg.mxu0
    %2406 = vmatpush.bf16.msra.mxu0 0
    %2407 = vmatpush.bf16.msra.mxu0 0
    %2408 = vmatpush.bf16.msra.mxu0 0
    %2409 = vmatpush.bf16.msra.mxu0 0
    %2410 = vmatpush.bf16.msra.mxu0 0
    %2411 = vmatpush.bf16.msra.mxu0 0
    %2412 = vmatpush.bf16.msra.mxu0 0
    %2413 = vmatpush.bf16.msra.mxu0 %v2339
    %2414 = vmatmul.bf16.gmra.mxu0 %v2321
    %v2415 = vpop.f32.mrf.mxu0
    %v2416 = vadd.f32 0.0, %v2415
    %v2417 = vpop.f32.mrf.mxu0
    %2418 = vdwg.mxu0
    %v2419 = vadd.f32 %v2296, %v2351
    %v2420 = vadd.f32 %v2297, %v2364
    %v2421 = vadd.f32 %v2298, %v2377
    %v2422 = vadd.f32 %v2299, %v2390
    %v2423 = vadd.f32 %v2300, %v2403
    %v2424 = vadd.f32 %v2301, %v2416
    %2425 = vrot.lane.b32.xlu0 %v1712, 107
    %v2426 = vpop.permute.xlu0 %2425
    %2427 = vrot.lane.b32.xlu0 %v1713, 107
    %v2428 = vpop.permute.xlu0 %2427
    %2429 = vrot.lane.b32.xlu0 %v1714, 107
    %v2430 = vpop.permute.xlu0 %2429
    %2431 = vrot.lane.b32.xlu0 %v1715, 107
    %v2432 = vpop.permute.xlu0 %2431
    %2433 = vrot.lane.b32.xlu0 %v1716, 107
    %v2434 = vpop.permute.xlu0 %2433
    %2435 = vrot.lane.b32.xlu0 %v1717, 107
    %v2436 = vpop.permute.xlu0 %2435
    %vm2437 = vcmask 875520
    %v2438 = vsel %vm2437, %v2426, %v2428
    %v2439 = vsel %vm2437, %v2428, %v2430
    %v2440 = vsel %vm2437, %v2430, %v2432
    %v2441 = vsel %vm2437, %v2432, %v2434
    %v2442 = vsel %vm2437, %v2434, %v2436
    %v2444 = vsel %vm1735, %v1693, 0
    %v2447 = vsel %vm1739, %v2438, 0
    %v2450 = vsel %vm1739, %v2439, 0
    %v2453 = vsel %vm1739, %v2440, 0
    %v2456 = vsel %vm1739, %v2441, 0
    %v2459 = vsel %vm1739, %v2442, 0
    %v2462 = vsel %vm1739, %v2436, 0
    %2464 = vmatpush.bf16.msra.mxu0 0
    %2465 = vmatpush.bf16.msra.mxu0 0
    %2466 = vmatpush.bf16.msra.mxu0 0
    %2467 = vmatpush.bf16.msra.mxu0 0
    %2468 = vmatpush.bf16.msra.mxu0 0
    %2469 = vmatpush.bf16.msra.mxu0 0
    %2470 = vmatpush.bf16.msra.mxu0 0
    %2471 = vmatpush.bf16.msra.mxu0 %v2447
    %2472 = vmatmul.bf16.gmra.mxu0 %v2444
    %v2473 = vpop.f32.mrf.mxu0
    %v2474 = vadd.f32 0.0, %v2473
    %v2475 = vpop.f32.mrf.mxu0
    %2476 = vdwg.mxu0
    %2477 = vmatpush.bf16.msra.mxu0 0
    %2478 = vmatpush.bf16.msra.mxu0 0
    %2479 = vmatpush.bf16.msra.mxu0 0
    %2480 = vmatpush.bf16.msra.mxu0 0
    %2481 = vmatpush.bf16.msra.mxu0 0
    %2482 = vmatpush.bf16.msra.mxu0 0
    %2483 = vmatpush.bf16.msra.mxu0 0
    %2484 = vmatpush.bf16.msra.mxu0 %v2450
    %2485 = vmatmul.bf16.gmra.mxu0 %v2444
    %v2486 = vpop.f32.mrf.mxu0
    %v2487 = vadd.f32 0.0, %v2486
    %v2488 = vpop.f32.mrf.mxu0
    %2489 = vdwg.mxu0
    %2490 = vmatpush.bf16.msra.mxu0 0
    %2491 = vmatpush.bf16.msra.mxu0 0
    %2492 = vmatpush.bf16.msra.mxu0 0
    %2493 = vmatpush.bf16.msra.mxu0 0
    %2494 = vmatpush.bf16.msra.mxu0 0
    %2495 = vmatpush.bf16.msra.mxu0 0
    %2496 = vmatpush.bf16.msra.mxu0 0
    %2497 = vmatpush.bf16.msra.mxu0 %v2453
    %2498 = vmatmul.bf16.gmra.mxu0 %v2444
    %v2499 = vpop.f32.mrf.mxu0
    %v2500 = vadd.f32 0.0, %v2499
    %v2501 = vpop.f32.mrf.mxu0
    %2502 = vdwg.mxu0
    %2503 = vmatpush.bf16.msra.mxu0 0
    %2504 = vmatpush.bf16.msra.mxu0 0
    %2505 = vmatpush.bf16.msra.mxu0 0
    %2506 = vmatpush.bf16.msra.mxu0 0
    %2507 = vmatpush.bf16.msra.mxu0 0
    %2508 = vmatpush.bf16.msra.mxu0 0
    %2509 = vmatpush.bf16.msra.mxu0 0
    %2510 = vmatpush.bf16.msra.mxu0 %v2456
    %2511 = vmatmul.bf16.gmra.mxu0 %v2444
    %v2512 = vpop.f32.mrf.mxu0
    %v2513 = vadd.f32 0.0, %v2512
    %v2514 = vpop.f32.mrf.mxu0
    %2515 = vdwg.mxu0
    %2516 = vmatpush.bf16.msra.mxu0 0
    %2517 = vmatpush.bf16.msra.mxu0 0
    %2518 = vmatpush.bf16.msra.mxu0 0
    %2519 = vmatpush.bf16.msra.mxu0 0
    %2520 = vmatpush.bf16.msra.mxu0 0
    %2521 = vmatpush.bf16.msra.mxu0 0
    %2522 = vmatpush.bf16.msra.mxu0 0
    %2523 = vmatpush.bf16.msra.mxu0 %v2459
    %2524 = vmatmul.bf16.gmra.mxu0 %v2444
    %v2525 = vpop.f32.mrf.mxu0
    %v2526 = vadd.f32 0.0, %v2525
    %v2527 = vpop.f32.mrf.mxu0
    %2528 = vdwg.mxu0
    %2529 = vmatpush.bf16.msra.mxu0 0
    %2530 = vmatpush.bf16.msra.mxu0 0
    %2531 = vmatpush.bf16.msra.mxu0 0
    %2532 = vmatpush.bf16.msra.mxu0 0
    %2533 = vmatpush.bf16.msra.mxu0 0
    %2534 = vmatpush.bf16.msra.mxu0 0
    %2535 = vmatpush.bf16.msra.mxu0 0
    %2536 = vmatpush.bf16.msra.mxu0 %v2462
    %2537 = vmatmul.bf16.gmra.mxu0 %v2444
    %v2538 = vpop.f32.mrf.mxu0
    %v2539 = vadd.f32 0.0, %v2538
    %v2540 = vpop.f32.mrf.mxu0
    %2541 = vdwg.mxu0
    %v2542 = vadd.f32 %v2419, %v2474
    %v2543 = vadd.f32 %v2420, %v2487
    %v2544 = vadd.f32 %v2421, %v2500
    %v2545 = vadd.f32 %v2422, %v2513
    %v2546 = vadd.f32 %v2423, %v2526
    %v2547 = vadd.f32 %v2424, %v2539
    %2548 = vrot.lane.b32.xlu0 %v1712, 106
    %v2549 = vpop.permute.xlu0 %2548
    %2550 = vrot.lane.b32.xlu0 %v1713, 106
    %v2551 = vpop.permute.xlu0 %2550
    %2552 = vrot.lane.b32.xlu0 %v1714, 106
    %v2553 = vpop.permute.xlu0 %2552
    %2554 = vrot.lane.b32.xlu0 %v1715, 106
    %v2555 = vpop.permute.xlu0 %2554
    %2556 = vrot.lane.b32.xlu0 %v1716, 106
    %v2557 = vpop.permute.xlu0 %2556
    %2558 = vrot.lane.b32.xlu0 %v1717, 106
    %v2559 = vpop.permute.xlu0 %2558
    %v2560 = vsel %vm627, %v2549, %v2551
    %v2561 = vsel %vm627, %v2551, %v2553
    %v2562 = vsel %vm627, %v2553, %v2555
    %v2563 = vsel %vm627, %v2555, %v2557
    %v2564 = vsel %vm627, %v2557, %v2559
    %v2566 = vsel %vm1735, %v1694, 0
    %v2569 = vsel %vm1739, %v2560, 0
    %v2572 = vsel %vm1739, %v2561, 0
    %v2575 = vsel %vm1739, %v2562, 0
    %v2578 = vsel %vm1739, %v2563, 0
    %v2581 = vsel %vm1739, %v2564, 0
    %v2584 = vsel %vm1739, %v2559, 0
    %2586 = vmatpush.bf16.msra.mxu0 0
    %2587 = vmatpush.bf16.msra.mxu0 0
    %2588 = vmatpush.bf16.msra.mxu0 0
    %2589 = vmatpush.bf16.msra.mxu0 0
    %2590 = vmatpush.bf16.msra.mxu0 0
    %2591 = vmatpush.bf16.msra.mxu0 0
    %2592 = vmatpush.bf16.msra.mxu0 0
    %2593 = vmatpush.bf16.msra.mxu0 %v2569
    %2594 = vmatmul.bf16.gmra.mxu0 %v2566
    %v2595 = vpop.f32.mrf.mxu0
    %v2596 = vadd.f32 0.0, %v2595
    %v2597 = vpop.f32.mrf.mxu0
    %2598 = vdwg.mxu0
    %2599 = vmatpush.bf16.msra.mxu0 0
    %2600 = vmatpush.bf16.msra.mxu0 0
    %2601 = vmatpush.bf16.msra.mxu0 0
    %2602 = vmatpush.bf16.msra.mxu0 0
    %2603 = vmatpush.bf16.msra.mxu0 0
    %2604 = vmatpush.bf16.msra.mxu0 0
    %2605 = vmatpush.bf16.msra.mxu0 0
    %2606 = vmatpush.bf16.msra.mxu0 %v2572
    %2607 = vmatmul.bf16.gmra.mxu0 %v2566
    %v2608 = vpop.f32.mrf.mxu0
    %v2609 = vadd.f32 0.0, %v2608
    %v2610 = vpop.f32.mrf.mxu0
    %2611 = vdwg.mxu0
    %2612 = vmatpush.bf16.msra.mxu0 0
    %2613 = vmatpush.bf16.msra.mxu0 0
    %2614 = vmatpush.bf16.msra.mxu0 0
    %2615 = vmatpush.bf16.msra.mxu0 0
    %2616 = vmatpush.bf16.msra.mxu0 0
    %2617 = vmatpush.bf16.msra.mxu0 0
    %2618 = vmatpush.bf16.msra.mxu0 0
    %2619 = vmatpush.bf16.msra.mxu0 %v2575
    %2620 = vmatmul.bf16.gmra.mxu0 %v2566
    %v2621 = vpop.f32.mrf.mxu0
    %v2622 = vadd.f32 0.0, %v2621
    %v2623 = vpop.f32.mrf.mxu0
    %2624 = vdwg.mxu0
    %2625 = vmatpush.bf16.msra.mxu0 0
    %2626 = vmatpush.bf16.msra.mxu0 0
    %2627 = vmatpush.bf16.msra.mxu0 0
    %2628 = vmatpush.bf16.msra.mxu0 0
    %2629 = vmatpush.bf16.msra.mxu0 0
    %2630 = vmatpush.bf16.msra.mxu0 0
    %2631 = vmatpush.bf16.msra.mxu0 0
    %2632 = vmatpush.bf16.msra.mxu0 %v2578
    %2633 = vmatmul.bf16.gmra.mxu0 %v2566
    %v2634 = vpop.f32.mrf.mxu0
    %v2635 = vadd.f32 0.0, %v2634
    %v2636 = vpop.f32.mrf.mxu0
    %2637 = vdwg.mxu0
    %2638 = vmatpush.bf16.msra.mxu0 0
    %2639 = vmatpush.bf16.msra.mxu0 0
    %2640 = vmatpush.bf16.msra.mxu0 0
    %2641 = vmatpush.bf16.msra.mxu0 0
    %2642 = vmatpush.bf16.msra.mxu0 0
    %2643 = vmatpush.bf16.msra.mxu0 0
    %2644 = vmatpush.bf16.msra.mxu0 0
    %2645 = vmatpush.bf16.msra.mxu0 %v2581
    %2646 = vmatmul.bf16.gmra.mxu0 %v2566
    %v2647 = vpop.f32.mrf.mxu0
    %v2648 = vadd.f32 0.0, %v2647
    %v2649 = vpop.f32.mrf.mxu0
    %2650 = vdwg.mxu0
    %2651 = vmatpush.bf16.msra.mxu0 0
    %2652 = vmatpush.bf16.msra.mxu0 0
    %2653 = vmatpush.bf16.msra.mxu0 0
    %2654 = vmatpush.bf16.msra.mxu0 0
    %2655 = vmatpush.bf16.msra.mxu0 0
    %2656 = vmatpush.bf16.msra.mxu0 0
    %2657 = vmatpush.bf16.msra.mxu0 0
    %2658 = vmatpush.bf16.msra.mxu0 %v2584
    %2659 = vmatmul.bf16.gmra.mxu0 %v2566
    %v2660 = vpop.f32.mrf.mxu0
    %v2661 = vadd.f32 0.0, %v2660
    %v2662 = vpop.f32.mrf.mxu0
    %2663 = vdwg.mxu0
    %v2664 = vadd.f32 %v2542, %v2596
    %v2665 = vadd.f32 %v2543, %v2609
    %v2666 = vadd.f32 %v2544, %v2622
    %v2667 = vadd.f32 %v2545, %v2635
    %v2668 = vadd.f32 %v2546, %v2648
    %v2669 = vadd.f32 %v2547, %v2661
    %2670 = vrot.lane.b32.xlu0 %v1712, 90
    %v2671 = vpop.permute.xlu0 %2670
    %2672 = vrot.lane.b32.xlu0 %v1713, 90
    %v2673 = vpop.permute.xlu0 %2672
    %2674 = vrot.lane.b32.xlu0 %v1714, 90
    %v2675 = vpop.permute.xlu0 %2674
    %2676 = vrot.lane.b32.xlu0 %v1715, 90
    %v2677 = vpop.permute.xlu0 %2676
    %2678 = vrot.lane.b32.xlu0 %v1716, 90
    %v2679 = vpop.permute.xlu0 %2678
    %2680 = vrot.lane.b32.xlu0 %v1717, 90
    %v2681 = vpop.permute.xlu0 %2680
    %vm2682 = vcmask 736256
    %v2683 = vsel %vm2682, %v2671, %v2673
    %v2684 = vsel %vm2682, %v2673, %v2675
    %v2685 = vsel %vm2682, %v2675, %v2677
    %v2686 = vsel %vm2682, %v2677, %v2679
    %v2687 = vsel %vm2682, %v2679, %v2681
    %v2689 = vsel %vm1735, %v1695, 0
    %v2692 = vsel %vm1739, %v2683, 0
    %v2695 = vsel %vm1739, %v2684, 0
    %v2698 = vsel %vm1739, %v2685, 0
    %v2701 = vsel %vm1739, %v2686, 0
    %v2704 = vsel %vm1739, %v2687, 0
    %v2707 = vsel %vm1739, %v2681, 0
    %2709 = vmatpush.bf16.msra.mxu0 0
    %2710 = vmatpush.bf16.msra.mxu0 0
    %2711 = vmatpush.bf16.msra.mxu0 0
    %2712 = vmatpush.bf16.msra.mxu0 0
    %2713 = vmatpush.bf16.msra.mxu0 0
    %2714 = vmatpush.bf16.msra.mxu0 0
    %2715 = vmatpush.bf16.msra.mxu0 0
    %2716 = vmatpush.bf16.msra.mxu0 %v2692
    %2717 = vmatmul.bf16.gmra.mxu0 %v2689
    %v2718 = vpop.f32.mrf.mxu0
    %v2719 = vadd.f32 0.0, %v2718
    %v2720 = vpop.f32.mrf.mxu0
    %2721 = vdwg.mxu0
    %2722 = vmatpush.bf16.msra.mxu0 0
    %2723 = vmatpush.bf16.msra.mxu0 0
    %2724 = vmatpush.bf16.msra.mxu0 0
    %2725 = vmatpush.bf16.msra.mxu0 0
    %2726 = vmatpush.bf16.msra.mxu0 0
    %2727 = vmatpush.bf16.msra.mxu0 0
    %2728 = vmatpush.bf16.msra.mxu0 0
    %2729 = vmatpush.bf16.msra.mxu0 %v2695
    %2730 = vmatmul.bf16.gmra.mxu0 %v2689
    %v2731 = vpop.f32.mrf.mxu0
    %v2732 = vadd.f32 0.0, %v2731
    %v2733 = vpop.f32.mrf.mxu0
    %2734 = vdwg.mxu0
    %2735 = vmatpush.bf16.msra.mxu0 0
    %2736 = vmatpush.bf16.msra.mxu0 0
    %2737 = vmatpush.bf16.msra.mxu0 0
    %2738 = vmatpush.bf16.msra.mxu0 0
    %2739 = vmatpush.bf16.msra.mxu0 0
    %2740 = vmatpush.bf16.msra.mxu0 0
    %2741 = vmatpush.bf16.msra.mxu0 0
    %2742 = vmatpush.bf16.msra.mxu0 %v2698
    %2743 = vmatmul.bf16.gmra.mxu0 %v2689
    %v2744 = vpop.f32.mrf.mxu0
    %v2745 = vadd.f32 0.0, %v2744
    %v2746 = vpop.f32.mrf.mxu0
    %2747 = vdwg.mxu0
    %2748 = vmatpush.bf16.msra.mxu0 0
    %2749 = vmatpush.bf16.msra.mxu0 0
    %2750 = vmatpush.bf16.msra.mxu0 0
    %2751 = vmatpush.bf16.msra.mxu0 0
    %2752 = vmatpush.bf16.msra.mxu0 0
    %2753 = vmatpush.bf16.msra.mxu0 0
    %2754 = vmatpush.bf16.msra.mxu0 0
    %2755 = vmatpush.bf16.msra.mxu0 %v2701
    %2756 = vmatmul.bf16.gmra.mxu0 %v2689
    %v2757 = vpop.f32.mrf.mxu0
    %v2758 = vadd.f32 0.0, %v2757
    %v2759 = vpop.f32.mrf.mxu0
    %2760 = vdwg.mxu0
    %2761 = vmatpush.bf16.msra.mxu0 0
    %2762 = vmatpush.bf16.msra.mxu0 0
    %2763 = vmatpush.bf16.msra.mxu0 0
    %2764 = vmatpush.bf16.msra.mxu0 0
    %2765 = vmatpush.bf16.msra.mxu0 0
    %2766 = vmatpush.bf16.msra.mxu0 0
    %2767 = vmatpush.bf16.msra.mxu0 0
    %2768 = vmatpush.bf16.msra.mxu0 %v2704
    %2769 = vmatmul.bf16.gmra.mxu0 %v2689
    %v2770 = vpop.f32.mrf.mxu0
    %v2771 = vadd.f32 0.0, %v2770
    %v2772 = vpop.f32.mrf.mxu0
    %2773 = vdwg.mxu0
    %2774 = vmatpush.bf16.msra.mxu0 0
    %2775 = vmatpush.bf16.msra.mxu0 0
    %2776 = vmatpush.bf16.msra.mxu0 0
    %2777 = vmatpush.bf16.msra.mxu0 0
    %2778 = vmatpush.bf16.msra.mxu0 0
    %2779 = vmatpush.bf16.msra.mxu0 0
    %2780 = vmatpush.bf16.msra.mxu0 0
    %2781 = vmatpush.bf16.msra.mxu0 %v2707
    %2782 = vmatmul.bf16.gmra.mxu0 %v2689
    %v2783 = vpop.f32.mrf.mxu0
    %v2784 = vadd.f32 0.0, %v2783
    %v2785 = vpop.f32.mrf.mxu0
    %2786 = vdwg.mxu0
    %v2787 = vadd.f32 %v2664, %v2719
    %v2788 = vadd.f32 %v2665, %v2732
    %v2789 = vadd.f32 %v2666, %v2745
    %v2790 = vadd.f32 %v2667, %v2758
    %v2791 = vadd.f32 %v2668, %v2771
    %v2792 = vadd.f32 %v2669, %v2784
    %2793 = vrot.lane.b32.xlu0 %v1712, 89
    %v2794 = vpop.permute.xlu0 %2793
    %2795 = vrot.lane.b32.xlu0 %v1713, 89
    %v2796 = vpop.permute.xlu0 %2795
    %2797 = vrot.lane.b32.xlu0 %v1714, 89
    %v2798 = vpop.permute.xlu0 %2797
    %2799 = vrot.lane.b32.xlu0 %v1715, 89
    %v2800 = vpop.permute.xlu0 %2799
    %2801 = vrot.lane.b32.xlu0 %v1716, 89
    %v2802 = vpop.permute.xlu0 %2801
    %2803 = vrot.lane.b32.xlu0 %v1717, 89
    %v2804 = vpop.permute.xlu0 %2803
    %vm2805 = vcmask 728064
    %v2806 = vsel %vm2805, %v2794, %v2796
    %v2807 = vsel %vm2805, %v2796, %v2798
    %v2808 = vsel %vm2805, %v2798, %v2800
    %v2809 = vsel %vm2805, %v2800, %v2802
    %v2810 = vsel %vm2805, %v2802, %v2804
    %v2812 = vsel %vm1735, %v1696, 0
    %v2815 = vsel %vm1739, %v2806, 0
    %v2818 = vsel %vm1739, %v2807, 0
    %v2821 = vsel %vm1739, %v2808, 0
    %v2824 = vsel %vm1739, %v2809, 0
    %v2827 = vsel %vm1739, %v2810, 0
    %v2830 = vsel %vm1739, %v2804, 0
    %2832 = vmatpush.bf16.msra.mxu0 0
    %2833 = vmatpush.bf16.msra.mxu0 0
    %2834 = vmatpush.bf16.msra.mxu0 0
    %2835 = vmatpush.bf16.msra.mxu0 0
    %2836 = vmatpush.bf16.msra.mxu0 0
    %2837 = vmatpush.bf16.msra.mxu0 0
    %2838 = vmatpush.bf16.msra.mxu0 0
    %2839 = vmatpush.bf16.msra.mxu0 %v2815
    %2840 = vmatmul.bf16.gmra.mxu0 %v2812
    %v2841 = vpop.f32.mrf.mxu0
    %v2842 = vadd.f32 0.0, %v2841
    %v2843 = vpop.f32.mrf.mxu0
    %2844 = vdwg.mxu0
    %2845 = vmatpush.bf16.msra.mxu0 0
    %2846 = vmatpush.bf16.msra.mxu0 0
    %2847 = vmatpush.bf16.msra.mxu0 0
    %2848 = vmatpush.bf16.msra.mxu0 0
    %2849 = vmatpush.bf16.msra.mxu0 0
    %2850 = vmatpush.bf16.msra.mxu0 0
    %2851 = vmatpush.bf16.msra.mxu0 0
    %2852 = vmatpush.bf16.msra.mxu0 %v2818
    %2853 = vmatmul.bf16.gmra.mxu0 %v2812
    %v2854 = vpop.f32.mrf.mxu0
    %v2855 = vadd.f32 0.0, %v2854
    %v2856 = vpop.f32.mrf.mxu0
    %2857 = vdwg.mxu0
    %2858 = vmatpush.bf16.msra.mxu0 0
    %2859 = vmatpush.bf16.msra.mxu0 0
    %2860 = vmatpush.bf16.msra.mxu0 0
    %2861 = vmatpush.bf16.msra.mxu0 0
    %2862 = vmatpush.bf16.msra.mxu0 0
    %2863 = vmatpush.bf16.msra.mxu0 0
    %2864 = vmatpush.bf16.msra.mxu0 0
    %2865 = vmatpush.bf16.msra.mxu0 %v2821
    %2866 = vmatmul.bf16.gmra.mxu0 %v2812
    %v2867 = vpop.f32.mrf.mxu0
    %v2868 = vadd.f32 0.0, %v2867
    %v2869 = vpop.f32.mrf.mxu0
    %2870 = vdwg.mxu0
    %2871 = vmatpush.bf16.msra.mxu0 0
    %2872 = vmatpush.bf16.msra.mxu0 0
    %2873 = vmatpush.bf16.msra.mxu0 0
    %2874 = vmatpush.bf16.msra.mxu0 0
    %2875 = vmatpush.bf16.msra.mxu0 0
    %2876 = vmatpush.bf16.msra.mxu0 0
    %2877 = vmatpush.bf16.msra.mxu0 0
    %2878 = vmatpush.bf16.msra.mxu0 %v2824
    %2879 = vmatmul.bf16.gmra.mxu0 %v2812
    %v2880 = vpop.f32.mrf.mxu0
    %v2881 = vadd.f32 0.0, %v2880
    %v2882 = vpop.f32.mrf.mxu0
    %2883 = vdwg.mxu0
    %2884 = vmatpush.bf16.msra.mxu0 0
    %2885 = vmatpush.bf16.msra.mxu0 0
    %2886 = vmatpush.bf16.msra.mxu0 0
    %2887 = vmatpush.bf16.msra.mxu0 0
    %2888 = vmatpush.bf16.msra.mxu0 0
    %2889 = vmatpush.bf16.msra.mxu0 0
    %2890 = vmatpush.bf16.msra.mxu0 0
    %2891 = vmatpush.bf16.msra.mxu0 %v2827
    %2892 = vmatmul.bf16.gmra.mxu0 %v2812
    %v2893 = vpop.f32.mrf.mxu0
    %v2894 = vadd.f32 0.0, %v2893
    %v2895 = vpop.f32.mrf.mxu0
    %2896 = vdwg.mxu0
    %2897 = vmatpush.bf16.msra.mxu0 0
    %2898 = vmatpush.bf16.msra.mxu0 0
    %2899 = vmatpush.bf16.msra.mxu0 0
    %2900 = vmatpush.bf16.msra.mxu0 0
    %2901 = vmatpush.bf16.msra.mxu0 0
    %2902 = vmatpush.bf16.msra.mxu0 0
    %2903 = vmatpush.bf16.msra.mxu0 0
    %2904 = vmatpush.bf16.msra.mxu0 %v2830
    %2905 = vmatmul.bf16.gmra.mxu0 %v2812
    %v2906 = vpop.f32.mrf.mxu0
    %v2907 = vadd.f32 0.0, %v2906
    %v2908 = vpop.f32.mrf.mxu0
    %2909 = vdwg.mxu0
    %v2910 = vadd.f32 %v2787, %v2842
    %v2911 = vadd.f32 %v2788, %v2855
    %v2912 = vadd.f32 %v2789, %v2868
    %v2913 = vadd.f32 %v2790, %v2881
    %v2914 = vadd.f32 %v2791, %v2894
    %v2915 = vadd.f32 %v2792, %v2907
    %2916 = vrot.lane.b32.xlu0 %v1712, 88
    %v2917 = vpop.permute.xlu0 %2916
    %2918 = vrot.lane.b32.xlu0 %v1713, 88
    %v2919 = vpop.permute.xlu0 %2918
    %2920 = vrot.lane.b32.xlu0 %v1714, 88
    %v2921 = vpop.permute.xlu0 %2920
    %2922 = vrot.lane.b32.xlu0 %v1715, 88
    %v2923 = vpop.permute.xlu0 %2922
    %2924 = vrot.lane.b32.xlu0 %v1716, 88
    %v2925 = vpop.permute.xlu0 %2924
    %2926 = vrot.lane.b32.xlu0 %v1717, 88
    %v2927 = vpop.permute.xlu0 %2926
    %vm2928 = vcmask 719872
    %v2929 = vsel %vm2928, %v2917, %v2919
    %v2930 = vsel %vm2928, %v2919, %v2921
    %v2931 = vsel %vm2928, %v2921, %v2923
    %v2932 = vsel %vm2928, %v2923, %v2925
    %v2933 = vsel %vm2928, %v2925, %v2927
    %v2935 = vsel %vm1735, %v1697, 0
    %v2938 = vsel %vm1739, %v2929, 0
    %v2941 = vsel %vm1739, %v2930, 0
    %v2944 = vsel %vm1739, %v2931, 0
    %v2947 = vsel %vm1739, %v2932, 0
    %v2950 = vsel %vm1739, %v2933, 0
    %v2953 = vsel %vm1739, %v2927, 0
    %2955 = vmatpush.bf16.msra.mxu0 0
    %2956 = vmatpush.bf16.msra.mxu0 0
    %2957 = vmatpush.bf16.msra.mxu0 0
    %2958 = vmatpush.bf16.msra.mxu0 0
    %2959 = vmatpush.bf16.msra.mxu0 0
    %2960 = vmatpush.bf16.msra.mxu0 0
    %2961 = vmatpush.bf16.msra.mxu0 0
    %2962 = vmatpush.bf16.msra.mxu0 %v2938
    %2963 = vmatmul.bf16.gmra.mxu0 %v2935
    %v2964 = vpop.f32.mrf.mxu0
    %v2965 = vadd.f32 0.0, %v2964
    %v2966 = vpop.f32.mrf.mxu0
    %2967 = vdwg.mxu0
    %2968 = vmatpush.bf16.msra.mxu0 0
    %2969 = vmatpush.bf16.msra.mxu0 0
    %2970 = vmatpush.bf16.msra.mxu0 0
    %2971 = vmatpush.bf16.msra.mxu0 0
    %2972 = vmatpush.bf16.msra.mxu0 0
    %2973 = vmatpush.bf16.msra.mxu0 0
    %2974 = vmatpush.bf16.msra.mxu0 0
    %2975 = vmatpush.bf16.msra.mxu0 %v2941
    %2976 = vmatmul.bf16.gmra.mxu0 %v2935
    %v2977 = vpop.f32.mrf.mxu0
    %v2978 = vadd.f32 0.0, %v2977
    %v2979 = vpop.f32.mrf.mxu0
    %2980 = vdwg.mxu0
    %2981 = vmatpush.bf16.msra.mxu0 0
    %2982 = vmatpush.bf16.msra.mxu0 0
    %2983 = vmatpush.bf16.msra.mxu0 0
    %2984 = vmatpush.bf16.msra.mxu0 0
    %2985 = vmatpush.bf16.msra.mxu0 0
    %2986 = vmatpush.bf16.msra.mxu0 0
    %2987 = vmatpush.bf16.msra.mxu0 0
    %2988 = vmatpush.bf16.msra.mxu0 %v2944
    %2989 = vmatmul.bf16.gmra.mxu0 %v2935
    %v2990 = vpop.f32.mrf.mxu0
    %v2991 = vadd.f32 0.0, %v2990
    %v2992 = vpop.f32.mrf.mxu0
    %2993 = vdwg.mxu0
    %2994 = vmatpush.bf16.msra.mxu0 0
    %2995 = vmatpush.bf16.msra.mxu0 0
    %2996 = vmatpush.bf16.msra.mxu0 0
    %2997 = vmatpush.bf16.msra.mxu0 0
    %2998 = vmatpush.bf16.msra.mxu0 0
    %2999 = vmatpush.bf16.msra.mxu0 0
    %3000 = vmatpush.bf16.msra.mxu0 0
    %3001 = vmatpush.bf16.msra.mxu0 %v2947
    %3002 = vmatmul.bf16.gmra.mxu0 %v2935
    %v3003 = vpop.f32.mrf.mxu0
    %v3004 = vadd.f32 0.0, %v3003
    %v3005 = vpop.f32.mrf.mxu0
    %3006 = vdwg.mxu0
    %3007 = vmatpush.bf16.msra.mxu0 0
    %3008 = vmatpush.bf16.msra.mxu0 0
    %3009 = vmatpush.bf16.msra.mxu0 0
    %3010 = vmatpush.bf16.msra.mxu0 0
    %3011 = vmatpush.bf16.msra.mxu0 0
    %3012 = vmatpush.bf16.msra.mxu0 0
    %3013 = vmatpush.bf16.msra.mxu0 0
    %3014 = vmatpush.bf16.msra.mxu0 %v2950
    %3015 = vmatmul.bf16.gmra.mxu0 %v2935
    %v3016 = vpop.f32.mrf.mxu0
    %v3017 = vadd.f32 0.0, %v3016
    %v3018 = vpop.f32.mrf.mxu0
    %3019 = vdwg.mxu0
    %3020 = vmatpush.bf16.msra.mxu0 0
    %3021 = vmatpush.bf16.msra.mxu0 0
    %3022 = vmatpush.bf16.msra.mxu0 0
    %3023 = vmatpush.bf16.msra.mxu0 0
    %3024 = vmatpush.bf16.msra.mxu0 0
    %3025 = vmatpush.bf16.msra.mxu0 0
    %3026 = vmatpush.bf16.msra.mxu0 0
    %3027 = vmatpush.bf16.msra.mxu0 %v2953
    %3028 = vmatmul.bf16.gmra.mxu0 %v2935
    %v3029 = vpop.f32.mrf.mxu0
    %v3030 = vadd.f32 0.0, %v3029
    %v3031 = vpop.f32.mrf.mxu0
    %3032 = vdwg.mxu0
    %v3033 = vadd.f32 %v2910, %v2965
    %v3034 = vadd.f32 %v2911, %v2978
    %v3035 = vadd.f32 %v2912, %v2991
    %v3036 = vadd.f32 %v2913, %v3004
    %v3037 = vadd.f32 %v2914, %v3017
    %v3038 = vadd.f32 %v2915, %v3030
    %3039 = vrot.lane.b32.xlu0 %v1712, 87
    %v3040 = vpop.permute.xlu0 %3039
    %3041 = vrot.lane.b32.xlu0 %v1713, 87
    %v3042 = vpop.permute.xlu0 %3041
    %3043 = vrot.lane.b32.xlu0 %v1714, 87
    %v3044 = vpop.permute.xlu0 %3043
    %3045 = vrot.lane.b32.xlu0 %v1715, 87
    %v3046 = vpop.permute.xlu0 %3045
    %3047 = vrot.lane.b32.xlu0 %v1716, 87
    %v3048 = vpop.permute.xlu0 %3047
    %3049 = vrot.lane.b32.xlu0 %v1717, 87
    %v3050 = vpop.permute.xlu0 %3049
    %vm3051 = vcmask 711680
    %v3052 = vsel %vm3051, %v3040, %v3042
    %v3053 = vsel %vm3051, %v3042, %v3044
    %v3054 = vsel %vm3051, %v3044, %v3046
    %v3055 = vsel %vm3051, %v3046, %v3048
    %v3056 = vsel %vm3051, %v3048, %v3050
    %v3058 = vsel %vm1735, %v1698, 0
    %v3061 = vsel %vm1739, %v3052, 0
    %v3064 = vsel %vm1739, %v3053, 0
    %v3067 = vsel %vm1739, %v3054, 0
    %v3070 = vsel %vm1739, %v3055, 0
    %v3073 = vsel %vm1739, %v3056, 0
    %v3076 = vsel %vm1739, %v3050, 0
    %3078 = vmatpush.bf16.msra.mxu0 0
    %3079 = vmatpush.bf16.msra.mxu0 0
    %3080 = vmatpush.bf16.msra.mxu0 0
    %3081 = vmatpush.bf16.msra.mxu0 0
    %3082 = vmatpush.bf16.msra.mxu0 0
    %3083 = vmatpush.bf16.msra.mxu0 0
    %3084 = vmatpush.bf16.msra.mxu0 0
    %3085 = vmatpush.bf16.msra.mxu0 %v3061
    %3086 = vmatmul.bf16.gmra.mxu0 %v3058
    %v3087 = vpop.f32.mrf.mxu0
    %v3088 = vadd.f32 0.0, %v3087
    %v3089 = vpop.f32.mrf.mxu0
    %3090 = vdwg.mxu0
    %3091 = vmatpush.bf16.msra.mxu0 0
    %3092 = vmatpush.bf16.msra.mxu0 0
    %3093 = vmatpush.bf16.msra.mxu0 0
    %3094 = vmatpush.bf16.msra.mxu0 0
    %3095 = vmatpush.bf16.msra.mxu0 0
    %3096 = vmatpush.bf16.msra.mxu0 0
    %3097 = vmatpush.bf16.msra.mxu0 0
    %3098 = vmatpush.bf16.msra.mxu0 %v3064
    %3099 = vmatmul.bf16.gmra.mxu0 %v3058
    %v3100 = vpop.f32.mrf.mxu0
    %v3101 = vadd.f32 0.0, %v3100
    %v3102 = vpop.f32.mrf.mxu0
    %3103 = vdwg.mxu0
    %3104 = vmatpush.bf16.msra.mxu0 0
    %3105 = vmatpush.bf16.msra.mxu0 0
    %3106 = vmatpush.bf16.msra.mxu0 0
    %3107 = vmatpush.bf16.msra.mxu0 0
    %3108 = vmatpush.bf16.msra.mxu0 0
    %3109 = vmatpush.bf16.msra.mxu0 0
    %3110 = vmatpush.bf16.msra.mxu0 0
    %3111 = vmatpush.bf16.msra.mxu0 %v3067
    %3112 = vmatmul.bf16.gmra.mxu0 %v3058
    %v3113 = vpop.f32.mrf.mxu0
    %v3114 = vadd.f32 0.0, %v3113
    %v3115 = vpop.f32.mrf.mxu0
    %3116 = vdwg.mxu0
    %3117 = vmatpush.bf16.msra.mxu0 0
    %3118 = vmatpush.bf16.msra.mxu0 0
    %3119 = vmatpush.bf16.msra.mxu0 0
    %3120 = vmatpush.bf16.msra.mxu0 0
    %3121 = vmatpush.bf16.msra.mxu0 0
    %3122 = vmatpush.bf16.msra.mxu0 0
    %3123 = vmatpush.bf16.msra.mxu0 0
    %3124 = vmatpush.bf16.msra.mxu0 %v3070
    %3125 = vmatmul.bf16.gmra.mxu0 %v3058
    %v3126 = vpop.f32.mrf.mxu0
    %v3127 = vadd.f32 0.0, %v3126
    %v3128 = vpop.f32.mrf.mxu0
    %3129 = vdwg.mxu0
    %3130 = vmatpush.bf16.msra.mxu0 0
    %3131 = vmatpush.bf16.msra.mxu0 0
    %3132 = vmatpush.bf16.msra.mxu0 0
    %3133 = vmatpush.bf16.msra.mxu0 0
    %3134 = vmatpush.bf16.msra.mxu0 0
    %3135 = vmatpush.bf16.msra.mxu0 0
    %3136 = vmatpush.bf16.msra.mxu0 0
    %3137 = vmatpush.bf16.msra.mxu0 %v3073
    %3138 = vmatmul.bf16.gmra.mxu0 %v3058
    %v3139 = vpop.f32.mrf.mxu0
    %v3140 = vadd.f32 0.0, %v3139
    %v3141 = vpop.f32.mrf.mxu0
    %3142 = vdwg.mxu0
    %3143 = vmatpush.bf16.msra.mxu0 0
    %3144 = vmatpush.bf16.msra.mxu0 0
    %3145 = vmatpush.bf16.msra.mxu0 0
    %3146 = vmatpush.bf16.msra.mxu0 0
    %3147 = vmatpush.bf16.msra.mxu0 0
    %3148 = vmatpush.bf16.msra.mxu0 0
    %3149 = vmatpush.bf16.msra.mxu0 0
    %3150 = vmatpush.bf16.msra.mxu0 %v3076
    %3151 = vmatmul.bf16.gmra.mxu0 %v3058
    %v3152 = vpop.f32.mrf.mxu0
    %v3153 = vadd.f32 0.0, %v3152
    %v3154 = vpop.f32.mrf.mxu0
    %3155 = vdwg.mxu0
    %v3156 = vadd.f32 %v3033, %v3088
    %v3157 = vadd.f32 %v3034, %v3101
    %v3158 = vadd.f32 %v3035, %v3114
    %v3159 = vadd.f32 %v3036, %v3127
    %v3160 = vadd.f32 %v3037, %v3140
    %v3161 = vadd.f32 %v3038, %v3153
    %3162 = vrot.lane.b32.xlu0 %v1712, 71
    %v3163 = vpop.permute.xlu0 %3162
    %3164 = vrot.lane.b32.xlu0 %v1713, 71
    %v3165 = vpop.permute.xlu0 %3164
    %3166 = vrot.lane.b32.xlu0 %v1714, 71
    %v3167 = vpop.permute.xlu0 %3166
    %3168 = vrot.lane.b32.xlu0 %v1715, 71
    %v3169 = vpop.permute.xlu0 %3168
    %3170 = vrot.lane.b32.xlu0 %v1716, 71
    %v3171 = vpop.permute.xlu0 %3170
    %3172 = vrot.lane.b32.xlu0 %v1717, 71
    %v3173 = vpop.permute.xlu0 %3172
    %vm3174 = vcmask 580608
    %v3175 = vsel %vm3174, %v3163, %v3165
    %v3176 = vsel %vm3174, %v3165, %v3167
    %v3177 = vsel %vm3174, %v3167, %v3169
    %v3178 = vsel %vm3174, %v3169, %v3171
    %v3179 = vsel %vm3174, %v3171, %v3173
    %v3181 = vsel %vm1735, %v1699, 0
    %v3184 = vsel %vm1739, %v3175, 0
    %v3187 = vsel %vm1739, %v3176, 0
    %v3190 = vsel %vm1739, %v3177, 0
    %v3193 = vsel %vm1739, %v3178, 0
    %v3196 = vsel %vm1739, %v3179, 0
    %v3199 = vsel %vm1739, %v3173, 0
    %3201 = vmatpush.bf16.msra.mxu0 0
    %3202 = vmatpush.bf16.msra.mxu0 0
    %3203 = vmatpush.bf16.msra.mxu0 0
    %3204 = vmatpush.bf16.msra.mxu0 0
    %3205 = vmatpush.bf16.msra.mxu0 0
    %3206 = vmatpush.bf16.msra.mxu0 0
    %3207 = vmatpush.bf16.msra.mxu0 0
    %3208 = vmatpush.bf16.msra.mxu0 %v3184
    %3209 = vmatmul.bf16.gmra.mxu0 %v3181
    %v3210 = vpop.f32.mrf.mxu0
    %v3211 = vadd.f32 0.0, %v3210
    %v3212 = vpop.f32.mrf.mxu0
    %3213 = vdwg.mxu0
    %3214 = vmatpush.bf16.msra.mxu0 0
    %3215 = vmatpush.bf16.msra.mxu0 0
    %3216 = vmatpush.bf16.msra.mxu0 0
    %3217 = vmatpush.bf16.msra.mxu0 0
    %3218 = vmatpush.bf16.msra.mxu0 0
    %3219 = vmatpush.bf16.msra.mxu0 0
    %3220 = vmatpush.bf16.msra.mxu0 0
    %3221 = vmatpush.bf16.msra.mxu0 %v3187
    %3222 = vmatmul.bf16.gmra.mxu0 %v3181
    %v3223 = vpop.f32.mrf.mxu0
    %v3224 = vadd.f32 0.0, %v3223
    %v3225 = vpop.f32.mrf.mxu0
    %3226 = vdwg.mxu0
    %3227 = vmatpush.bf16.msra.mxu0 0
    %3228 = vmatpush.bf16.msra.mxu0 0
    %3229 = vmatpush.bf16.msra.mxu0 0
    %3230 = vmatpush.bf16.msra.mxu0 0
    %3231 = vmatpush.bf16.msra.mxu0 0
    %3232 = vmatpush.bf16.msra.mxu0 0
    %3233 = vmatpush.bf16.msra.mxu0 0
    %3234 = vmatpush.bf16.msra.mxu0 %v3190
    %3235 = vmatmul.bf16.gmra.mxu0 %v3181
    %v3236 = vpop.f32.mrf.mxu0
    %v3237 = vadd.f32 0.0, %v3236
    %v3238 = vpop.f32.mrf.mxu0
    %3239 = vdwg.mxu0
    %3240 = vmatpush.bf16.msra.mxu0 0
    %3241 = vmatpush.bf16.msra.mxu0 0
    %3242 = vmatpush.bf16.msra.mxu0 0
    %3243 = vmatpush.bf16.msra.mxu0 0
    %3244 = vmatpush.bf16.msra.mxu0 0
    %3245 = vmatpush.bf16.msra.mxu0 0
    %3246 = vmatpush.bf16.msra.mxu0 0
    %3247 = vmatpush.bf16.msra.mxu0 %v3193
    %3248 = vmatmul.bf16.gmra.mxu0 %v3181
    %v3249 = vpop.f32.mrf.mxu0
    %v3250 = vadd.f32 0.0, %v3249
    %v3251 = vpop.f32.mrf.mxu0
    %3252 = vdwg.mxu0
    %3253 = vmatpush.bf16.msra.mxu0 0
    %3254 = vmatpush.bf16.msra.mxu0 0
    %3255 = vmatpush.bf16.msra.mxu0 0
    %3256 = vmatpush.bf16.msra.mxu0 0
    %3257 = vmatpush.bf16.msra.mxu0 0
    %3258 = vmatpush.bf16.msra.mxu0 0
    %3259 = vmatpush.bf16.msra.mxu0 0
    %3260 = vmatpush.bf16.msra.mxu0 %v3196
    %3261 = vmatmul.bf16.gmra.mxu0 %v3181
    %v3262 = vpop.f32.mrf.mxu0
    %v3263 = vadd.f32 0.0, %v3262
    %v3264 = vpop.f32.mrf.mxu0
    %3265 = vdwg.mxu0
    %3266 = vmatpush.bf16.msra.mxu0 0
    %3267 = vmatpush.bf16.msra.mxu0 0
    %3268 = vmatpush.bf16.msra.mxu0 0
    %3269 = vmatpush.bf16.msra.mxu0 0
    %3270 = vmatpush.bf16.msra.mxu0 0
    %3271 = vmatpush.bf16.msra.mxu0 0
    %3272 = vmatpush.bf16.msra.mxu0 0
    %3273 = vmatpush.bf16.msra.mxu0 %v3199
    %3274 = vmatmul.bf16.gmra.mxu0 %v3181
    %v3275 = vpop.f32.mrf.mxu0
    %v3276 = vadd.f32 0.0, %v3275
    %v3277 = vpop.f32.mrf.mxu0
    %3278 = vdwg.mxu0
    %v3279 = vadd.f32 %v3156, %v3211
    %v3280 = vadd.f32 %v3157, %v3224
    %v3281 = vadd.f32 %v3158, %v3237
    %v3282 = vadd.f32 %v3159, %v3250
    %v3283 = vadd.f32 %v3160, %v3263
    %v3284 = vadd.f32 %v3161, %v3276
    %3285 = vrot.lane.b32.xlu0 %v1712, 70
    %v3286 = vpop.permute.xlu0 %3285
    %3287 = vrot.lane.b32.xlu0 %v1713, 70
    %v3288 = vpop.permute.xlu0 %3287
    %3289 = vrot.lane.b32.xlu0 %v1714, 70
    %v3290 = vpop.permute.xlu0 %3289
    %3291 = vrot.lane.b32.xlu0 %v1715, 70
    %v3292 = vpop.permute.xlu0 %3291
    %3293 = vrot.lane.b32.xlu0 %v1716, 70
    %v3294 = vpop.permute.xlu0 %3293
    %3295 = vrot.lane.b32.xlu0 %v1717, 70
    %v3296 = vpop.permute.xlu0 %3295
    %vm3297 = vcmask 572416
    %v3298 = vsel %vm3297, %v3286, %v3288
    %v3299 = vsel %vm3297, %v3288, %v3290
    %v3300 = vsel %vm3297, %v3290, %v3292
    %v3301 = vsel %vm3297, %v3292, %v3294
    %v3302 = vsel %vm3297, %v3294, %v3296
    %v3304 = vsel %vm1735, %v1700, 0
    %v3307 = vsel %vm1739, %v3298, 0
    %v3310 = vsel %vm1739, %v3299, 0
    %v3313 = vsel %vm1739, %v3300, 0
    %v3316 = vsel %vm1739, %v3301, 0
    %v3319 = vsel %vm1739, %v3302, 0
    %v3322 = vsel %vm1739, %v3296, 0
    %3324 = vmatpush.bf16.msra.mxu0 0
    %3325 = vmatpush.bf16.msra.mxu0 0
    %3326 = vmatpush.bf16.msra.mxu0 0
    %3327 = vmatpush.bf16.msra.mxu0 0
    %3328 = vmatpush.bf16.msra.mxu0 0
    %3329 = vmatpush.bf16.msra.mxu0 0
    %3330 = vmatpush.bf16.msra.mxu0 0
    %3331 = vmatpush.bf16.msra.mxu0 %v3307
    %3332 = vmatmul.bf16.gmra.mxu0 %v3304
    %v3333 = vpop.f32.mrf.mxu0
    %v3334 = vadd.f32 0.0, %v3333
    %v3335 = vpop.f32.mrf.mxu0
    %3336 = vdwg.mxu0
    %3337 = vmatpush.bf16.msra.mxu0 0
    %3338 = vmatpush.bf16.msra.mxu0 0
    %3339 = vmatpush.bf16.msra.mxu0 0
    %3340 = vmatpush.bf16.msra.mxu0 0
    %3341 = vmatpush.bf16.msra.mxu0 0
    %3342 = vmatpush.bf16.msra.mxu0 0
    %3343 = vmatpush.bf16.msra.mxu0 0
    %3344 = vmatpush.bf16.msra.mxu0 %v3310
    %3345 = vmatmul.bf16.gmra.mxu0 %v3304
    %v3346 = vpop.f32.mrf.mxu0
    %v3347 = vadd.f32 0.0, %v3346
    %v3348 = vpop.f32.mrf.mxu0
    %3349 = vdwg.mxu0
    %3350 = vmatpush.bf16.msra.mxu0 0
    %3351 = vmatpush.bf16.msra.mxu0 0
    %3352 = vmatpush.bf16.msra.mxu0 0
    %3353 = vmatpush.bf16.msra.mxu0 0
    %3354 = vmatpush.bf16.msra.mxu0 0
    %3355 = vmatpush.bf16.msra.mxu0 0
    %3356 = vmatpush.bf16.msra.mxu0 0
    %3357 = vmatpush.bf16.msra.mxu0 %v3313
    %3358 = vmatmul.bf16.gmra.mxu0 %v3304
    %v3359 = vpop.f32.mrf.mxu0
    %v3360 = vadd.f32 0.0, %v3359
    %v3361 = vpop.f32.mrf.mxu0
    %3362 = vdwg.mxu0
    %3363 = vmatpush.bf16.msra.mxu0 0
    %3364 = vmatpush.bf16.msra.mxu0 0
    %3365 = vmatpush.bf16.msra.mxu0 0
    %3366 = vmatpush.bf16.msra.mxu0 0
    %3367 = vmatpush.bf16.msra.mxu0 0
    %3368 = vmatpush.bf16.msra.mxu0 0
    %3369 = vmatpush.bf16.msra.mxu0 0
    %3370 = vmatpush.bf16.msra.mxu0 %v3316
    %3371 = vmatmul.bf16.gmra.mxu0 %v3304
    %v3372 = vpop.f32.mrf.mxu0
    %v3373 = vadd.f32 0.0, %v3372
    %v3374 = vpop.f32.mrf.mxu0
    %3375 = vdwg.mxu0
    %3376 = vmatpush.bf16.msra.mxu0 0
    %3377 = vmatpush.bf16.msra.mxu0 0
    %3378 = vmatpush.bf16.msra.mxu0 0
    %3379 = vmatpush.bf16.msra.mxu0 0
    %3380 = vmatpush.bf16.msra.mxu0 0
    %3381 = vmatpush.bf16.msra.mxu0 0
    %3382 = vmatpush.bf16.msra.mxu0 0
    %3383 = vmatpush.bf16.msra.mxu0 %v3319
    %3384 = vmatmul.bf16.gmra.mxu0 %v3304
    %v3385 = vpop.f32.mrf.mxu0
    %v3386 = vadd.f32 0.0, %v3385
    %v3387 = vpop.f32.mrf.mxu0
    %3388 = vdwg.mxu0
    %3389 = vmatpush.bf16.msra.mxu0 0
    %3390 = vmatpush.bf16.msra.mxu0 0
    %3391 = vmatpush.bf16.msra.mxu0 0
    %3392 = vmatpush.bf16.msra.mxu0 0
    %3393 = vmatpush.bf16.msra.mxu0 0
    %3394 = vmatpush.bf16.msra.mxu0 0
    %3395 = vmatpush.bf16.msra.mxu0 0
    %3396 = vmatpush.bf16.msra.mxu0 %v3322
    %3397 = vmatmul.bf16.gmra.mxu0 %v3304
    %v3398 = vpop.f32.mrf.mxu0
    %v3399 = vadd.f32 0.0, %v3398
    %v3400 = vpop.f32.mrf.mxu0
    %3401 = vdwg.mxu0
    %v3402 = vadd.f32 %v3279, %v3334
    %v3403 = vadd.f32 %v3280, %v3347
    %v3404 = vadd.f32 %v3281, %v3360
    %v3405 = vadd.f32 %v3282, %v3373
    %v3406 = vadd.f32 %v3283, %v3386
    %v3407 = vadd.f32 %v3284, %v3399
    %3408 = vrot.lane.b32.xlu0 %v1712, 69
    %v3409 = vpop.permute.xlu0 %3408
    %3410 = vrot.lane.b32.xlu0 %v1713, 69
    %v3411 = vpop.permute.xlu0 %3410
    %3412 = vrot.lane.b32.xlu0 %v1714, 69
    %v3413 = vpop.permute.xlu0 %3412
    %3414 = vrot.lane.b32.xlu0 %v1715, 69
    %v3415 = vpop.permute.xlu0 %3414
    %3416 = vrot.lane.b32.xlu0 %v1716, 69
    %v3417 = vpop.permute.xlu0 %3416
    %3418 = vrot.lane.b32.xlu0 %v1717, 69
    %v3419 = vpop.permute.xlu0 %3418
    %vm3420 = vcmask 564224
    %v3421 = vsel %vm3420, %v3409, %v3411
    %v3422 = vsel %vm3420, %v3411, %v3413
    %v3423 = vsel %vm3420, %v3413, %v3415
    %v3424 = vsel %vm3420, %v3415, %v3417
    %v3425 = vsel %vm3420, %v3417, %v3419
    %v3427 = vsel %vm1735, %v1701, 0
    %v3430 = vsel %vm1739, %v3421, 0
    %v3433 = vsel %vm1739, %v3422, 0
    %v3436 = vsel %vm1739, %v3423, 0
    %v3439 = vsel %vm1739, %v3424, 0
    %v3442 = vsel %vm1739, %v3425, 0
    %v3445 = vsel %vm1739, %v3419, 0
    %3447 = vmatpush.bf16.msra.mxu0 0
    %3448 = vmatpush.bf16.msra.mxu0 0
    %3449 = vmatpush.bf16.msra.mxu0 0
    %3450 = vmatpush.bf16.msra.mxu0 0
    %3451 = vmatpush.bf16.msra.mxu0 0
    %3452 = vmatpush.bf16.msra.mxu0 0
    %3453 = vmatpush.bf16.msra.mxu0 0
    %3454 = vmatpush.bf16.msra.mxu0 %v3430
    %3455 = vmatmul.bf16.gmra.mxu0 %v3427
    %v3456 = vpop.f32.mrf.mxu0
    %v3457 = vadd.f32 0.0, %v3456
    %v3458 = vpop.f32.mrf.mxu0
    %3459 = vdwg.mxu0
    %3460 = vmatpush.bf16.msra.mxu0 0
    %3461 = vmatpush.bf16.msra.mxu0 0
    %3462 = vmatpush.bf16.msra.mxu0 0
    %3463 = vmatpush.bf16.msra.mxu0 0
    %3464 = vmatpush.bf16.msra.mxu0 0
    %3465 = vmatpush.bf16.msra.mxu0 0
    %3466 = vmatpush.bf16.msra.mxu0 0
    %3467 = vmatpush.bf16.msra.mxu0 %v3433
    %3468 = vmatmul.bf16.gmra.mxu0 %v3427
    %v3469 = vpop.f32.mrf.mxu0
    %v3470 = vadd.f32 0.0, %v3469
    %v3471 = vpop.f32.mrf.mxu0
    %3472 = vdwg.mxu0
    %3473 = vmatpush.bf16.msra.mxu0 0
    %3474 = vmatpush.bf16.msra.mxu0 0
    %3475 = vmatpush.bf16.msra.mxu0 0
    %3476 = vmatpush.bf16.msra.mxu0 0
    %3477 = vmatpush.bf16.msra.mxu0 0
    %3478 = vmatpush.bf16.msra.mxu0 0
    %3479 = vmatpush.bf16.msra.mxu0 0
    %3480 = vmatpush.bf16.msra.mxu0 %v3436
    %3481 = vmatmul.bf16.gmra.mxu0 %v3427
    %v3482 = vpop.f32.mrf.mxu0
    %v3483 = vadd.f32 0.0, %v3482
    %v3484 = vpop.f32.mrf.mxu0
    %3485 = vdwg.mxu0
    %3486 = vmatpush.bf16.msra.mxu0 0
    %3487 = vmatpush.bf16.msra.mxu0 0
    %3488 = vmatpush.bf16.msra.mxu0 0
    %3489 = vmatpush.bf16.msra.mxu0 0
    %3490 = vmatpush.bf16.msra.mxu0 0
    %3491 = vmatpush.bf16.msra.mxu0 0
    %3492 = vmatpush.bf16.msra.mxu0 0
    %3493 = vmatpush.bf16.msra.mxu0 %v3439
    %3494 = vmatmul.bf16.gmra.mxu0 %v3427
    %v3495 = vpop.f32.mrf.mxu0
    %v3496 = vadd.f32 0.0, %v3495
    %v3497 = vpop.f32.mrf.mxu0
    %3498 = vdwg.mxu0
    %3499 = vmatpush.bf16.msra.mxu0 0
    %3500 = vmatpush.bf16.msra.mxu0 0
    %3501 = vmatpush.bf16.msra.mxu0 0
    %3502 = vmatpush.bf16.msra.mxu0 0
    %3503 = vmatpush.bf16.msra.mxu0 0
    %3504 = vmatpush.bf16.msra.mxu0 0
    %3505 = vmatpush.bf16.msra.mxu0 0
    %3506 = vmatpush.bf16.msra.mxu0 %v3442
    %3507 = vmatmul.bf16.gmra.mxu0 %v3427
    %v3508 = vpop.f32.mrf.mxu0
    %v3509 = vadd.f32 0.0, %v3508
    %v3510 = vpop.f32.mrf.mxu0
    %3511 = vdwg.mxu0
    %3512 = vmatpush.bf16.msra.mxu0 0
    %3513 = vmatpush.bf16.msra.mxu0 0
    %3514 = vmatpush.bf16.msra.mxu0 0
    %3515 = vmatpush.bf16.msra.mxu0 0
    %3516 = vmatpush.bf16.msra.mxu0 0
    %3517 = vmatpush.bf16.msra.mxu0 0
    %3518 = vmatpush.bf16.msra.mxu0 0
    %3519 = vmatpush.bf16.msra.mxu0 %v3445
    %3520 = vmatmul.bf16.gmra.mxu0 %v3427
    %v3521 = vpop.f32.mrf.mxu0
    %v3522 = vadd.f32 0.0, %v3521
    %v3523 = vpop.f32.mrf.mxu0
    %3524 = vdwg.mxu0
    %v3525 = vadd.f32 %v3402, %v3457
    %v3526 = vadd.f32 %v3403, %v3470
    %v3527 = vadd.f32 %v3404, %v3483
    %v3528 = vadd.f32 %v3405, %v3496
    %v3529 = vadd.f32 %v3406, %v3509
    %v3530 = vadd.f32 %v3407, %v3522
    %3531 = vrot.lane.b32.xlu0 %v1712, 68
    %v3532 = vpop.permute.xlu0 %3531
    %3533 = vrot.lane.b32.xlu0 %v1713, 68
    %v3534 = vpop.permute.xlu0 %3533
    %3535 = vrot.lane.b32.xlu0 %v1714, 68
    %v3536 = vpop.permute.xlu0 %3535
    %3537 = vrot.lane.b32.xlu0 %v1715, 68
    %v3538 = vpop.permute.xlu0 %3537
    %3539 = vrot.lane.b32.xlu0 %v1716, 68
    %v3540 = vpop.permute.xlu0 %3539
    %3541 = vrot.lane.b32.xlu0 %v1717, 68
    %v3542 = vpop.permute.xlu0 %3541
    %vm3543 = vcmask 556032
    %v3544 = vsel %vm3543, %v3532, %v3534
    %v3545 = vsel %vm3543, %v3534, %v3536
    %v3546 = vsel %vm3543, %v3536, %v3538
    %v3547 = vsel %vm3543, %v3538, %v3540
    %v3548 = vsel %vm3543, %v3540, %v3542
    %v3550 = vsel %vm1735, %v1702, 0
    %v3553 = vsel %vm1739, %v3544, 0
    %v3556 = vsel %vm1739, %v3545, 0
    %v3559 = vsel %vm1739, %v3546, 0
    %v3562 = vsel %vm1739, %v3547, 0
    %v3565 = vsel %vm1739, %v3548, 0
    %v3568 = vsel %vm1739, %v3542, 0
    %3570 = vmatpush.bf16.msra.mxu0 0
    %3571 = vmatpush.bf16.msra.mxu0 0
    %3572 = vmatpush.bf16.msra.mxu0 0
    %3573 = vmatpush.bf16.msra.mxu0 0
    %3574 = vmatpush.bf16.msra.mxu0 0
    %3575 = vmatpush.bf16.msra.mxu0 0
    %3576 = vmatpush.bf16.msra.mxu0 0
    %3577 = vmatpush.bf16.msra.mxu0 %v3553
    %3578 = vmatmul.bf16.gmra.mxu0 %v3550
    %v3579 = vpop.f32.mrf.mxu0
    %v3580 = vadd.f32 0.0, %v3579
    %v3581 = vpop.f32.mrf.mxu0
    %3582 = vdwg.mxu0
    %3583 = vmatpush.bf16.msra.mxu0 0
    %3584 = vmatpush.bf16.msra.mxu0 0
    %3585 = vmatpush.bf16.msra.mxu0 0
    %3586 = vmatpush.bf16.msra.mxu0 0
    %3587 = vmatpush.bf16.msra.mxu0 0
    %3588 = vmatpush.bf16.msra.mxu0 0
    %3589 = vmatpush.bf16.msra.mxu0 0
    %3590 = vmatpush.bf16.msra.mxu0 %v3556
    %3591 = vmatmul.bf16.gmra.mxu0 %v3550
    %v3592 = vpop.f32.mrf.mxu0
    %v3593 = vadd.f32 0.0, %v3592
    %v3594 = vpop.f32.mrf.mxu0
    %3595 = vdwg.mxu0
    %3596 = vmatpush.bf16.msra.mxu0 0
    %3597 = vmatpush.bf16.msra.mxu0 0
    %3598 = vmatpush.bf16.msra.mxu0 0
    %3599 = vmatpush.bf16.msra.mxu0 0
    %3600 = vmatpush.bf16.msra.mxu0 0
    %3601 = vmatpush.bf16.msra.mxu0 0
    %3602 = vmatpush.bf16.msra.mxu0 0
    %3603 = vmatpush.bf16.msra.mxu0 %v3559
    %3604 = vmatmul.bf16.gmra.mxu0 %v3550
    %v3605 = vpop.f32.mrf.mxu0
    %v3606 = vadd.f32 0.0, %v3605
    %v3607 = vpop.f32.mrf.mxu0
    %3608 = vdwg.mxu0
    %3609 = vmatpush.bf16.msra.mxu0 0
    %3610 = vmatpush.bf16.msra.mxu0 0
    %3611 = vmatpush.bf16.msra.mxu0 0
    %3612 = vmatpush.bf16.msra.mxu0 0
    %3613 = vmatpush.bf16.msra.mxu0 0
    %3614 = vmatpush.bf16.msra.mxu0 0
    %3615 = vmatpush.bf16.msra.mxu0 0
    %3616 = vmatpush.bf16.msra.mxu0 %v3562
    %3617 = vmatmul.bf16.gmra.mxu0 %v3550
    %v3618 = vpop.f32.mrf.mxu0
    %v3619 = vadd.f32 0.0, %v3618
    %v3620 = vpop.f32.mrf.mxu0
    %3621 = vdwg.mxu0
    %3622 = vmatpush.bf16.msra.mxu0 0
    %3623 = vmatpush.bf16.msra.mxu0 0
    %3624 = vmatpush.bf16.msra.mxu0 0
    %3625 = vmatpush.bf16.msra.mxu0 0
    %3626 = vmatpush.bf16.msra.mxu0 0
    %3627 = vmatpush.bf16.msra.mxu0 0
    %3628 = vmatpush.bf16.msra.mxu0 0
    %3629 = vmatpush.bf16.msra.mxu0 %v3565
    %3630 = vmatmul.bf16.gmra.mxu0 %v3550
    %v3631 = vpop.f32.mrf.mxu0
    %v3632 = vadd.f32 0.0, %v3631
    %v3633 = vpop.f32.mrf.mxu0
    %3634 = vdwg.mxu0
    %3635 = vmatpush.bf16.msra.mxu0 0
    %3636 = vmatpush.bf16.msra.mxu0 0
    %3637 = vmatpush.bf16.msra.mxu0 0
    %3638 = vmatpush.bf16.msra.mxu0 0
    %3639 = vmatpush.bf16.msra.mxu0 0
    %3640 = vmatpush.bf16.msra.mxu0 0
    %3641 = vmatpush.bf16.msra.mxu0 0
    %3642 = vmatpush.bf16.msra.mxu0 %v3568
    %3643 = vmatmul.bf16.gmra.mxu0 %v3550
    %v3644 = vpop.f32.mrf.mxu0
    %v3645 = vadd.f32 0.0, %v3644
    %v3646 = vpop.f32.mrf.mxu0
    %3647 = vdwg.mxu0
    %v3648 = vadd.f32 %v3525, %v3580
    %v3649 = vadd.f32 %v3526, %v3593
    %v3650 = vadd.f32 %v3527, %v3606
    %v3651 = vadd.f32 %v3528, %v3619
    %v3652 = vadd.f32 %v3529, %v3632
    %v3653 = vadd.f32 %v3530, %v3645
    %v3654 = vld [vmem:[%s12] sm:$0x3f]
    %v3656 = vperm.slane %v3654, 0
    %v3657 = vperm.slane %v3654, 1
    %v3658 = vperm.slane %v3654, 2
    %v3659 = vperm.slane %v3654, 3
    %v3660 = vperm.slane %v3654, 4
    %v3661 = vperm.slane %v3654, 5
    %v3668 = vmul.f32 %v3648, %v3656
    %v3669 = vmul.f32 %v3649, %v3657
    %v3670 = vmul.f32 %v3650, %v3658
    %v3671 = vmul.f32 %v3651, %v3659
    %v3672 = vmul.f32 %v3652, %v3660
    %v3673 = vmul.f32 %v3653, %v3661
    %v3674 = vadd.f32 %v3668, %v3669
    %v3675 = vadd.f32 %v3674, %v3670
    %v3676 = vadd.f32 %v3675, %v3671
    %v3677 = vadd.f32 %v3676, %v3672
    %vm3678 = vcmask 179200
    %v3679 = vsel %vm3678, %v3673, 0.0
    %v3680 = vadd.f32 %v3677, %v3679
    %3681 = vadd.xlane.f32.xlu0 %v3680
    %v3682 = vpop.xlane.xlu0 %3681
    %v3683 = vmul.f32 %v3682, 0.001953125
    %v3684 = vmul.f32 %v3668, %v3668
    %v3685 = vmul.f32 %v3669, %v3669
    %v3686 = vmul.f32 %v3670, %v3670
    %v3687 = vmul.f32 %v3671, %v3671
    %v3688 = vmul.f32 %v3672, %v3672
    %v3689 = vmul.f32 %v3673, %v3673
    %v3690 = vadd.f32 %v3684, %v3685
    %v3691 = vadd.f32 %v3690, %v3686
    %v3692 = vadd.f32 %v3691, %v3687
    %v3693 = vadd.f32 %v3692, %v3688
    %v3694 = vsel %vm3678, %v3689, 0.0
    %v3695 = vadd.f32 %v3693, %v3694
    %3696 = vadd.xlane.f32.xlu0 %v3695
    %v3697 = vpop.xlane.xlu0 %3696
    %v3698 = vmul.f32 %v3697, 0.001953125
    %v3699 = vld [vmem:[%s10] sm:$0xff]
    %v3700 = vmul.f32 %v3683, %v3683
    %v3701 = vsub.f32 %v3698, %v3700
    %v3702 = vadd.f32 %v3701, 1e-05
    %v3703 = vrsqrt.pop %v3702
    %v3704 = vmul.f32 %v3703, %v3702
    %v3705 = vmul.f32 %v3704, %v3703
    %v3706 = vmul.f32 0.5, %v3705
    %v3707 = vsub.f32 1.5, %v3706
    %v3708 = vmul.f32 %v3703, %v3707
    %vm3709 = vweird.f32 %v3702
    %vm3710 = vweird.f32 %v3703
    %vm3711 = vmor %vm3709, %vm3710
    %v3712 = vsel %vm3711, %v3703, %v3708
    %v3713 = vmul.f32 %v3699, %v3712
    %v3714 = vld [vmem:[%s11] sm:$0xff]
    %v3715 = vmul.f32 %v3683, %v3713
    %v3716 = vsub.f32 %v3714, %v3715
    %3718 = vset.pattern.permute.xlu0 0
    %3719 = vperm.xlu0 %3718, %v3713
    %v3720 = vpop.permute.xlu0 %3719
    %v3722 = vmul.f32 %v3668, %v3720
    %v3723 = vmul.f32 %v3669, %v3720
    %v3724 = vmul.f32 %v3670, %v3720
    %v3725 = vmul.f32 %v3671, %v3720
    %v3726 = vmul.f32 %v3672, %v3720
    %v3727 = vmul.f32 %v3673, %v3720
    %3729 = vset.pattern.permute.xlu0 0
    %3730 = vperm.xlu0 %3729, %v3716
    %v3731 = vpop.permute.xlu0 %3730
    %v3733 = vadd.f32 %v3722, %v3731
    %v3734 = vadd.f32 %v3723, %v3731
    %v3735 = vadd.f32 %v3724, %v3731
    %v3736 = vadd.f32 %v3725, %v3731
    %v3737 = vadd.f32 %v3726, %v3731
    %v3738 = vadd.f32 %v3727, %v3731
    %v3739 = vmax.f32 %v3733, 0.0
    %v3740 = vmax.f32 %v3734, 0.0
    %v3741 = vmax.f32 %v3735, 0.0
    %v3742 = vmax.f32 %v3736, 0.0
    %v3743 = vmax.f32 %v3737, 0.0
    %v3744 = vmax.f32 %v3738, 0.0
    %v3745 = vand.u32 2147483647, %v3733
    %v3746 = vand.u32 2147483647, %v3734
    %v3747 = vand.u32 2147483647, %v3735
    %v3748 = vand.u32 2147483647, %v3736
    %v3749 = vand.u32 2147483647, %v3737
    %v3750 = vand.u32 2147483647, %v3738
    %v3751 = vsub.f32 0.0, %v3745
    %v3752 = vsub.f32 0.0, %v3746
    %v3753 = vsub.f32 0.0, %v3747
    %v3754 = vsub.f32 0.0, %v3748
    %v3755 = vsub.f32 0.0, %v3749
    %v3756 = vsub.f32 0.0, %v3750
    %v3757 = vmul.f32 %v3751, 1.442695
    %v3758 = vpow.pop %v3757
    %v3759 = vmul.f32 %v3752, 1.442695
    %v3760 = vpow.pop %v3759
    %v3761 = vmul.f32 %v3753, 1.442695
    %v3762 = vpow.pop %v3761
    %v3763 = vmul.f32 %v3754, 1.442695
    %v3764 = vpow.pop %v3763
    %v3765 = vmul.f32 %v3755, 1.442695
    %v3766 = vpow.pop %v3765
    %v3767 = vmul.f32 %v3756, 1.442695
    %v3768 = vpow.pop %v3767
    %v3769 = vadd.f32 %v3758, 1.0
    %v3770 = vadd.f32 %v3760, 1.0
    %v3771 = vadd.f32 %v3762, 1.0
    %v3772 = vadd.f32 %v3764, 1.0
    %v3773 = vadd.f32 %v3766, 1.0
    %v3774 = vadd.f32 %v3768, 1.0
    %v3775 = vlog2.pop %v3769
    %v3776 = vmul.f32 %v3775, 0.6931472
    %v3777 = vlog2.pop %v3770
    %v3778 = vmul.f32 %v3777, 0.6931472
    %v3779 = vlog2.pop %v3771
    %v3780 = vmul.f32 %v3779, 0.6931472
    %v3781 = vlog2.pop %v3772
    %v3782 = vmul.f32 %v3781, 0.6931472
    %v3783 = vlog2.pop %v3773
    %v3784 = vmul.f32 %v3783, 0.6931472
    %v3785 = vlog2.pop %v3774
    %v3786 = vmul.f32 %v3785, 0.6931472
    %v3787 = vadd.f32 %v3739, %v3776
    %v3788 = vadd.f32 %v3740, %v3778
    %v3789 = vadd.f32 %v3741, %v3780
    %v3790 = vadd.f32 %v3742, %v3782
    %v3791 = vadd.f32 %v3743, %v3784
    %v3792 = vadd.f32 %v3744, %v3786
    %vm3793 = vcmp.gt.f32.partialorder %v3733, 20.0
    %vm3794 = vcmp.gt.f32.partialorder %v3734, 20.0
    %vm3795 = vcmp.gt.f32.partialorder %v3735, 20.0
    %vm3796 = vcmp.gt.f32.partialorder %v3736, 20.0
    %vm3797 = vcmp.gt.f32.partialorder %v3737, 20.0
    %vm3798 = vcmp.gt.f32.partialorder %v3738, 20.0
    %v3799 = vsel %vm3793, %v3733, %v3787
    %v3800 = vsel %vm3794, %v3734, %v3788
    %v3801 = vsel %vm3795, %v3735, %v3789
    %v3802 = vsel %vm3796, %v3736, %v3790
    %v3803 = vsel %vm3797, %v3737, %v3791
    %v3804 = vsel %vm3798, %v3738, %v3792
    %v3805 = vmul.f32 %v3799, %v3656
    %v3806 = vmul.f32 %v3800, %v3657
    %v3807 = vmul.f32 %v3801, %v3658
    %v3808 = vmul.f32 %v3802, %v3659
    %v3809 = vmul.f32 %v3803, %v3660
    %v3810 = vmul.f32 %v3804, %v3661
    %3811 = vst [vmem:[#allocation2] sm:$0xff] 0
    %3812 = vst [vmem:[#allocation2 + $0x8] sm:$0xff] 0
    %3813 = vst [vmem:[#allocation2 + $0x10] sm:$0xff] 0
    %3814 = vst [vmem:[#allocation2 + $0x18] sm:$0xf] 0
    %v3815 = vpack.c.bf16 %v3806, %v3805
    %v3816 = vpack.c.bf16 %v3808, %v3807
    %v3817 = vpack.c.bf16 %v3810, %v3809
    %3818 = vst [vmem:[#allocation2 + $0x4] sm:$0xff] %v3815
    %3819 = vst [vmem:[#allocation2 + $0xc] sm:$0xff] %v3816
    %vm3820 = vcmask 179204
    %vm3821 = vmor %vm3820, %vm1739
    %3822 = vst.msk [vmem:[#allocation2 + $0x14] sm:$0xff] %vm3821, %v3817
    %v3823 = vld [vmem:[%s13] sm:$0xf]
    %v3824 = vld [vmem:[%s13 + $0x4] sm:$0xf]
    %v3825 = vld [vmem:[%s13 + $0x8] sm:$0xf]
    %v3826 = vld [vmem:[%s13 + $0xc] sm:$0x3]
    %v3827 = vld [vmem:[#allocation2] sm:$0xff]
    %v3828 = vld [vmem:[#allocation2 + $0x8] sm:$0xff]
    %v3829 = vld [vmem:[#allocation2 + $0x10] sm:$0xff]
    %v3830 = vld [vmem:[#allocation2 + $0x18] sm:$0xf]
    %v3832 = vunpack.c.l.b16 %v3823
    %v3833 = vpack.c.b16 %v3832, %v3832
    %v3835 = vshrl.u32 %v3833, 16
    %v3837 = vrot.slane %v3835, 1
    %v3838 = vshll.u32 %v3833, 16
    %v3840 = vrot.slane %v3838, 2
    %v3841 = vor.u32 %v3837, %v3840
    %v3846 = vunpack.c.l.b16 %v3827
    %v3847 = vunpack.c.h.b16 %v3827
    %v3848 = vunpack.c.l.b16 %v3828
    %v3849 = vunpack.c.h.b16 %v3828
    %v3850 = vunpack.c.l.b16 %v3829
    %v3851 = vunpack.c.h.b16 %v3829
    %v3852 = vunpack.c.l.b16 %v3830
    %v3853 = vpack.c.b16 %v3846, %v3846
    %v3854 = vpack.c.b16 %v3847, %v3847
    %v3855 = vpack.c.b16 %v3848, %v3848
    %v3856 = vpack.c.b16 %v3849, %v3849
    %v3857 = vpack.c.b16 %v3850, %v3850
    %v3858 = vpack.c.b16 %v3851, %v3851
    %v3859 = vpack.c.b16 %v3852, %v3852
    %3860 = vrot.lane.b32.xlu0 %v3853, 19
    %v3861 = vpop.permute.xlu0 %3860
    %3862 = vrot.lane.b32.xlu0 %v3854, 19
    %v3863 = vpop.permute.xlu0 %3862
    %3864 = vrot.lane.b32.xlu0 %v3855, 19
    %v3865 = vpop.permute.xlu0 %3864
    %3866 = vrot.lane.b32.xlu0 %v3856, 19
    %v3867 = vpop.permute.xlu0 %3866
    %3868 = vrot.lane.b32.xlu0 %v3857, 19
    %v3869 = vpop.permute.xlu0 %3868
    %3870 = vrot.lane.b32.xlu0 %v3858, 19
    %v3871 = vpop.permute.xlu0 %3870
    %3872 = vrot.lane.b32.xlu0 %v3859, 19
    %v3873 = vpop.permute.xlu0 %3872
    %vm3874 = vcmask 154624
    %v3875 = vsel %vm3874, %v3861, %v3863
    %v3876 = vsel %vm3874, %v3863, %v3865
    %v3877 = vsel %vm3874, %v3865, %v3867
    %v3878 = vsel %vm3874, %v3867, %v3869
    %v3879 = vsel %vm3874, %v3869, %v3871
    %v3880 = vsel %vm3874, %v3871, %v3873
    %v3882 = vsel %vm1735, %v3841, 0
    %v3885 = vsel %vm1739, %v3875, 0
    %v3888 = vsel %vm1739, %v3876, 0
    %v3891 = vsel %vm1739, %v3877, 0
    %v3894 = vsel %vm1739, %v3878, 0
    %v3897 = vsel %vm1739, %v3879, 0
    %v3900 = vsel %vm1739, %v3880, 0
    %3902 = vmatpush.bf16.msra.mxu0 0
    %3903 = vmatpush.bf16.msra.mxu0 0
    %3904 = vmatpush.bf16.msra.mxu0 0
    %3905 = vmatpush.bf16.msra.mxu0 0
    %3906 = vmatpush.bf16.msra.mxu0 0
    %3907 = vmatpush.bf16.msra.mxu0 0
    %3908 = vmatpush.bf16.msra.mxu0 0
    %3909 = vmatpush.bf16.msra.mxu0 %v3885
    %3910 = vmatmul.bf16.gmra.mxu0 %v3882
    %v3911 = vpop.f32.mrf.mxu0
    %v3912 = vadd.f32 0.0, %v3911
    %v3913 = vpop.f32.mrf.mxu0
    %3914 = vdwg.mxu0
    %3915 = vmatpush.bf16.msra.mxu0 0
    %3916 = vmatpush.bf16.msra.mxu0 0
    %3917 = vmatpush.bf16.msra.mxu0 0
    %3918 = vmatpush.bf16.msra.mxu0 0
    %3919 = vmatpush.bf16.msra.mxu0 0
    %3920 = vmatpush.bf16.msra.mxu0 0
    %3921 = vmatpush.bf16.msra.mxu0 0
    %3922 = vmatpush.bf16.msra.mxu0 %v3888
    %3923 = vmatmul.bf16.gmra.mxu0 %v3882
    %v3924 = vpop.f32.mrf.mxu0
    %v3925 = vadd.f32 0.0, %v3924
    %v3926 = vpop.f32.mrf.mxu0
    %3927 = vdwg.mxu0
    %3928 = vmatpush.bf16.msra.mxu0 0
    %3929 = vmatpush.bf16.msra.mxu0 0
    %3930 = vmatpush.bf16.msra.mxu0 0
    %3931 = vmatpush.bf16.msra.mxu0 0
    %3932 = vmatpush.bf16.msra.mxu0 0
    %3933 = vmatpush.bf16.msra.mxu0 0
    %3934 = vmatpush.bf16.msra.mxu0 0
    %3935 = vmatpush.bf16.msra.mxu0 %v3891
    %3936 = vmatmul.bf16.gmra.mxu0 %v3882
    %v3937 = vpop.f32.mrf.mxu0
    %v3938 = vadd.f32 0.0, %v3937
    %v3939 = vpop.f32.mrf.mxu0
    %3940 = vdwg.mxu0
    %3941 = vmatpush.bf16.msra.mxu0 0
    %3942 = vmatpush.bf16.msra.mxu0 0
    %3943 = vmatpush.bf16.msra.mxu0 0
    %3944 = vmatpush.bf16.msra.mxu0 0
    %3945 = vmatpush.bf16.msra.mxu0 0
    %3946 = vmatpush.bf16.msra.mxu0 0
    %3947 = vmatpush.bf16.msra.mxu0 0
    %3948 = vmatpush.bf16.msra.mxu0 %v3894
    %3949 = vmatmul.bf16.gmra.mxu0 %v3882
    %v3950 = vpop.f32.mrf.mxu0
    %v3951 = vadd.f32 0.0, %v3950
    %v3952 = vpop.f32.mrf.mxu0
    %3953 = vdwg.mxu0
    %3954 = vmatpush.bf16.msra.mxu0 0
    %3955 = vmatpush.bf16.msra.mxu0 0
    %3956 = vmatpush.bf16.msra.mxu0 0
    %3957 = vmatpush.bf16.msra.mxu0 0
    %3958 = vmatpush.bf16.msra.mxu0 0
    %3959 = vmatpush.bf16.msra.mxu0 0
    %3960 = vmatpush.bf16.msra.mxu0 0
    %3961 = vmatpush.bf16.msra.mxu0 %v3897
    %3962 = vmatmul.bf16.gmra.mxu0 %v3882
    %v3963 = vpop.f32.mrf.mxu0
    %v3964 = vadd.f32 0.0, %v3963
    %v3965 = vpop.f32.mrf.mxu0
    %3966 = vdwg.mxu0
    %3967 = vmatpush.bf16.msra.mxu0 0
    %3968 = vmatpush.bf16.msra.mxu0 0
    %3969 = vmatpush.bf16.msra.mxu0 0
    %3970 = vmatpush.bf16.msra.mxu0 0
    %3971 = vmatpush.bf16.msra.mxu0 0
    %3972 = vmatpush.bf16.msra.mxu0 0
    %3973 = vmatpush.bf16.msra.mxu0 0
    %3974 = vmatpush.bf16.msra.mxu0 %v3900
    %3975 = vmatmul.bf16.gmra.mxu0 %v3882
    %v3976 = vpop.f32.mrf.mxu0
    %v3977 = vadd.f32 0.0, %v3976
    %v3978 = vpop.f32.mrf.mxu0
    %3979 = vdwg.mxu0
    %3980 = vrot.lane.b32.xlu0 %v3853, 20
    %v3981 = vpop.permute.xlu0 %3980
    %3982 = vrot.lane.b32.xlu0 %v3854, 20
    %v3983 = vpop.permute.xlu0 %3982
    %3984 = vrot.lane.b32.xlu0 %v3855, 20
    %v3985 = vpop.permute.xlu0 %3984
    %3986 = vrot.lane.b32.xlu0 %v3856, 20
    %v3987 = vpop.permute.xlu0 %3986
    %3988 = vrot.lane.b32.xlu0 %v3857, 20
    %v3989 = vpop.permute.xlu0 %3988
    %3990 = vrot.lane.b32.xlu0 %v3858, 20
    %v3991 = vpop.permute.xlu0 %3990
    %3992 = vrot.lane.b32.xlu0 %v3859, 20
    %v3993 = vpop.permute.xlu0 %3992
    %vm3994 = vcmask 162816
    %v3995 = vsel %vm3994, %v3981, %v3983
    %v3996 = vsel %vm3994, %v3983, %v3985
    %v3997 = vsel %vm3994, %v3985, %v3987
    %v3998 = vsel %vm3994, %v3987, %v3989
    %v3999 = vsel %vm3994, %v3989, %v3991
    %v4000 = vsel %vm3994, %v3991, %v3993
    %v4002 = vsel %vm1735, %v3823, 0
    %v4005 = vsel %vm1739, %v3995, 0
    %v4008 = vsel %vm1739, %v3996, 0
    %v4011 = vsel %vm1739, %v3997, 0
    %v4014 = vsel %vm1739, %v3998, 0
    %v4017 = vsel %vm1739, %v3999, 0
    %v4020 = vsel %vm1739, %v4000, 0
    %4022 = vmatpush.bf16.msra.mxu0 0
    %4023 = vmatpush.bf16.msra.mxu0 0
    %4024 = vmatpush.bf16.msra.mxu0 0
    %4025 = vmatpush.bf16.msra.mxu0 0
    %4026 = vmatpush.bf16.msra.mxu0 0
    %4027 = vmatpush.bf16.msra.mxu0 0
    %4028 = vmatpush.bf16.msra.mxu0 0
    %4029 = vmatpush.bf16.msra.mxu0 %v4005
    %4030 = vmatmul.bf16.gmra.mxu0 %v4002
    %v4031 = vpop.f32.mrf.mxu0
    %v4032 = vadd.f32 %v3912, %v4031
    %v4033 = vpop.f32.mrf.mxu0
    %4034 = vdwg.mxu0
    %4035 = vmatpush.bf16.msra.mxu0 0
    %4036 = vmatpush.bf16.msra.mxu0 0
    %4037 = vmatpush.bf16.msra.mxu0 0
    %4038 = vmatpush.bf16.msra.mxu0 0
    %4039 = vmatpush.bf16.msra.mxu0 0
    %4040 = vmatpush.bf16.msra.mxu0 0
    %4041 = vmatpush.bf16.msra.mxu0 0
    %4042 = vmatpush.bf16.msra.mxu0 %v4008
    %4043 = vmatmul.bf16.gmra.mxu0 %v4002
    %v4044 = vpop.f32.mrf.mxu0
    %v4045 = vadd.f32 %v3925, %v4044
    %v4046 = vpop.f32.mrf.mxu0
    %4047 = vdwg.mxu0
    %4048 = vmatpush.bf16.msra.mxu0 0
    %4049 = vmatpush.bf16.msra.mxu0 0
    %4050 = vmatpush.bf16.msra.mxu0 0
    %4051 = vmatpush.bf16.msra.mxu0 0
    %4052 = vmatpush.bf16.msra.mxu0 0
    %4053 = vmatpush.bf16.msra.mxu0 0
    %4054 = vmatpush.bf16.msra.mxu0 0
    %4055 = vmatpush.bf16.msra.mxu0 %v4011
    %4056 = vmatmul.bf16.gmra.mxu0 %v4002
    %v4057 = vpop.f32.mrf.mxu0
    %v4058 = vadd.f32 %v3938, %v4057
    %v4059 = vpop.f32.mrf.mxu0
    %4060 = vdwg.mxu0
    %4061 = vmatpush.bf16.msra.mxu0 0
    %4062 = vmatpush.bf16.msra.mxu0 0
    %4063 = vmatpush.bf16.msra.mxu0 0
    %4064 = vmatpush.bf16.msra.mxu0 0
    %4065 = vmatpush.bf16.msra.mxu0 0
    %4066 = vmatpush.bf16.msra.mxu0 0
    %4067 = vmatpush.bf16.msra.mxu0 0
    %4068 = vmatpush.bf16.msra.mxu0 %v4014
    %4069 = vmatmul.bf16.gmra.mxu0 %v4002
    %v4070 = vpop.f32.mrf.mxu0
    %v4071 = vadd.f32 %v3951, %v4070
    %v4072 = vpop.f32.mrf.mxu0
    %4073 = vdwg.mxu0
    %4074 = vmatpush.bf16.msra.mxu0 0
    %4075 = vmatpush.bf16.msra.mxu0 0
    %4076 = vmatpush.bf16.msra.mxu0 0
    %4077 = vmatpush.bf16.msra.mxu0 0
    %4078 = vmatpush.bf16.msra.mxu0 0
    %4079 = vmatpush.bf16.msra.mxu0 0
    %4080 = vmatpush.bf16.msra.mxu0 0
    %4081 = vmatpush.bf16.msra.mxu0 %v4017
    %4082 = vmatmul.bf16.gmra.mxu0 %v4002
    %v4083 = vpop.f32.mrf.mxu0
    %v4084 = vadd.f32 %v3964, %v4083
    %v4085 = vpop.f32.mrf.mxu0
    %4086 = vdwg.mxu0
    %4087 = vmatpush.bf16.msra.mxu0 0
    %4088 = vmatpush.bf16.msra.mxu0 0
    %4089 = vmatpush.bf16.msra.mxu0 0
    %4090 = vmatpush.bf16.msra.mxu0 0
    %4091 = vmatpush.bf16.msra.mxu0 0
    %4092 = vmatpush.bf16.msra.mxu0 0
    %4093 = vmatpush.bf16.msra.mxu0 0
    %4094 = vmatpush.bf16.msra.mxu0 %v4020
    %4095 = vmatmul.bf16.gmra.mxu0 %v4002
    %v4096 = vpop.f32.mrf.mxu0
    %v4097 = vadd.f32 %v3977, %v4096
    %v4098 = vpop.f32.mrf.mxu0
    %4099 = vdwg.mxu0
    %v4101 = vunpack.c.l.b16 %v3824
    %v4102 = vpack.c.b16 %v4101, %v3832
    %v4103 = vrot.slane %v4102, 3
    %4104 = vrot.lane.b32.xlu0 %v3853, 18
    %v4105 = vpop.permute.xlu0 %4104
    %4106 = vrot.lane.b32.xlu0 %v3854, 18
    %v4107 = vpop.permute.xlu0 %4106
    %4108 = vrot.lane.b32.xlu0 %v3855, 18
    %v4109 = vpop.permute.xlu0 %4108
    %4110 = vrot.lane.b32.xlu0 %v3856, 18
    %v4111 = vpop.permute.xlu0 %4110
    %4112 = vrot.lane.b32.xlu0 %v3857, 18
    %v4113 = vpop.permute.xlu0 %4112
    %4114 = vrot.lane.b32.xlu0 %v3858, 18
    %v4115 = vpop.permute.xlu0 %4114
    %4116 = vrot.lane.b32.xlu0 %v3859, 18
    %v4117 = vpop.permute.xlu0 %4116
    %vm4118 = vcmask 146432
    %v4119 = vsel %vm4118, %v4105, %v4107
    %v4120 = vsel %vm4118, %v4107, %v4109
    %v4121 = vsel %vm4118, %v4109, %v4111
    %v4122 = vsel %vm4118, %v4111, %v4113
    %v4123 = vsel %vm4118, %v4113, %v4115
    %v4124 = vsel %vm4118, %v4115, %v4117
    %v4126 = vsel %vm1735, %v4103, 0
    %v4129 = vsel %vm1739, %v4119, 0
    %v4132 = vsel %vm1739, %v4120, 0
    %v4135 = vsel %vm1739, %v4121, 0
    %v4138 = vsel %vm1739, %v4122, 0
    %v4141 = vsel %vm1739, %v4123, 0
    %v4144 = vsel %vm1739, %v4124, 0
    %4146 = vmatpush.bf16.msra.mxu0 0
    %4147 = vmatpush.bf16.msra.mxu0 0
    %4148 = vmatpush.bf16.msra.mxu0 0
    %4149 = vmatpush.bf16.msra.mxu0 0
    %4150 = vmatpush.bf16.msra.mxu0 0
    %4151 = vmatpush.bf16.msra.mxu0 0
    %4152 = vmatpush.bf16.msra.mxu0 0
    %4153 = vmatpush.bf16.msra.mxu0 %v4129
    %4154 = vmatmul.bf16.gmra.mxu0 %v4126
    %v4155 = vpop.f32.mrf.mxu0
    %v4156 = vadd.f32 0.0, %v4155
    %v4157 = vpop.f32.mrf.mxu0
    %4158 = vdwg.mxu0
    %4159 = vmatpush.bf16.msra.mxu0 0
    %4160 = vmatpush.bf16.msra.mxu0 0
    %4161 = vmatpush.bf16.msra.mxu0 0
    %4162 = vmatpush.bf16.msra.mxu0 0
    %4163 = vmatpush.bf16.msra.mxu0 0
    %4164 = vmatpush.bf16.msra.mxu0 0
    %4165 = vmatpush.bf16.msra.mxu0 0
    %4166 = vmatpush.bf16.msra.mxu0 %v4132
    %4167 = vmatmul.bf16.gmra.mxu0 %v4126
    %v4168 = vpop.f32.mrf.mxu0
    %v4169 = vadd.f32 0.0, %v4168
    %v4170 = vpop.f32.mrf.mxu0
    %4171 = vdwg.mxu0
    %4172 = vmatpush.bf16.msra.mxu0 0
    %4173 = vmatpush.bf16.msra.mxu0 0
    %4174 = vmatpush.bf16.msra.mxu0 0
    %4175 = vmatpush.bf16.msra.mxu0 0
    %4176 = vmatpush.bf16.msra.mxu0 0
    %4177 = vmatpush.bf16.msra.mxu0 0
    %4178 = vmatpush.bf16.msra.mxu0 0
    %4179 = vmatpush.bf16.msra.mxu0 %v4135
    %4180 = vmatmul.bf16.gmra.mxu0 %v4126
    %v4181 = vpop.f32.mrf.mxu0
    %v4182 = vadd.f32 0.0, %v4181
    %v4183 = vpop.f32.mrf.mxu0
    %4184 = vdwg.mxu0
    %4185 = vmatpush.bf16.msra.mxu0 0
    %4186 = vmatpush.bf16.msra.mxu0 0
    %4187 = vmatpush.bf16.msra.mxu0 0
    %4188 = vmatpush.bf16.msra.mxu0 0
    %4189 = vmatpush.bf16.msra.mxu0 0
    %4190 = vmatpush.bf16.msra.mxu0 0
    %4191 = vmatpush.bf16.msra.mxu0 0
    %4192 = vmatpush.bf16.msra.mxu0 %v4138
    %4193 = vmatmul.bf16.gmra.mxu0 %v4126
    %v4194 = vpop.f32.mrf.mxu0
    %v4195 = vadd.f32 0.0, %v4194
    %v4196 = vpop.f32.mrf.mxu0
    %4197 = vdwg.mxu0
    %4198 = vmatpush.bf16.msra.mxu0 0
    %4199 = vmatpush.bf16.msra.mxu0 0
    %4200 = vmatpush.bf16.msra.mxu0 0
    %4201 = vmatpush.bf16.msra.mxu0 0
    %4202 = vmatpush.bf16.msra.mxu0 0
    %4203 = vmatpush.bf16.msra.mxu0 0
    %4204 = vmatpush.bf16.msra.mxu0 0
    %4205 = vmatpush.bf16.msra.mxu0 %v4141
    %4206 = vmatmul.bf16.gmra.mxu0 %v4126
    %v4207 = vpop.f32.mrf.mxu0
    %v4208 = vadd.f32 0.0, %v4207
    %v4209 = vpop.f32.mrf.mxu0
    %4210 = vdwg.mxu0
    %4211 = vmatpush.bf16.msra.mxu0 0
    %4212 = vmatpush.bf16.msra.mxu0 0
    %4213 = vmatpush.bf16.msra.mxu0 0
    %4214 = vmatpush.bf16.msra.mxu0 0
    %4215 = vmatpush.bf16.msra.mxu0 0
    %4216 = vmatpush.bf16.msra.mxu0 0
    %4217 = vmatpush.bf16.msra.mxu0 0
    %4218 = vmatpush.bf16.msra.mxu0 %v4144
    %4219 = vmatmul.bf16.gmra.mxu0 %v4126
    %v4220 = vpop.f32.mrf.mxu0
    %v4221 = vadd.f32 0.0, %v4220
    %v4222 = vpop.f32.mrf.mxu0
    %4223 = vdwg.mxu0
    %v4224 = vadd.f32 %v4032, %v4156
    %v4225 = vadd.f32 %v4045, %v4169
    %v4226 = vadd.f32 %v4058, %v4182
    %v4227 = vadd.f32 %v4071, %v4195
    %v4228 = vadd.f32 %v4084, %v4208
    %v4229 = vadd.f32 %v4097, %v4221
    %v4230 = vpack.c.b16 %v4101, %v4101
    %v4232 = vshrl.u32 %v4230, 16
    %v4234 = vshll.u32 %v4230, 16
    %v4236 = vrot.slane %v4234, 1
    %v4237 = vor.u32 %v4232, %v4236
    %4238 = vrot.lane.b32.xlu0 %v3853, 1
    %v4239 = vpop.permute.xlu0 %4238
    %4240 = vrot.lane.b32.xlu0 %v3854, 1
    %v4241 = vpop.permute.xlu0 %4240
    %4242 = vrot.lane.b32.xlu0 %v3855, 1
    %v4243 = vpop.permute.xlu0 %4242
    %4244 = vrot.lane.b32.xlu0 %v3856, 1
    %v4245 = vpop.permute.xlu0 %4244
    %4246 = vrot.lane.b32.xlu0 %v3857, 1
    %v4247 = vpop.permute.xlu0 %4246
    %4248 = vrot.lane.b32.xlu0 %v3858, 1
    %v4249 = vpop.permute.xlu0 %4248
    %4250 = vrot.lane.b32.xlu0 %v3859, 1
    %v4251 = vpop.permute.xlu0 %4250
    %vm4252 = vcmask 7168
    %v4253 = vsel %vm4252, %v4239, %v4241
    %v4254 = vsel %vm4252, %v4241, %v4243
    %v4255 = vsel %vm4252, %v4243, %v4245
    %v4256 = vsel %vm4252, %v4245, %v4247
    %v4257 = vsel %vm4252, %v4247, %v4249
    %v4258 = vsel %vm4252, %v4249, %v4251
    %v4260 = vsel %vm1735, %v4237, 0
    %v4263 = vsel %vm1739, %v4253, 0
    %v4266 = vsel %vm1739, %v4254, 0
    %v4269 = vsel %vm1739, %v4255, 0
    %v4272 = vsel %vm1739, %v4256, 0
    %v4275 = vsel %vm1739, %v4257, 0
    %v4278 = vsel %vm1739, %v4258, 0
    %4280 = vmatpush.bf16.msra.mxu0 0
    %4281 = vmatpush.bf16.msra.mxu0 0
    %4282 = vmatpush.bf16.msra.mxu0 0
    %4283 = vmatpush.bf16.msra.mxu0 0
    %4284 = vmatpush.bf16.msra.mxu0 0
    %4285 = vmatpush.bf16.msra.mxu0 0
    %4286 = vmatpush.bf16.msra.mxu0 0
    %4287 = vmatpush.bf16.msra.mxu0 %v4263
    %4288 = vmatmul.bf16.gmra.mxu0 %v4260
    %v4289 = vpop.f32.mrf.mxu0
    %v4290 = vadd.f32 0.0, %v4289
    %v4291 = vpop.f32.mrf.mxu0
    %4292 = vdwg.mxu0
    %4293 = vmatpush.bf16.msra.mxu0 0
    %4294 = vmatpush.bf16.msra.mxu0 0
    %4295 = vmatpush.bf16.msra.mxu0 0
    %4296 = vmatpush.bf16.msra.mxu0 0
    %4297 = vmatpush.bf16.msra.mxu0 0
    %4298 = vmatpush.bf16.msra.mxu0 0
    %4299 = vmatpush.bf16.msra.mxu0 0
    %4300 = vmatpush.bf16.msra.mxu0 %v4266
    %4301 = vmatmul.bf16.gmra.mxu0 %v4260
    %v4302 = vpop.f32.mrf.mxu0
    %v4303 = vadd.f32 0.0, %v4302
    %v4304 = vpop.f32.mrf.mxu0
    %4305 = vdwg.mxu0
    %4306 = vmatpush.bf16.msra.mxu0 0
    %4307 = vmatpush.bf16.msra.mxu0 0
    %4308 = vmatpush.bf16.msra.mxu0 0
    %4309 = vmatpush.bf16.msra.mxu0 0
    %4310 = vmatpush.bf16.msra.mxu0 0
    %4311 = vmatpush.bf16.msra.mxu0 0
    %4312 = vmatpush.bf16.msra.mxu0 0
    %4313 = vmatpush.bf16.msra.mxu0 %v4269
    %4314 = vmatmul.bf16.gmra.mxu0 %v4260
    %v4315 = vpop.f32.mrf.mxu0
    %v4316 = vadd.f32 0.0, %v4315
    %v4317 = vpop.f32.mrf.mxu0
    %4318 = vdwg.mxu0
    %4319 = vmatpush.bf16.msra.mxu0 0
    %4320 = vmatpush.bf16.msra.mxu0 0
    %4321 = vmatpush.bf16.msra.mxu0 0
    %4322 = vmatpush.bf16.msra.mxu0 0
    %4323 = vmatpush.bf16.msra.mxu0 0
    %4324 = vmatpush.bf16.msra.mxu0 0
    %4325 = vmatpush.bf16.msra.mxu0 0
    %4326 = vmatpush.bf16.msra.mxu0 %v4272
    %4327 = vmatmul.bf16.gmra.mxu0 %v4260
    %v4328 = vpop.f32.mrf.mxu0
    %v4329 = vadd.f32 0.0, %v4328
    %v4330 = vpop.f32.mrf.mxu0
    %4331 = vdwg.mxu0
    %4332 = vmatpush.bf16.msra.mxu0 0
    %4333 = vmatpush.bf16.msra.mxu0 0
    %4334 = vmatpush.bf16.msra.mxu0 0
    %4335 = vmatpush.bf16.msra.mxu0 0
    %4336 = vmatpush.bf16.msra.mxu0 0
    %4337 = vmatpush.bf16.msra.mxu0 0
    %4338 = vmatpush.bf16.msra.mxu0 0
    %4339 = vmatpush.bf16.msra.mxu0 %v4275
    %4340 = vmatmul.bf16.gmra.mxu0 %v4260
    %v4341 = vpop.f32.mrf.mxu0
    %v4342 = vadd.f32 0.0, %v4341
    %v4343 = vpop.f32.mrf.mxu0
    %4344 = vdwg.mxu0
    %4345 = vmatpush.bf16.msra.mxu0 0
    %4346 = vmatpush.bf16.msra.mxu0 0
    %4347 = vmatpush.bf16.msra.mxu0 0
    %4348 = vmatpush.bf16.msra.mxu0 0
    %4349 = vmatpush.bf16.msra.mxu0 0
    %4350 = vmatpush.bf16.msra.mxu0 0
    %4351 = vmatpush.bf16.msra.mxu0 0
    %4352 = vmatpush.bf16.msra.mxu0 %v4278
    %4353 = vmatmul.bf16.gmra.mxu0 %v4260
    %v4354 = vpop.f32.mrf.mxu0
    %v4355 = vadd.f32 0.0, %v4354
    %v4356 = vpop.f32.mrf.mxu0
    %4357 = vdwg.mxu0
    %v4358 = vadd.f32 %v4224, %v4290
    %v4359 = vadd.f32 %v4225, %v4303
    %v4360 = vadd.f32 %v4226, %v4316
    %v4361 = vadd.f32 %v4227, %v4329
    %v4362 = vadd.f32 %v4228, %v4342
    %v4363 = vadd.f32 %v4229, %v4355
    %v4364 = vld [vmem:[#allocation2 + $0x4] sm:$0xff]
    %v4365 = vld [vmem:[#allocation2 + $0xc] sm:$0xff]
    %v4366 = vld [vmem:[#allocation2 + $0x14] sm:$0xff]
    %v4367 = vrot.slane %v4230, 2
    %v4371 = vunpack.c.l.b16 %v4364
    %v4372 = vunpack.c.h.b16 %v4364
    %v4373 = vunpack.c.l.b16 %v4365
    %v4374 = vunpack.c.h.b16 %v4365
    %v4375 = vunpack.c.l.b16 %v4366
    %v4376 = vunpack.c.h.b16 %v4366
    %v4377 = vpack.c.b16 %v4371, %v4371
    %v4378 = vpack.c.b16 %v4372, %v4372
    %v4379 = vpack.c.b16 %v4373, %v4373
    %v4380 = vpack.c.b16 %v4374, %v4374
    %v4381 = vpack.c.b16 %v4375, %v4375
    %v4382 = vpack.c.b16 %v4376, %v4376
    %v4384 = vsel %vm1735, %v4367, 0
    %v4387 = vsel %vm1739, %v4377, 0
    %v4390 = vsel %vm1739, %v4378, 0
    %v4393 = vsel %vm1739, %v4379, 0
    %v4396 = vsel %vm1739, %v4380, 0
    %v4399 = vsel %vm1739, %v4381, 0
    %v4402 = vsel %vm1739, %v4382, 0
    %4404 = vmatpush.bf16.msra.mxu0 0
    %4405 = vmatpush.bf16.msra.mxu0 0
    %4406 = vmatpush.bf16.msra.mxu0 0
    %4407 = vmatpush.bf16.msra.mxu0 0
    %4408 = vmatpush.bf16.msra.mxu0 0
    %4409 = vmatpush.bf16.msra.mxu0 0
    %4410 = vmatpush.bf16.msra.mxu0 0
    %4411 = vmatpush.bf16.msra.mxu0 %v4387
    %4412 = vmatmul.bf16.gmra.mxu0 %v4384
    %v4413 = vpop.f32.mrf.mxu0
    %v4414 = vadd.f32 0.0, %v4413
    %v4415 = vpop.f32.mrf.mxu0
    %4416 = vdwg.mxu0
    %4417 = vmatpush.bf16.msra.mxu0 0
    %4418 = vmatpush.bf16.msra.mxu0 0
    %4419 = vmatpush.bf16.msra.mxu0 0
    %4420 = vmatpush.bf16.msra.mxu0 0
    %4421 = vmatpush.bf16.msra.mxu0 0
    %4422 = vmatpush.bf16.msra.mxu0 0
    %4423 = vmatpush.bf16.msra.mxu0 0
    %4424 = vmatpush.bf16.msra.mxu0 %v4390
    %4425 = vmatmul.bf16.gmra.mxu0 %v4384
    %v4426 = vpop.f32.mrf.mxu0
    %v4427 = vadd.f32 0.0, %v4426
    %v4428 = vpop.f32.mrf.mxu0
    %4429 = vdwg.mxu0
    %4430 = vmatpush.bf16.msra.mxu0 0
    %4431 = vmatpush.bf16.msra.mxu0 0
    %4432 = vmatpush.bf16.msra.mxu0 0
    %4433 = vmatpush.bf16.msra.mxu0 0
    %4434 = vmatpush.bf16.msra.mxu0 0
    %4435 = vmatpush.bf16.msra.mxu0 0
    %4436 = vmatpush.bf16.msra.mxu0 0
    %4437 = vmatpush.bf16.msra.mxu0 %v4393
    %4438 = vmatmul.bf16.gmra.mxu0 %v4384
    %v4439 = vpop.f32.mrf.mxu0
    %v4440 = vadd.f32 0.0, %v4439
    %v4441 = vpop.f32.mrf.mxu0
    %4442 = vdwg.mxu0
    %4443 = vmatpush.bf16.msra.mxu0 0
    %4444 = vmatpush.bf16.msra.mxu0 0
    %4445 = vmatpush.bf16.msra.mxu0 0
    %4446 = vmatpush.bf16.msra.mxu0 0
    %4447 = vmatpush.bf16.msra.mxu0 0
    %4448 = vmatpush.bf16.msra.mxu0 0
    %4449 = vmatpush.bf16.msra.mxu0 0
    %4450 = vmatpush.bf16.msra.mxu0 %v4396
    %4451 = vmatmul.bf16.gmra.mxu0 %v4384
    %v4452 = vpop.f32.mrf.mxu0
    %v4453 = vadd.f32 0.0, %v4452
    %v4454 = vpop.f32.mrf.mxu0
    %4455 = vdwg.mxu0
    %4456 = vmatpush.bf16.msra.mxu0 0
    %4457 = vmatpush.bf16.msra.mxu0 0
    %4458 = vmatpush.bf16.msra.mxu0 0
    %4459 = vmatpush.bf16.msra.mxu0 0
    %4460 = vmatpush.bf16.msra.mxu0 0
    %4461 = vmatpush.bf16.msra.mxu0 0
    %4462 = vmatpush.bf16.msra.mxu0 0
    %4463 = vmatpush.bf16.msra.mxu0 %v4399
    %4464 = vmatmul.bf16.gmra.mxu0 %v4384
    %v4465 = vpop.f32.mrf.mxu0
    %v4466 = vadd.f32 0.0, %v4465
    %v4467 = vpop.f32.mrf.mxu0
    %4468 = vdwg.mxu0
    %4469 = vmatpush.bf16.msra.mxu0 0
    %4470 = vmatpush.bf16.msra.mxu0 0
    %4471 = vmatpush.bf16.msra.mxu0 0
    %4472 = vmatpush.bf16.msra.mxu0 0
    %4473 = vmatpush.bf16.msra.mxu0 0
    %4474 = vmatpush.bf16.msra.mxu0 0
    %4475 = vmatpush.bf16.msra.mxu0 0
    %4476 = vmatpush.bf16.msra.mxu0 %v4402
    %4477 = vmatmul.bf16.gmra.mxu0 %v4384
    %v4478 = vpop.f32.mrf.mxu0
    %v4479 = vadd.f32 0.0, %v4478
    %v4480 = vpop.f32.mrf.mxu0
    %4481 = vdwg.mxu0
    %v4482 = vadd.f32 %v4358, %v4414
    %v4483 = vadd.f32 %v4359, %v4427
    %v4484 = vadd.f32 %v4360, %v4440
    %v4485 = vadd.f32 %v4361, %v4453
    %v4486 = vadd.f32 %v4362, %v4466
    %v4487 = vadd.f32 %v4363, %v4479
    %v4489 = vunpack.c.l.b16 %v3825
    %v4490 = vpack.c.b16 %v4489, %v4101
    %v4492 = vshrl.u32 %v4490, 16
    %v4494 = vrot.slane %v4492, 3
    %v4495 = vshll.u32 %v4490, 16
    %v4497 = vrot.slane %v4495, 4
    %v4498 = vor.u32 %v4494, %v4497
    %4499 = vrot.lane.b32.xlu0 %v4377, 127
    %v4500 = vpop.permute.xlu0 %4499
    %4501 = vrot.lane.b32.xlu0 %v4378, 127
    %v4502 = vpop.permute.xlu0 %4501
    %4503 = vrot.lane.b32.xlu0 %v4379, 127
    %v4504 = vpop.permute.xlu0 %4503
    %4505 = vrot.lane.b32.xlu0 %v4380, 127
    %v4506 = vpop.permute.xlu0 %4505
    %4507 = vrot.lane.b32.xlu0 %v4381, 127
    %v4508 = vpop.permute.xlu0 %4507
    %4509 = vrot.lane.b32.xlu0 %v4382, 127
    %v4510 = vpop.permute.xlu0 %4509
    %v4511 = vsel %vm292, %v4500, %v4502
    %v4512 = vsel %vm292, %v4502, %v4504
    %v4513 = vsel %vm292, %v4504, %v4506
    %v4514 = vsel %vm292, %v4506, %v4508
    %v4515 = vsel %vm292, %v4508, %v4510
    %v4517 = vsel %vm1735, %v4498, 0
    %v4520 = vsel %vm1739, %v4511, 0
    %v4523 = vsel %vm1739, %v4512, 0
    %v4526 = vsel %vm1739, %v4513, 0
    %v4529 = vsel %vm1739, %v4514, 0
    %v4532 = vsel %vm1739, %v4515, 0
    %v4535 = vsel %vm1739, %v4510, 0
    %4537 = vmatpush.bf16.msra.mxu0 0
    %4538 = vmatpush.bf16.msra.mxu0 0
    %4539 = vmatpush.bf16.msra.mxu0 0
    %4540 = vmatpush.bf16.msra.mxu0 0
    %4541 = vmatpush.bf16.msra.mxu0 0
    %4542 = vmatpush.bf16.msra.mxu0 0
    %4543 = vmatpush.bf16.msra.mxu0 0
    %4544 = vmatpush.bf16.msra.mxu0 %v4520
    %4545 = vmatmul.bf16.gmra.mxu0 %v4517
    %v4546 = vpop.f32.mrf.mxu0
    %v4547 = vadd.f32 0.0, %v4546
    %v4548 = vpop.f32.mrf.mxu0
    %4549 = vdwg.mxu0
    %4550 = vmatpush.bf16.msra.mxu0 0
    %4551 = vmatpush.bf16.msra.mxu0 0
    %4552 = vmatpush.bf16.msra.mxu0 0
    %4553 = vmatpush.bf16.msra.mxu0 0
    %4554 = vmatpush.bf16.msra.mxu0 0
    %4555 = vmatpush.bf16.msra.mxu0 0
    %4556 = vmatpush.bf16.msra.mxu0 0
    %4557 = vmatpush.bf16.msra.mxu0 %v4523
    %4558 = vmatmul.bf16.gmra.mxu0 %v4517
    %v4559 = vpop.f32.mrf.mxu0
    %v4560 = vadd.f32 0.0, %v4559
    %v4561 = vpop.f32.mrf.mxu0
    %4562 = vdwg.mxu0
    %4563 = vmatpush.bf16.msra.mxu0 0
    %4564 = vmatpush.bf16.msra.mxu0 0
    %4565 = vmatpush.bf16.msra.mxu0 0
    %4566 = vmatpush.bf16.msra.mxu0 0
    %4567 = vmatpush.bf16.msra.mxu0 0
    %4568 = vmatpush.bf16.msra.mxu0 0
    %4569 = vmatpush.bf16.msra.mxu0 0
    %4570 = vmatpush.bf16.msra.mxu0 %v4526
    %4571 = vmatmul.bf16.gmra.mxu0 %v4517
    %v4572 = vpop.f32.mrf.mxu0
    %v4573 = vadd.f32 0.0, %v4572
    %v4574 = vpop.f32.mrf.mxu0
    %4575 = vdwg.mxu0
    %4576 = vmatpush.bf16.msra.mxu0 0
    %4577 = vmatpush.bf16.msra.mxu0 0
    %4578 = vmatpush.bf16.msra.mxu0 0
    %4579 = vmatpush.bf16.msra.mxu0 0
    %4580 = vmatpush.bf16.msra.mxu0 0
    %4581 = vmatpush.bf16.msra.mxu0 0
    %4582 = vmatpush.bf16.msra.mxu0 0
    %4583 = vmatpush.bf16.msra.mxu0 %v4529
    %4584 = vmatmul.bf16.gmra.mxu0 %v4517
    %v4585 = vpop.f32.mrf.mxu0
    %v4586 = vadd.f32 0.0, %v4585
    %v4587 = vpop.f32.mrf.mxu0
    %4588 = vdwg.mxu0
    %4589 = vmatpush.bf16.msra.mxu0 0
    %4590 = vmatpush.bf16.msra.mxu0 0
    %4591 = vmatpush.bf16.msra.mxu0 0
    %4592 = vmatpush.bf16.msra.mxu0 0
    %4593 = vmatpush.bf16.msra.mxu0 0
    %4594 = vmatpush.bf16.msra.mxu0 0
    %4595 = vmatpush.bf16.msra.mxu0 0
    %4596 = vmatpush.bf16.msra.mxu0 %v4532
    %4597 = vmatmul.bf16.gmra.mxu0 %v4517
    %v4598 = vpop.f32.mrf.mxu0
    %v4599 = vadd.f32 0.0, %v4598
    %v4600 = vpop.f32.mrf.mxu0
    %4601 = vdwg.mxu0
    %4602 = vmatpush.bf16.msra.mxu0 0
    %4603 = vmatpush.bf16.msra.mxu0 0
    %4604 = vmatpush.bf16.msra.mxu0 0
    %4605 = vmatpush.bf16.msra.mxu0 0
    %4606 = vmatpush.bf16.msra.mxu0 0
    %4607 = vmatpush.bf16.msra.mxu0 0
    %4608 = vmatpush.bf16.msra.mxu0 0
    %4609 = vmatpush.bf16.msra.mxu0 %v4535
    %4610 = vmatmul.bf16.gmra.mxu0 %v4517
    %v4611 = vpop.f32.mrf.mxu0
    %v4612 = vadd.f32 0.0, %v4611
    %v4613 = vpop.f32.mrf.mxu0
    %4614 = vdwg.mxu0
    %v4615 = vadd.f32 %v4482, %v4547
    %v4616 = vadd.f32 %v4483, %v4560
    %v4617 = vadd.f32 %v4484, %v4573
    %v4618 = vadd.f32 %v4485, %v4586
    %v4619 = vadd.f32 %v4486, %v4599
    %v4620 = vadd.f32 %v4487, %v4612
    %v4621 = vpack.c.b16 %v4489, %v4489
    %v4622 = vrot.slane %v4621, 1
    %4623 = vrot.lane.b32.xlu0 %v4377, 110
    %v4624 = vpop.permute.xlu0 %4623
    %4625 = vrot.lane.b32.xlu0 %v4378, 110
    %v4626 = vpop.permute.xlu0 %4625
    %4627 = vrot.lane.b32.xlu0 %v4379, 110
    %v4628 = vpop.permute.xlu0 %4627
    %4629 = vrot.lane.b32.xlu0 %v4380, 110
    %v4630 = vpop.permute.xlu0 %4629
    %4631 = vrot.lane.b32.xlu0 %v4381, 110
    %v4632 = vpop.permute.xlu0 %4631
    %4633 = vrot.lane.b32.xlu0 %v4382, 110
    %v4634 = vpop.permute.xlu0 %4633
    %vm4635 = vcmask 900096
    %v4636 = vsel %vm4635, %v4624, %v4626
    %v4637 = vsel %vm4635, %v4626, %v4628
    %v4638 = vsel %vm4635, %v4628, %v4630
    %v4639 = vsel %vm4635, %v4630, %v4632
    %v4640 = vsel %vm4635, %v4632, %v4634
    %v4642 = vsel %vm1735, %v4622, 0
    %v4645 = vsel %vm1739, %v4636, 0
    %v4648 = vsel %vm1739, %v4637, 0
    %v4651 = vsel %vm1739, %v4638, 0
    %v4654 = vsel %vm1739, %v4639, 0
    %v4657 = vsel %vm1739, %v4640, 0
    %v4660 = vsel %vm1739, %v4634, 0
    %4662 = vmatpush.bf16.msra.mxu0 0
    %4663 = vmatpush.bf16.msra.mxu0 0
    %4664 = vmatpush.bf16.msra.mxu0 0
    %4665 = vmatpush.bf16.msra.mxu0 0
    %4666 = vmatpush.bf16.msra.mxu0 0
    %4667 = vmatpush.bf16.msra.mxu0 0
    %4668 = vmatpush.bf16.msra.mxu0 0
    %4669 = vmatpush.bf16.msra.mxu0 %v4645
    %4670 = vmatmul.bf16.gmra.mxu0 %v4642
    %v4671 = vpop.f32.mrf.mxu0
    %v4672 = vadd.f32 0.0, %v4671
    %v4673 = vpop.f32.mrf.mxu0
    %4674 = vdwg.mxu0
    %4675 = vmatpush.bf16.msra.mxu0 0
    %4676 = vmatpush.bf16.msra.mxu0 0
    %4677 = vmatpush.bf16.msra.mxu0 0
    %4678 = vmatpush.bf16.msra.mxu0 0
    %4679 = vmatpush.bf16.msra.mxu0 0
    %4680 = vmatpush.bf16.msra.mxu0 0
    %4681 = vmatpush.bf16.msra.mxu0 0
    %4682 = vmatpush.bf16.msra.mxu0 %v4648
    %4683 = vmatmul.bf16.gmra.mxu0 %v4642
    %v4684 = vpop.f32.mrf.mxu0
    %v4685 = vadd.f32 0.0, %v4684
    %v4686 = vpop.f32.mrf.mxu0
    %4687 = vdwg.mxu0
    %4688 = vmatpush.bf16.msra.mxu0 0
    %4689 = vmatpush.bf16.msra.mxu0 0
    %4690 = vmatpush.bf16.msra.mxu0 0
    %4691 = vmatpush.bf16.msra.mxu0 0
    %4692 = vmatpush.bf16.msra.mxu0 0
    %4693 = vmatpush.bf16.msra.mxu0 0
    %4694 = vmatpush.bf16.msra.mxu0 0
    %4695 = vmatpush.bf16.msra.mxu0 %v4651
    %4696 = vmatmul.bf16.gmra.mxu0 %v4642
    %v4697 = vpop.f32.mrf.mxu0
    %v4698 = vadd.f32 0.0, %v4697
    %v4699 = vpop.f32.mrf.mxu0
    %4700 = vdwg.mxu0
    %4701 = vmatpush.bf16.msra.mxu0 0
    %4702 = vmatpush.bf16.msra.mxu0 0
    %4703 = vmatpush.bf16.msra.mxu0 0
    %4704 = vmatpush.bf16.msra.mxu0 0
    %4705 = vmatpush.bf16.msra.mxu0 0
    %4706 = vmatpush.bf16.msra.mxu0 0
    %4707 = vmatpush.bf16.msra.mxu0 0
    %4708 = vmatpush.bf16.msra.mxu0 %v4654
    %4709 = vmatmul.bf16.gmra.mxu0 %v4642
    %v4710 = vpop.f32.mrf.mxu0
    %v4711 = vadd.f32 0.0, %v4710
    %v4712 = vpop.f32.mrf.mxu0
    %4713 = vdwg.mxu0
    %4714 = vmatpush.bf16.msra.mxu0 0
    %4715 = vmatpush.bf16.msra.mxu0 0
    %4716 = vmatpush.bf16.msra.mxu0 0
    %4717 = vmatpush.bf16.msra.mxu0 0
    %4718 = vmatpush.bf16.msra.mxu0 0
    %4719 = vmatpush.bf16.msra.mxu0 0
    %4720 = vmatpush.bf16.msra.mxu0 0
    %4721 = vmatpush.bf16.msra.mxu0 %v4657
    %4722 = vmatmul.bf16.gmra.mxu0 %v4642
    %v4723 = vpop.f32.mrf.mxu0
    %v4724 = vadd.f32 0.0, %v4723
    %v4725 = vpop.f32.mrf.mxu0
    %4726 = vdwg.mxu0
    %4727 = vmatpush.bf16.msra.mxu0 0
    %4728 = vmatpush.bf16.msra.mxu0 0
    %4729 = vmatpush.bf16.msra.mxu0 0
    %4730 = vmatpush.bf16.msra.mxu0 0
    %4731 = vmatpush.bf16.msra.mxu0 0
    %4732 = vmatpush.bf16.msra.mxu0 0
    %4733 = vmatpush.bf16.msra.mxu0 0
    %4734 = vmatpush.bf16.msra.mxu0 %v4660
    %4735 = vmatmul.bf16.gmra.mxu0 %v4642
    %v4736 = vpop.f32.mrf.mxu0
    %v4737 = vadd.f32 0.0, %v4736
    %v4738 = vpop.f32.mrf.mxu0
    %4739 = vdwg.mxu0
    %v4740 = vadd.f32 %v4615, %v4672
    %v4741 = vadd.f32 %v4616, %v4685
    %v4742 = vadd.f32 %v4617, %v4698
    %v4743 = vadd.f32 %v4618, %v4711
    %v4744 = vadd.f32 %v4619, %v4724
    %v4745 = vadd.f32 %v4620, %v4737
    %v4747 = vshrl.u32 %v4621, 16
    %v4749 = vrot.slane %v4747, 2
    %v4750 = vshll.u32 %v4621, 16
    %v4752 = vrot.slane %v4750, 3
    %v4753 = vor.u32 %v4749, %v4752
    %4754 = vrot.lane.b32.xlu0 %v4377, 109
    %v4755 = vpop.permute.xlu0 %4754
    %4756 = vrot.lane.b32.xlu0 %v4378, 109
    %v4757 = vpop.permute.xlu0 %4756
    %4758 = vrot.lane.b32.xlu0 %v4379, 109
    %v4759 = vpop.permute.xlu0 %4758
    %4760 = vrot.lane.b32.xlu0 %v4380, 109
    %v4761 = vpop.permute.xlu0 %4760
    %4762 = vrot.lane.b32.xlu0 %v4381, 109
    %v4763 = vpop.permute.xlu0 %4762
    %4764 = vrot.lane.b32.xlu0 %v4382, 109
    %v4765 = vpop.permute.xlu0 %4764
    %v4766 = vsel %vm2191, %v4755, %v4757
    %v4767 = vsel %vm2191, %v4757, %v4759
    %v4768 = vsel %vm2191, %v4759, %v4761
    %v4769 = vsel %vm2191, %v4761, %v4763
    %v4770 = vsel %vm2191, %v4763, %v4765
    %v4772 = vsel %vm1735, %v4753, 0
    %v4775 = vsel %vm1739, %v4766, 0
    %v4778 = vsel %vm1739, %v4767, 0
    %v4781 = vsel %vm1739, %v4768, 0
    %v4784 = vsel %vm1739, %v4769, 0
    %v4787 = vsel %vm1739, %v4770, 0
    %v4790 = vsel %vm1739, %v4765, 0
    %4792 = vmatpush.bf16.msra.mxu0 0
    %4793 = vmatpush.bf16.msra.mxu0 0
    %4794 = vmatpush.bf16.msra.mxu0 0
    %4795 = vmatpush.bf16.msra.mxu0 0
    %4796 = vmatpush.bf16.msra.mxu0 0
    %4797 = vmatpush.bf16.msra.mxu0 0
    %4798 = vmatpush.bf16.msra.mxu0 0
    %4799 = vmatpush.bf16.msra.mxu0 %v4775
    %4800 = vmatmul.bf16.gmra.mxu0 %v4772
    %v4801 = vpop.f32.mrf.mxu0
    %v4802 = vadd.f32 0.0, %v4801
    %v4803 = vpop.f32.mrf.mxu0
    %4804 = vdwg.mxu0
    %4805 = vmatpush.bf16.msra.mxu0 0
    %4806 = vmatpush.bf16.msra.mxu0 0
    %4807 = vmatpush.bf16.msra.mxu0 0
    %4808 = vmatpush.bf16.msra.mxu0 0
    %4809 = vmatpush.bf16.msra.mxu0 0
    %4810 = vmatpush.bf16.msra.mxu0 0
    %4811 = vmatpush.bf16.msra.mxu0 0
    %4812 = vmatpush.bf16.msra.mxu0 %v4778
    %4813 = vmatmul.bf16.gmra.mxu0 %v4772
    %v4814 = vpop.f32.mrf.mxu0
    %v4815 = vadd.f32 0.0, %v4814
    %v4816 = vpop.f32.mrf.mxu0
    %4817 = vdwg.mxu0
    %4818 = vmatpush.bf16.msra.mxu0 0
    %4819 = vmatpush.bf16.msra.mxu0 0
    %4820 = vmatpush.bf16.msra.mxu0 0
    %4821 = vmatpush.bf16.msra.mxu0 0
    %4822 = vmatpush.bf16.msra.mxu0 0
    %4823 = vmatpush.bf16.msra.mxu0 0
    %4824 = vmatpush.bf16.msra.mxu0 0
    %4825 = vmatpush.bf16.msra.mxu0 %v4781
    %4826 = vmatmul.bf16.gmra.mxu0 %v4772
    %v4827 = vpop.f32.mrf.mxu0
    %v4828 = vadd.f32 0.0, %v4827
    %v4829 = vpop.f32.mrf.mxu0
    %4830 = vdwg.mxu0
    %4831 = vmatpush.bf16.msra.mxu0 0
    %4832 = vmatpush.bf16.msra.mxu0 0
    %4833 = vmatpush.bf16.msra.mxu0 0
    %4834 = vmatpush.bf16.msra.mxu0 0
    %4835 = vmatpush.bf16.msra.mxu0 0
    %4836 = vmatpush.bf16.msra.mxu0 0
    %4837 = vmatpush.bf16.msra.mxu0 0
    %4838 = vmatpush.bf16.msra.mxu0 %v4784
    %4839 = vmatmul.bf16.gmra.mxu0 %v4772
    %v4840 = vpop.f32.mrf.mxu0
    %v4841 = vadd.f32 0.0, %v4840
    %v4842 = vpop.f32.mrf.mxu0
    %4843 = vdwg.mxu0
    %4844 = vmatpush.bf16.msra.mxu0 0
    %4845 = vmatpush.bf16.msra.mxu0 0
    %4846 = vmatpush.bf16.msra.mxu0 0
    %4847 = vmatpush.bf16.msra.mxu0 0
    %4848 = vmatpush.bf16.msra.mxu0 0
    %4849 = vmatpush.bf16.msra.mxu0 0
    %4850 = vmatpush.bf16.msra.mxu0 0
    %4851 = vmatpush.bf16.msra.mxu0 %v4787
    %4852 = vmatmul.bf16.gmra.mxu0 %v4772
    %v4853 = vpop.f32.mrf.mxu0
    %v4854 = vadd.f32 0.0, %v4853
    %v4855 = vpop.f32.mrf.mxu0
    %4856 = vdwg.mxu0
    %4857 = vmatpush.bf16.msra.mxu0 0
    %4858 = vmatpush.bf16.msra.mxu0 0
    %4859 = vmatpush.bf16.msra.mxu0 0
    %4860 = vmatpush.bf16.msra.mxu0 0
    %4861 = vmatpush.bf16.msra.mxu0 0
    %4862 = vmatpush.bf16.msra.mxu0 0
    %4863 = vmatpush.bf16.msra.mxu0 0
    %4864 = vmatpush.bf16.msra.mxu0 %v4790
    %4865 = vmatmul.bf16.gmra.mxu0 %v4772
    %v4866 = vpop.f32.mrf.mxu0
    %v4867 = vadd.f32 0.0, %v4866
    %v4868 = vpop.f32.mrf.mxu0
    %4869 = vdwg.mxu0
    %v4870 = vadd.f32 %v4740, %v4802
    %v4871 = vadd.f32 %v4741, %v4815
    %v4872 = vadd.f32 %v4742, %v4828
    %v4873 = vadd.f32 %v4743, %v4841
    %v4874 = vadd.f32 %v4744, %v4854
    %v4875 = vadd.f32 %v4745, %v4867
    %4876 = vrot.lane.b32.xlu0 %v4377, 108
    %v4877 = vpop.permute.xlu0 %4876
    %4878 = vrot.lane.b32.xlu0 %v4378, 108
    %v4879 = vpop.permute.xlu0 %4878
    %4880 = vrot.lane.b32.xlu0 %v4379, 108
    %v4881 = vpop.permute.xlu0 %4880
    %4882 = vrot.lane.b32.xlu0 %v4380, 108
    %v4883 = vpop.permute.xlu0 %4882
    %4884 = vrot.lane.b32.xlu0 %v4381, 108
    %v4885 = vpop.permute.xlu0 %4884
    %4886 = vrot.lane.b32.xlu0 %v4382, 108
    %v4887 = vpop.permute.xlu0 %4886
    %v4888 = vsel %vm2314, %v4877, %v4879
    %v4889 = vsel %vm2314, %v4879, %v4881
    %v4890 = vsel %vm2314, %v4881, %v4883
    %v4891 = vsel %vm2314, %v4883, %v4885
    %v4892 = vsel %vm2314, %v4885, %v4887
    %v4894 = vsel %vm1735, %v3826, 0
    %v4897 = vsel %vm1739, %v4888, 0
    %v4900 = vsel %vm1739, %v4889, 0
    %v4903 = vsel %vm1739, %v4890, 0
    %v4906 = vsel %vm1739, %v4891, 0
    %v4909 = vsel %vm1739, %v4892, 0
    %v4912 = vsel %vm1739, %v4887, 0
    %4914 = vmatpush.bf16.msra.mxu0 0
    %4915 = vmatpush.bf16.msra.mxu0 0
    %4916 = vmatpush.bf16.msra.mxu0 0
    %4917 = vmatpush.bf16.msra.mxu0 0
    %4918 = vmatpush.bf16.msra.mxu0 0
    %4919 = vmatpush.bf16.msra.mxu0 0
    %4920 = vmatpush.bf16.msra.mxu0 0
    %4921 = vmatpush.bf16.msra.mxu0 %v4897
    %4922 = vmatmul.bf16.gmra.mxu0 %v4894
    %v4923 = vpop.f32.mrf.mxu0
    %v4924 = vadd.f32 0.0, %v4923
    %v4925 = vpop.f32.mrf.mxu0
    %4926 = vdwg.mxu0
    %4927 = vmatpush.bf16.msra.mxu0 0
    %4928 = vmatpush.bf16.msra.mxu0 0
    %4929 = vmatpush.bf16.msra.mxu0 0
    %4930 = vmatpush.bf16.msra.mxu0 0
    %4931 = vmatpush.bf16.msra.mxu0 0
    %4932 = vmatpush.bf16.msra.mxu0 0
    %4933 = vmatpush.bf16.msra.mxu0 0
    %4934 = vmatpush.bf16.msra.mxu0 %v4900
    %4935 = vmatmul.bf16.gmra.mxu0 %v4894
    %v4936 = vpop.f32.mrf.mxu0
    %v4937 = vadd.f32 0.0, %v4936
    %v4938 = vpop.f32.mrf.mxu0
    %4939 = vdwg.mxu0
    %4940 = vmatpush.bf16.msra.mxu0 0
    %4941 = vmatpush.bf16.msra.mxu0 0
    %4942 = vmatpush.bf16.msra.mxu0 0
    %4943 = vmatpush.bf16.msra.mxu0 0
    %4944 = vmatpush.bf16.msra.mxu0 0
    %4945 = vmatpush.bf16.msra.mxu0 0
    %4946 = vmatpush.bf16.msra.mxu0 0
    %4947 = vmatpush.bf16.msra.mxu0 %v4903
    %4948 = vmatmul.bf16.gmra.mxu0 %v4894
    %v4949 = vpop.f32.mrf.mxu0
    %v4950 = vadd.f32 0.0, %v4949
    %v4951 = vpop.f32.mrf.mxu0
    %4952 = vdwg.mxu0
    %4953 = vmatpush.bf16.msra.mxu0 0
    %4954 = vmatpush.bf16.msra.mxu0 0
    %4955 = vmatpush.bf16.msra.mxu0 0
    %4956 = vmatpush.bf16.msra.mxu0 0
    %4957 = vmatpush.bf16.msra.mxu0 0
    %4958 = vmatpush.bf16.msra.mxu0 0
    %4959 = vmatpush.bf16.msra.mxu0 0
    %4960 = vmatpush.bf16.msra.mxu0 %v4906
    %4961 = vmatmul.bf16.gmra.mxu0 %v4894
    %v4962 = vpop.f32.mrf.mxu0
    %v4963 = vadd.f32 0.0, %v4962
    %v4964 = vpop.f32.mrf.mxu0
    %4965 = vdwg.mxu0
    %4966 = vmatpush.bf16.msra.mxu0 0
    %4967 = vmatpush.bf16.msra.mxu0 0
    %4968 = vmatpush.bf16.msra.mxu0 0
    %4969 = vmatpush.bf16.msra.mxu0 0
    %4970 = vmatpush.bf16.msra.mxu0 0
    %4971 = vmatpush.bf16.msra.mxu0 0
    %4972 = vmatpush.bf16.msra.mxu0 0
    %4973 = vmatpush.bf16.msra.mxu0 %v4909
    %4974 = vmatmul.bf16.gmra.mxu0 %v4894
    %v4975 = vpop.f32.mrf.mxu0
    %v4976 = vadd.f32 0.0, %v4975
    %v4977 = vpop.f32.mrf.mxu0
    %4978 = vdwg.mxu0
    %4979 = vmatpush.bf16.msra.mxu0 0
    %4980 = vmatpush.bf16.msra.mxu0 0
    %4981 = vmatpush.bf16.msra.mxu0 0
    %4982 = vmatpush.bf16.msra.mxu0 0
    %4983 = vmatpush.bf16.msra.mxu0 0
    %4984 = vmatpush.bf16.msra.mxu0 0
    %4985 = vmatpush.bf16.msra.mxu0 0
    %4986 = vmatpush.bf16.msra.mxu0 %v4912
    %4987 = vmatmul.bf16.gmra.mxu0 %v4894
    %v4988 = vpop.f32.mrf.mxu0
    %v4989 = vadd.f32 0.0, %v4988
    %v4990 = vpop.f32.mrf.mxu0
    %4991 = vdwg.mxu0
    %v4992 = vadd.f32 %v4870, %v4924
    %v4993 = vadd.f32 %v4871, %v4937
    %v4994 = vadd.f32 %v4872, %v4950
    %v4995 = vadd.f32 %v4873, %v4963
    %v4996 = vadd.f32 %v4874, %v4976
    %v4997 = vadd.f32 %v4875, %v4989
    %v5000 = vrot.slane %v4993, 4
    %v5001 = vsel %vm1739, %v4992, %v5000
    %5003 = vst [vmem:[%s14] sm:$0x77] %v5001
    %vm5004 = vcmask 854016
    %5005 = vst.msk [vmem:[%s14 + $0x8] sm:$0x7] %vm5004, %v4994
    %v5010 = vrot.slane %v4995, 4
    %v5011 = vrot.slane %v4997, 4
    %v5012 = vsel %vm1739, %v4994, %v5010
    %v5013 = vsel %vm1739, %v4996, %v5011
    %5014 = vrot.lane.b32.xlu0 %v5012, 23
    %v5015 = vpop.permute.xlu0 %5014
    %5016 = vrot.lane.b32.xlu0 %v5013, 23
    %v5017 = vpop.permute.xlu0 %5016
    %v5018 = vrot.slane %v5015, 4
    %v5019 = vrot.slane %v5017, 4
    %v5020 = vsel %vm1739, %v5018, %v5019
    %vm5021 = vcmask 187392
    %v5022 = vsel %vm5021, %v5015, %v5020
    %v5023 = vsel %vm5021, %v5017, %v5019
    %s5026 = scalar_lea.vmem %s14, 12
    %5027 = vst [vmem:[%s5026] sm:$0x77] %v5022
    %5028 = vst.msk [vmem:[%s5026 + $0x8] sm:$0x7] %vm5004, %v5023
    // Predicated region
    $region62: #{forward.1} parent=1 // pred_check
      _
    $region63: #{forward.1} parent=1 // pred_check_branch
      %5030 = sbr.rel (0) target = $region65
    $region64: #{forward.1} parent=1 // pred_region
      _
    $region65: #{forward.1} parent=1 // pred_fallthru
      _
    // Predicated region
    $region66: #{forward.1} parent=1 // pred_check
      _
    $region67: #{forward.1} parent=1 // pred_check_branch
      %5032 = sbr.rel (0) target = $region69
    $region68: #{forward.1} parent=1 // pred_region
      _
    $region69: #{forward.1} parent=1 // pred_fallthru
      _
    %5033 = vsyncpa [#allocation4], 1

</llo_original>
